<compile_context>
chip_gen: v7x
topology: tpu7x:2x2x1
jax: 0.10.0
libtpu: 0.0.40
codegen_flags: <defaults>
</compile_context>

<pallas_src>
import jax
import jax.numpy as jnp
from jax import lax
from jax.experimental import pallas as pl
from jax.experimental.pallas import tpu as pltpu
from functools import partial


def _wnconv2d_kernel(x_ref, v_ref, g_ref, b_ref, o_ref, patch_ref, *,
                     KH, KW, C, O, Ho, Wo, NB):
    """One grid step = NB images.

    x_ref     : (NB, Hp, Wp, C)   padded NHWC activation tile
    v_ref     : (O, K)            raw weight, K = KH*KW*C, col = (kh*KW+kw)*C + c
    g_ref     : (O, 1)            weight-norm gain per output channel
    b_ref     : (O, 1)            conv bias
    o_ref     : (NB, O, Ho*Wo)    lane-dense NCHW output tile
    patch_ref : (NB*Ho*Wo, K)     VMEM im2col scratch
    """
    HW = Ho * Wo

    # ---- weight normalization (f32, tiny resident block, once per step) ----
    v = v_ref[...].astype(jnp.float32)                            # (O, K)
    norm = jnp.sqrt(jnp.sum(v * v, axis=1, keepdims=True))        # (O, 1)
    scale = g_ref[...].astype(jnp.float32) / norm                 # (O, 1)
    w = (v * scale).astype(patch_ref.dtype)                       # (O, K)

    # ---- im2col into VMEM scratch, then ONE fused K = KH*KW*C matmul ------
    for kh in range(KH):
        for kw in range(KW):
            col = (kh * KW + kw) * C
            slab = x_ref[:, kh:kh + Ho, kw:kw + Wo, :]            # (NB,Ho,Wo,C)
            patch_ref[:, col:col + C] = slab.reshape(NB * HW, C)

    # (O,K) x (rows,K) contracted on the last dims -> (O, rows).
    # Result is already in lane-dense NCHW order: no output transpose needed.
    acc = lax.dot_general(
        w, patch_ref[...],
        dimension_numbers=(((1,), (1,)), ((), ())),
        preferred_element_type=jnp.float32)                        # (O, NB*HW)
    acc = acc + b_ref[...].astype(jnp.float32)                     # (O,1) bcast

    for n in range(NB):                                            # static loop
        o_ref[n] = acc[:, n * HW:(n + 1) * HW].astype(o_ref.dtype)


def wn_conv2d(x_nchw, v_oihw, g, b, padding=1, batch_tile=None):
    """Weight-normalized 2D convolution, stride=1.

    x_nchw : (N, Cin, H, W)
    v_oihw : (Cout, Cin, KH, KW)   weight_norm "v" parameter
    g      : (Cout,)               weight_norm "g" parameter
    b      : (Cout,)               conv bias
    returns: (N, Cout, Ho, Wo)
    """
    N, C, H, W = x_nchw.shape
    O, _, KH, KW = v_oihw.shape
    Ho = H + 2 * padding - KH + 1
    Wo = W + 2 * padding - KW + 1
    Hp, Wp = H + 2 * padding, W + 2 * padding
    K = KH * KW * C

    NB = N if batch_tile is None else batch_tile
    assert N % NB == 0, "batch_tile must divide the batch size"

    # Wrapper glue: layout + padding (no compute).
    # TODO(synk): fuse the pad / NHWC transpose into the kernel (edge-masked
    # loads) to remove these wrapper HBM passes when activations get large.
    x = jnp.transpose(x_nchw, (0, 2, 3, 1))                                   # NHWC
    x = jnp.pad(x, ((0, 0), (padding, padding), (padding, padding), (0, 0)))
    # (O, K) with column order (kh*KW + kw)*C + c, matching the im2col patch.
    v_t = jnp.transpose(v_oihw, (0, 2, 3, 1)).reshape(O, K)
    g2 = g.reshape(O, 1)
    b2 = b.reshape(O, 1)

    kernel = partial(_wnconv2d_kernel, KH=KH, KW=KW, C=C, O=O,
                     Ho=Ho, Wo=Wo, NB=NB)

    out_flat = pl.pallas_call(
        kernel,
        out_shape=jax.ShapeDtypeStruct((N, O, Ho * Wo), x_nchw.dtype),
        grid=(N // NB,),
        in_specs=[
            pl.BlockSpec((NB, Hp, Wp, C), lambda t: (t, 0, 0, 0)),   # image tile
            pl.BlockSpec((O, K), lambda t: (0, 0)),                  # weight (resident)
            pl.BlockSpec((O, 1), lambda t: (0, 0)),                  # gain
            pl.BlockSpec((O, 1), lambda t: (0, 0)),                  # bias
        ],
        out_specs=pl.BlockSpec((NB, O, Ho * Wo), lambda t: (t, 0, 0)),
        scratch_shapes=[pltpu.VMEM((NB * Ho * Wo, K), x_nchw.dtype)],
        compiler_params=pltpu.CompilerParams(
            dimension_semantics=("parallel",)),
    )(x, v_t, g2, b2)

    # Contiguous reshape only (free) -- no output transpose pass over HBM.
    return out_flat.reshape(N, O, Ho, Wo)


def _reference(x_nchw, v_oihw, g, b, padding=1):
    """Pure-JAX reference matching torch.nn.utils.weight_norm(nn.Conv2d(...))."""
    norm = jnp.sqrt(jnp.sum(v_oihw * v_oihw, axis=(1, 2, 3), keepdims=True))
    w = g[:, None, None, None] * v_oihw / norm
    out = jax.lax.conv_general_dilated(
        x_nchw, w, window_strides=(1, 1),
        padding=[(padding, padding), (padding, padding)],
        dimension_numbers=("NCHW", "OIHW", "NCHW"))
    return out + b[None, :, None, None]


if __name__ == "__main__":
    # WNConv2d(in_channels=4, out_channels=8, kernel_size=3, padding=1)
    N, Cin, H, W = 2, 4, 16, 16
    Cout, KH, KW = 8, 3, 3
    padding = 1

    key = jax.random.PRNGKey(0)
    kx, kv, kg, kb = jax.random.split(key, 4)
    x = jax.random.normal(kx, (N, Cin, H, W), jnp.float32)
    v = jax.random.normal(kv, (Cout, Cin, KH, KW), jnp.float32) * 0.1
    g = jax.random.uniform(kg, (Cout,), jnp.float32, 0.5, 1.5)
    b = jax.random.normal(kb, (Cout,), jnp.float32) * 0.1

    out = wn_conv2d(x, v, g, b, padding=padding)
    out = jax.block_until_ready(out)

    ref = _reference(x, v, g, b, padding=padding)
    assert out.shape == (N, Cout, H, W), out.shape
    assert jnp.allclose(out, ref, atol=1e-4, rtol=1e-4), float(
        jnp.max(jnp.abs(out - ref)))

    print("KERNEL_OK")
</pallas_src>

<mosaic_0001>
module attributes {stable_mosaic.version = 11 : i64} {
  func.func @_wnconv2d_kernel(%arg0: i32, %arg1: memref<2x18x18x4xf32, #tpu.memory_space<vmem>>, %arg2: memref<8x36xf32, #tpu.memory_space<vmem>>, %arg3: memref<8x1xf32, #tpu.memory_space<vmem>>, %arg4: memref<8x1xf32, #tpu.memory_space<vmem>>, %arg5: memref<2x8x256xf32, #tpu.memory_space<vmem>>, %arg6: memref<512x36xf32, #tpu.memory_space<vmem>>) attributes {dimension_semantics = [#tpu.dimension_semantics<parallel>], iteration_bounds = array<i64: 1>, scalar_prefetch = 0 : i64, scratch_operands = 1 : i64, tpu.core_type = #tpu.core_type<tc>, window_params = [{transform_indices = @transform_0, window_bounds = array<i64: 2, 18, 18, 4>}, {pipeline_mode = #tpu.pipeline_mode<synchronous>, transform_indices = @transform_1, window_bounds = array<i64: 8, 36>}, {pipeline_mode = #tpu.pipeline_mode<synchronous>, transform_indices = @transform_2, window_bounds = array<i64: 8, 1>}, {pipeline_mode = #tpu.pipeline_mode<synchronous>, transform_indices = @transform_3, window_bounds = array<i64: 8, 1>}, {transform_indices = @transform_4, window_bounds = array<i64: 2, 8, 256>}]} {
    %c0 = arith.constant 0 : index
    %c0_0 = arith.constant 0 : index
    %0 = vector.load %arg2[%c0, %c0_0] : memref<8x36xf32, #tpu.memory_space<vmem>>, vector<8x36xf32>
    %1 = arith.mulf %0, %0 : vector<8x36xf32>
    %cst = arith.constant dense<0.000000e+00> : vector<8xf32>
    %2 = vector.multi_reduction <add>, %1, %cst [1] : vector<8x36xf32> to vector<8xf32>
    %3 = vector.shape_cast %2 : vector<8xf32> to vector<8x1xf32>
    %4 = math.sqrt %3 : vector<8x1xf32>
    %c0_1 = arith.constant 0 : index
    %c0_2 = arith.constant 0 : index
    %5 = vector.load %arg3[%c0_1, %c0_2] : memref<8x1xf32, #tpu.memory_space<vmem>>, vector<8x1xf32>
    %6 = arith.divf %5, %4 : vector<8x1xf32>
    %7 = vector.broadcast %6 : vector<8x1xf32> to vector<8x36xf32>
    %8 = arith.mulf %0, %7 : vector<8x36xf32>
    %c0_3 = arith.constant 0 : index
    %c0_4 = arith.constant 0 : index
    %c0_5 = arith.constant 0 : index
    %c0_6 = arith.constant 0 : index
    %9 = vector.load %arg1[%c0_3, %c0_4, %c0_5, %c0_6] : memref<2x18x18x4xf32, #tpu.memory_space<vmem>>, vector<2x16x16x4xf32>
    %10 = vector.shape_cast %9 : vector<2x16x16x4xf32> to vector<512x4xf32>
    %c0_7 = arith.constant 0 : index
    %c0_8 = arith.constant 0 : index
    %11 = vector.load %arg6[%c0_7, %c0_8] : memref<512x36xf32, #tpu.memory_space<vmem>>, vector<512x4xf32>
    tpu.vector_store %arg6[%c0_7, %c0_8], %10 {strides = array<i32>} : memref<512x36xf32, #tpu.memory_space<vmem>>, vector<512x4xf32>,
    %c0_9 = arith.constant 0 : index
    %c0_10 = arith.constant 0 : index
    %c1 = arith.constant 1 : index
    %c0_11 = arith.constant 0 : index
    %12 = vector.load %arg1[%c0_9, %c0_10, %c1, %c0_11] : memref<2x18x18x4xf32, #tpu.memory_space<vmem>>, vector<2x16x16x4xf32>
    %13 = vector.shape_cast %12 : vector<2x16x16x4xf32> to vector<512x4xf32>
    %c0_12 = arith.constant 0 : index
    %c4 = arith.constant 4 : index
    %14 = vector.load %arg6[%c0_12, %c4] : memref<512x36xf32, #tpu.memory_space<vmem>>, vector<512x4xf32>
    tpu.vector_store %arg6[%c0_12, %c4], %13 {strides = array<i32>} : memref<512x36xf32, #tpu.memory_space<vmem>>, vector<512x4xf32>,
    %c0_13 = arith.constant 0 : index
    %c0_14 = arith.constant 0 : index
    %c2 = arith.constant 2 : index
    %c0_15 = arith.constant 0 : index
    %15 = vector.load %arg1[%c0_13, %c0_14, %c2, %c0_15] : memref<2x18x18x4xf32, #tpu.memory_space<vmem>>, vector<2x16x16x4xf32>
    %16 = vector.shape_cast %15 : vector<2x16x16x4xf32> to vector<512x4xf32>
    %c0_16 = arith.constant 0 : index
    %c8 = arith.constant 8 : index
    %17 = vector.load %arg6[%c0_16, %c8] : memref<512x36xf32, #tpu.memory_space<vmem>>, vector<512x4xf32>
    tpu.vector_store %arg6[%c0_16, %c8], %16 {strides = array<i32>} : memref<512x36xf32, #tpu.memory_space<vmem>>, vector<512x4xf32>,
    %c0_17 = arith.constant 0 : index
    %c1_18 = arith.constant 1 : index
    %c0_19 = arith.constant 0 : index
    %c0_20 = arith.constant 0 : index
    %18 = vector.load %arg1[%c0_17, %c1_18, %c0_19, %c0_20] : memref<2x18x18x4xf32, #tpu.memory_space<vmem>>, vector<2x16x16x4xf32>
    %19 = vector.shape_cast %18 : vector<2x16x16x4xf32> to vector<512x4xf32>
    %c0_21 = arith.constant 0 : index
    %c12 = arith.constant 12 : index
    %20 = vector.load %arg6[%c0_21, %c12] : memref<512x36xf32, #tpu.memory_space<vmem>>, vector<512x4xf32>
    tpu.vector_store %arg6[%c0_21, %c12], %19 {strides = array<i32>} : memref<512x36xf32, #tpu.memory_space<vmem>>, vector<512x4xf32>,
    %c0_22 = arith.constant 0 : index
    %c1_23 = arith.constant 1 : index
    %c1_24 = arith.constant 1 : index
    %c0_25 = arith.constant 0 : index
    %21 = vector.load %arg1[%c0_22, %c1_23, %c1_24, %c0_25] : memref<2x18x18x4xf32, #tpu.memory_space<vmem>>, vector<2x16x16x4xf32>
    %22 = vector.shape_cast %21 : vector<2x16x16x4xf32> to vector<512x4xf32>
    %c0_26 = arith.constant 0 : index
    %c16 = arith.constant 16 : index
    %23 = vector.load %arg6[%c0_26, %c16] : memref<512x36xf32, #tpu.memory_space<vmem>>, vector<512x4xf32>
    tpu.vector_store %arg6[%c0_26, %c16], %22 {strides = array<i32>} : memref<512x36xf32, #tpu.memory_space<vmem>>, vector<512x4xf32>,
    %c0_27 = arith.constant 0 : index
    %c1_28 = arith.constant 1 : index
    %c2_29 = arith.constant 2 : index
    %c0_30 = arith.constant 0 : index
    %24 = vector.load %arg1[%c0_27, %c1_28, %c2_29, %c0_30] : memref<2x18x18x4xf32, #tpu.memory_space<vmem>>, vector<2x16x16x4xf32>
    %25 = vector.shape_cast %24 : vector<2x16x16x4xf32> to vector<512x4xf32>
    %c0_31 = arith.constant 0 : index
    %c20 = arith.constant 20 : index
    %26 = vector.load %arg6[%c0_31, %c20] : memref<512x36xf32, #tpu.memory_space<vmem>>, vector<512x4xf32>
    tpu.vector_store %arg6[%c0_31, %c20], %25 {strides = array<i32>} : memref<512x36xf32, #tpu.memory_space<vmem>>, vector<512x4xf32>,
    %c0_32 = arith.constant 0 : index
    %c2_33 = arith.constant 2 : index
    %c0_34 = arith.constant 0 : index
    %c0_35 = arith.constant 0 : index
    %27 = vector.load %arg1[%c0_32, %c2_33, %c0_34, %c0_35] : memref<2x18x18x4xf32, #tpu.memory_space<vmem>>, vector<2x16x16x4xf32>
    %28 = vector.shape_cast %27 : vector<2x16x16x4xf32> to vector<512x4xf32>
    %c0_36 = arith.constant 0 : index
    %c24 = arith.constant 24 : index
    %29 = vector.load %arg6[%c0_36, %c24] : memref<512x36xf32, #tpu.memory_space<vmem>>, vector<512x4xf32>
    tpu.vector_store %arg6[%c0_36, %c24], %28 {strides = array<i32>} : memref<512x36xf32, #tpu.memory_space<vmem>>, vector<512x4xf32>,
    %c0_37 = arith.constant 0 : index
    %c2_38 = arith.constant 2 : index
    %c1_39 = arith.constant 1 : index
    %c0_40 = arith.constant 0 : index
    %30 = vector.load %arg1[%c0_37, %c2_38, %c1_39, %c0_40] : memref<2x18x18x4xf32, #tpu.memory_space<vmem>>, vector<2x16x16x4xf32>
    %31 = vector.shape_cast %30 : vector<2x16x16x4xf32> to vector<512x4xf32>
    %c0_41 = arith.constant 0 : index
    %c28 = arith.constant 28 : index
    %32 = vector.load %arg6[%c0_41, %c28] : memref<512x36xf32, #tpu.memory_space<vmem>>, vector<512x4xf32>
    tpu.vector_store %arg6[%c0_41, %c28], %31 {strides = array<i32>} : memref<512x36xf32, #tpu.memory_space<vmem>>, vector<512x4xf32>,
    %c0_42 = arith.constant 0 : index
    %c2_43 = arith.constant 2 : index
    %c2_44 = arith.constant 2 : index
    %c0_45 = arith.constant 0 : index
    %33 = vector.load %arg1[%c0_42, %c2_43, %c2_44, %c0_45] : memref<2x18x18x4xf32, #tpu.memory_space<vmem>>, vector<2x16x16x4xf32>
    %34 = vector.shape_cast %33 : vector<2x16x16x4xf32> to vector<512x4xf32>
    %c0_46 = arith.constant 0 : index
    %c32 = arith.constant 32 : index
    %35 = vector.load %arg6[%c0_46, %c32] : memref<512x36xf32, #tpu.memory_space<vmem>>, vector<512x4xf32>
    tpu.vector_store %arg6[%c0_46, %c32], %34 {strides = array<i32>} : memref<512x36xf32, #tpu.memory_space<vmem>>, vector<512x4xf32>,
    %c0_47 = arith.constant 0 : index
    %c0_48 = arith.constant 0 : index
    %36 = vector.load %arg6[%c0_47, %c0_48] : memref<512x36xf32, #tpu.memory_space<vmem>>, vector<512x36xf32>
    %cst_49 = arith.constant dense<0.000000e+00> : vector<8x512xf32>
    %37 = tpu.matmul %8, %36, %cst_49 {dimension_numbers = #tpu.dot_dimension_numbers<[1], [1], [0], [0], [0, 0, 1, 0], [], []>} : vector<8x36xf32>, vector<512x36xf32>, vector<8x512xf32> -> vector<8x512xf32>
    %c0_50 = arith.constant 0 : index
    %c0_51 = arith.constant 0 : index
    %38 = vector.load %arg4[%c0_50, %c0_51] : memref<8x1xf32, #tpu.memory_space<vmem>>, vector<8x1xf32>
    %39 = vector.broadcast %38 : vector<8x1xf32> to vector<8x512xf32>
    %40 = arith.addf %37, %39 : vector<8x512xf32>
    %41 = vector.extract_strided_slice %40 {offsets = [0, 0], sizes = [8, 256], strides = [1, 1]} : vector<8x512xf32> to vector<8x256xf32>
    %c0_52 = arith.constant 0 : index
    %c0_53 = arith.constant 0 : index
    %c0_54 = arith.constant 0 : index
    %42 = vector.load %arg5[%c0_52, %c0_53, %c0_54] : memref<2x8x256xf32, #tpu.memory_space<vmem>>, vector<1x8x256xf32>
    %43 = vector.shape_cast %42 : vector<1x8x256xf32> to vector<8x256xf32>
    %44 = vector.shape_cast %41 : vector<8x256xf32> to vector<1x8x256xf32>
    tpu.vector_store %arg5[%c0_52, %c0_53, %c0_54], %44 {strides = array<i32>} : memref<2x8x256xf32, #tpu.memory_space<vmem>>, vector<1x8x256xf32>,
    %45 = vector.extract_strided_slice %40 {offsets = [0, 256], sizes = [8, 256], strides = [1, 1]} : vector<8x512xf32> to vector<8x256xf32>
    %c1_55 = arith.constant 1 : index
    %c0_56 = arith.constant 0 : index
    %c0_57 = arith.constant 0 : index
    %46 = vector.load %arg5[%c1_55, %c0_56, %c0_57] : memref<2x8x256xf32, #tpu.memory_space<vmem>>, vector<1x8x256xf32>
    %47 = vector.shape_cast %46 : vector<1x8x256xf32> to vector<8x256xf32>
    %48 = vector.shape_cast %45 : vector<8x256xf32> to vector<1x8x256xf32>
    tpu.vector_store %arg5[%c1_55, %c0_56, %c0_57], %48 {strides = array<i32>} : memref<2x8x256xf32, #tpu.memory_space<vmem>>, vector<1x8x256xf32>,
    return
  }
  func.func @transform_0(%arg0: i32) -> (i32, i32, i32, i32) {
    %c0_i32 = arith.constant 0 : i32
    %c0_i32_0 = arith.constant 0 : i32
    %c0_i32_1 = arith.constant 0 : i32
    %c0_i32_2 = arith.constant 0 : i32
    return %arg0, %c0_i32, %c0_i32_0, %c0_i32_1 : i32, i32, i32, i32
  }
  func.func @transform_1(%arg0: i32) -> (i32, i32) {
    %c0_i32 = arith.constant 0 : i32
    %c0_i32_0 = arith.constant 0 : i32
    %c0_i32_1 = arith.constant 0 : i32
    return %c0_i32, %c0_i32_0 : i32, i32
  }
  func.func @transform_2(%arg0: i32) -> (i32, i32) {
    %c0_i32 = arith.constant 0 : i32
    %c0_i32_0 = arith.constant 0 : i32
    %c0_i32_1 = arith.constant 0 : i32
    return %c0_i32, %c0_i32_0 : i32, i32
  }
  func.func @transform_3(%arg0: i32) -> (i32, i32) {
    %c0_i32 = arith.constant 0 : i32
    %c0_i32_0 = arith.constant 0 : i32
    %c0_i32_1 = arith.constant 0 : i32
    return %c0_i32, %c0_i32_0 : i32, i32
  }
  func.func @transform_4(%arg0: i32) -> (i32, i32, i32) {
    %c0_i32 = arith.constant 0 : i32
    %c0_i32_0 = arith.constant 0 : i32
    %c0_i32_1 = arith.constant 0 : i32
    return %arg0, %c0_i32, %c0_i32_0 : i32, i32, i32
  }
}

</mosaic_0001>

<llo_original>
// kernel: tpu_custom_call.1
$region0: #{tpu_custom_call.1}
  #allocation0 [shape = 'u32[]', space=smem, size = 0x4, offset = 0x4, fixed_abs, tag = 'smem constant byte address 0x4 - core index']
  #allocation1 [shape = 'u32[144,128]{1,0:T(1,128)}', space=vmem, size = 0x12000, scoped, tag = 'internal scratch']
  #allocation2 [shape = 'f32[512,36]{1,0:T(8,128)}', space=vmem, size = 0x40000, scoped, tag = 'scratch operand']
  %s0 = inlined_call_operand.vmem [shape: f32[2,18,18,4], index: 0, kind: input, shape index: {}]
  %s1 = inlined_call_operand.vmem [shape: f32[8,36], index: 1, kind: input, shape index: {}]
  %s2 = inlined_call_operand.vmem [shape: f32[8,1], index: 2, kind: input, shape index: {}]
  %s3 = inlined_call_operand.vmem [shape: f32[8,1], index: 3, kind: input, shape index: {}]
  %s4 = inlined_call_operand.hbm [shape: f32[2,8,256], index: 4, kind: output, shape index: {}]
  %s5 = sld [smem:[#allocation0]]
  $region26: #{tpu_custom_call.1} parent=0
    _
  %s7 = ssub.s32 1, %s5
  %s8 = scalar_select 0, %s7, %s5
  $region1: #{tpu_custom_call.1} parent=0
    #allocation3 [shape = 'u8[16384]{0}', space=vmem, size = 0x4000, scoped, tag = 'output window, operand 0, single buffered']
    #allocation4 [shape = 's32[1]{0}', space=sflag, size = 0x4, scoped, tag = 'scoped memory for tpu_custom_call.1']
    %9 = vsyncpa [#allocation4], 0
    // Predicated region
    $region2: #{tpu_custom_call.1} parent=1 // pred_check
      _
    $region3: #{tpu_custom_call.1} parent=1 // pred_check_branch
      %11 = sbr.rel (0) target = $region5
    $region4: #{tpu_custom_call.1} parent=1 // pred_region
      _
    $region5: #{tpu_custom_call.1} parent=1 // pred_fallthru
      _
    // Predicated region
    $region6: #{tpu_custom_call.1} parent=1 // pred_check
      _
    $region7: #{tpu_custom_call.1} parent=1 // pred_check_branch
      %13 = sbr.rel (0) target = $region9
    $region8: #{tpu_custom_call.1} parent=1 // pred_region
      _
    $region9: #{tpu_custom_call.1} parent=1 // pred_fallthru
      _
    // Predicated region
    $region10: #{tpu_custom_call.1} parent=1 // pred_check
      _
    $region11: #{tpu_custom_call.1} parent=1 // pred_check_branch
      %15 = sbr.rel (0) target = $region13
    $region12: #{tpu_custom_call.1} parent=1 // pred_region
      _
    $region13: #{tpu_custom_call.1} parent=1 // pred_fallthru
      _
    // Predicated region
    $region14: #{tpu_custom_call.1} parent=1 // pred_check
      _
    $region15: #{tpu_custom_call.1} parent=1 // pred_check_branch
      %17 = sbr.rel (0) target = $region17
    $region16: #{tpu_custom_call.1} parent=1 // pred_region
      _
    $region17: #{tpu_custom_call.1} parent=1 // pred_fallthru
      _
    %v18 = vld [vmem:[%s1] sm:$0xff]
    %v19 = vmul.f32 %v18, %v18
    %vm20 = vcmask 293888
    %v21 = vsel %vm20, %v19, 0.0
    %22 = vadd.xlane.f32.xlu0 %v21
    %v23 = vpop.xlane.xlu0 %22
    %v24 = vrsqrt.pop %v23
    %v25 = vmul.f32 %v23, %v24
    %vm26 = vcmp.eq.f32.partialorder %v23, inf
    %v27 = vsel %vm26, %v23, %v25
    %vm28 = vcmp.eq.f32.partialorder %v23, 0.0
    %v29 = vand.u32 %v23, 2147483648
    %v30 = vsel %vm28, %v29, %v27
    %v31 = vld [vmem:[%s2] sm:$0xff]
    %v32 = vrcp.pop %v30
    %v33 = vmul.f32 %v31, %v32
    %35 = vset.pattern.permute.xlu0 0
    %36 = vperm.xlu0 %35, %v33
    %v37 = vpop.permute.xlu0 %36
    %v39 = vmul.f32 %v18, %v37
    %v40 = vld [vmem:[%s0] sm:$0xff]
    %v41 = vld [vmem:[%s0 + $0x8] sm:$0xff]
    %v42 = vld [vmem:[%s0 + $0x18] sm:$0xff]
    %v43 = vld [vmem:[%s0 + $0x20] sm:$0xff]
    %v44 = vld [vmem:[%s0 + $0x30] sm:$0xff]
    %v45 = vld [vmem:[%s0 + $0x38] sm:$0xff]
    %v46 = vld [vmem:[%s0 + $0x48] sm:$0xff]
    %v47 = vld [vmem:[%s0 + $0x50] sm:$0xff]
    %v48 = vld [vmem:[%s0 + $0x60] sm:$0xff]
    %v49 = vld [vmem:[%s0 + $0x68] sm:$0xff]
    %v50 = vld [vmem:[%s0 + $0x78] sm:$0xff]
    %v51 = vld [vmem:[%s0 + $0x80] sm:$0xff]
    %v52 = vld [vmem:[%s0 + $0x90] sm:$0xff]
    %v53 = vld [vmem:[%s0 + $0x98] sm:$0xff]
    %v54 = vld [vmem:[%s0 + $0xa8] sm:$0xff]
    %v55 = vld [vmem:[%s0 + $0xb0] sm:$0xff]
    %v56 = vld [vmem:[%s0 + $0xc0] sm:$0xff]
    %v57 = vld [vmem:[%s0 + $0xc8] sm:$0xff]
    %v58 = vld [vmem:[%s0 + $0xd8] sm:$0xff]
    %v59 = vld [vmem:[%s0 + $0xe0] sm:$0xff]
    %v60 = vld [vmem:[%s0 + $0xf0] sm:$0xff]
    %v61 = vld [vmem:[%s0 + $0xf8] sm:$0xff]
    %v62 = vld [vmem:[%s0 + $0x108] sm:$0xff]
    %v63 = vld [vmem:[%s0 + $0x110] sm:$0xff]
    %v64 = vld [vmem:[%s0 + $0x120] sm:$0xff]
    %v65 = vld [vmem:[%s0 + $0x128] sm:$0xff]
    %v66 = vld [vmem:[%s0 + $0x138] sm:$0xff]
    %v67 = vld [vmem:[%s0 + $0x140] sm:$0xff]
    %v68 = vld [vmem:[%s0 + $0x150] sm:$0xff]
    %v69 = vld [vmem:[%s0 + $0x158] sm:$0xff]
    %v70 = vld [vmem:[%s0 + $0x168] sm:$0xff]
    %v71 = vld [vmem:[%s0 + $0x170] sm:$0xff]
    %v72 = vld [vmem:[%s0 + $0x1b0] sm:$0xff]
    %v73 = vld [vmem:[%s0 + $0x1b8] sm:$0xff]
    %v74 = vld [vmem:[%s0 + $0x1c8] sm:$0xff]
    %v75 = vld [vmem:[%s0 + $0x1d0] sm:$0xff]
    %v76 = vld [vmem:[%s0 + $0x1e0] sm:$0xff]
    %v77 = vld [vmem:[%s0 + $0x1e8] sm:$0xff]
    %v78 = vld [vmem:[%s0 + $0x1f8] sm:$0xff]
    %v79 = vld [vmem:[%s0 + $0x200] sm:$0xff]
    %v80 = vld [vmem:[%s0 + $0x210] sm:$0xff]
    %v81 = vld [vmem:[%s0 + $0x218] sm:$0xff]
    %v82 = vld [vmem:[%s0 + $0x228] sm:$0xff]
    %v83 = vld [vmem:[%s0 + $0x230] sm:$0xff]
    %v84 = vld [vmem:[%s0 + $0x240] sm:$0xff]
    %v85 = vld [vmem:[%s0 + $0x248] sm:$0xff]
    %v86 = vld [vmem:[%s0 + $0x258] sm:$0xff]
    %v87 = vld [vmem:[%s0 + $0x260] sm:$0xff]
    %v88 = vld [vmem:[%s0 + $0x270] sm:$0xff]
    %v89 = vld [vmem:[%s0 + $0x278] sm:$0xff]
    %v90 = vld [vmem:[%s0 + $0x288] sm:$0xff]
    %v91 = vld [vmem:[%s0 + $0x290] sm:$0xff]
    %v92 = vld [vmem:[%s0 + $0x2a0] sm:$0xff]
    %v93 = vld [vmem:[%s0 + $0x2a8] sm:$0xff]
    %v94 = vld [vmem:[%s0 + $0x2b8] sm:$0xff]
    %v95 = vld [vmem:[%s0 + $0x2c0] sm:$0xff]
    %v96 = vld [vmem:[%s0 + $0x2d0] sm:$0xff]
    %v97 = vld [vmem:[%s0 + $0x2d8] sm:$0xff]
    %v98 = vld [vmem:[%s0 + $0x2e8] sm:$0xff]
    %v99 = vld [vmem:[%s0 + $0x2f0] sm:$0xff]
    %v100 = vld [vmem:[%s0 + $0x300] sm:$0xff]
    %v101 = vld [vmem:[%s0 + $0x308] sm:$0xff]
    %v102 = vld [vmem:[%s0 + $0x318] sm:$0xff]
    %v103 = vld [vmem:[%s0 + $0x320] sm:$0xff]
    %vm104 = vcmask 31744
    %105 = vst.msk [vmem:[#allocation2] sm:$0xff] %vm104, %v40
    %106 = vst.msk [vmem:[#allocation2 + $0x8] sm:$0xff] %vm104, %v41
    %107 = vst.msk [vmem:[#allocation2 + $0x10] sm:$0xff] %vm104, %v42
    %108 = vst.msk [vmem:[#allocation2 + $0x18] sm:$0xff] %vm104, %v43
    %109 = vst.msk [vmem:[#allocation2 + $0x20] sm:$0xff] %vm104, %v44
    %110 = vst.msk [vmem:[#allocation2 + $0x28] sm:$0xff] %vm104, %v45
    %111 = vst.msk [vmem:[#allocation2 + $0x30] sm:$0xff] %vm104, %v46
    %112 = vst.msk [vmem:[#allocation2 + $0x38] sm:$0xff] %vm104, %v47
    %113 = vst.msk [vmem:[#allocation2 + $0x40] sm:$0xff] %vm104, %v48
    %114 = vst.msk [vmem:[#allocation2 + $0x48] sm:$0xff] %vm104, %v49
    %115 = vst.msk [vmem:[#allocation2 + $0x50] sm:$0xff] %vm104, %v50
    %116 = vst.msk [vmem:[#allocation2 + $0x58] sm:$0xff] %vm104, %v51
    %117 = vst.msk [vmem:[#allocation2 + $0x60] sm:$0xff] %vm104, %v52
    %118 = vst.msk [vmem:[#allocation2 + $0x68] sm:$0xff] %vm104, %v53
    %119 = vst.msk [vmem:[#allocation2 + $0x70] sm:$0xff] %vm104, %v54
    %120 = vst.msk [vmem:[#allocation2 + $0x78] sm:$0xff] %vm104, %v55
    %121 = vst.msk [vmem:[#allocation2 + $0x80] sm:$0xff] %vm104, %v56
    %122 = vst.msk [vmem:[#allocation2 + $0x88] sm:$0xff] %vm104, %v57
    %123 = vst.msk [vmem:[#allocation2 + $0x90] sm:$0xff] %vm104, %v58
    %124 = vst.msk [vmem:[#allocation2 + $0x98] sm:$0xff] %vm104, %v59
    %125 = vst.msk [vmem:[#allocation2 + $0xa0] sm:$0xff] %vm104, %v60
    %126 = vst.msk [vmem:[#allocation2 + $0xa8] sm:$0xff] %vm104, %v61
    %127 = vst.msk [vmem:[#allocation2 + $0xb0] sm:$0xff] %vm104, %v62
    %128 = vst.msk [vmem:[#allocation2 + $0xb8] sm:$0xff] %vm104, %v63
    %129 = vst.msk [vmem:[#allocation2 + $0xc0] sm:$0xff] %vm104, %v64
    %130 = vst.msk [vmem:[#allocation2 + $0xc8] sm:$0xff] %vm104, %v65
    %131 = vst.msk [vmem:[#allocation2 + $0xd0] sm:$0xff] %vm104, %v66
    %132 = vst.msk [vmem:[#allocation2 + $0xd8] sm:$0xff] %vm104, %v67
    %133 = vst.msk [vmem:[#allocation2 + $0xe0] sm:$0xff] %vm104, %v68
    %134 = vst.msk [vmem:[#allocation2 + $0xe8] sm:$0xff] %vm104, %v69
    %135 = vst.msk [vmem:[#allocation2 + $0xf0] sm:$0xff] %vm104, %v70
    %136 = vst.msk [vmem:[#allocation2 + $0xf8] sm:$0xff] %vm104, %v71
    %137 = vst.msk [vmem:[#allocation2 + $0x100] sm:$0xff] %vm104, %v72
    %138 = vst.msk [vmem:[#allocation2 + $0x108] sm:$0xff] %vm104, %v73
    %139 = vst.msk [vmem:[#allocation2 + $0x110] sm:$0xff] %vm104, %v74
    %140 = vst.msk [vmem:[#allocation2 + $0x118] sm:$0xff] %vm104, %v75
    %141 = vst.msk [vmem:[#allocation2 + $0x120] sm:$0xff] %vm104, %v76
    %142 = vst.msk [vmem:[#allocation2 + $0x128] sm:$0xff] %vm104, %v77
    %143 = vst.msk [vmem:[#allocation2 + $0x130] sm:$0xff] %vm104, %v78
    %144 = vst.msk [vmem:[#allocation2 + $0x138] sm:$0xff] %vm104, %v79
    %145 = vst.msk [vmem:[#allocation2 + $0x140] sm:$0xff] %vm104, %v80
    %146 = vst.msk [vmem:[#allocation2 + $0x148] sm:$0xff] %vm104, %v81
    %147 = vst.msk [vmem:[#allocation2 + $0x150] sm:$0xff] %vm104, %v82
    %148 = vst.msk [vmem:[#allocation2 + $0x158] sm:$0xff] %vm104, %v83
    %149 = vst.msk [vmem:[#allocation2 + $0x160] sm:$0xff] %vm104, %v84
    %150 = vst.msk [vmem:[#allocation2 + $0x168] sm:$0xff] %vm104, %v85
    %151 = vst.msk [vmem:[#allocation2 + $0x170] sm:$0xff] %vm104, %v86
    %152 = vst.msk [vmem:[#allocation2 + $0x178] sm:$0xff] %vm104, %v87
    %153 = vst.msk [vmem:[#allocation2 + $0x180] sm:$0xff] %vm104, %v88
    %154 = vst.msk [vmem:[#allocation2 + $0x188] sm:$0xff] %vm104, %v89
    %155 = vst.msk [vmem:[#allocation2 + $0x190] sm:$0xff] %vm104, %v90
    %156 = vst.msk [vmem:[#allocation2 + $0x198] sm:$0xff] %vm104, %v91
    %157 = vst.msk [vmem:[#allocation2 + $0x1a0] sm:$0xff] %vm104, %v92
    %158 = vst.msk [vmem:[#allocation2 + $0x1a8] sm:$0xff] %vm104, %v93
    %159 = vst.msk [vmem:[#allocation2 + $0x1b0] sm:$0xff] %vm104, %v94
    %160 = vst.msk [vmem:[#allocation2 + $0x1b8] sm:$0xff] %vm104, %v95
    %161 = vst.msk [vmem:[#allocation2 + $0x1c0] sm:$0xff] %vm104, %v96
    %162 = vst.msk [vmem:[#allocation2 + $0x1c8] sm:$0xff] %vm104, %v97
    %163 = vst.msk [vmem:[#allocation2 + $0x1d0] sm:$0xff] %vm104, %v98
    %164 = vst.msk [vmem:[#allocation2 + $0x1d8] sm:$0xff] %vm104, %v99
    %165 = vst.msk [vmem:[#allocation2 + $0x1e0] sm:$0xff] %vm104, %v100
    %166 = vst.msk [vmem:[#allocation2 + $0x1e8] sm:$0xff] %vm104, %v101
    %167 = vst.msk [vmem:[#allocation2 + $0x1f0] sm:$0xff] %vm104, %v102
    %168 = vst.msk [vmem:[#allocation2 + $0x1f8] sm:$0xff] %vm104, %v103
    %v169 = vld [vmem:[%s0 + $0x1] sm:$0xff]
    %v170 = vld [vmem:[%s0 + $0x9] sm:$0xff]
    %v171 = vld [vmem:[%s0 + $0x19] sm:$0xff]
    %v172 = vld [vmem:[%s0 + $0x21] sm:$0xff]
    %v173 = vld [vmem:[%s0 + $0x31] sm:$0xff]
    %v174 = vld [vmem:[%s0 + $0x39] sm:$0xff]
    %v175 = vld [vmem:[%s0 + $0x49] sm:$0xff]
    %v176 = vld [vmem:[%s0 + $0x51] sm:$0xff]
    %v177 = vld [vmem:[%s0 + $0x61] sm:$0xff]
    %v178 = vld [vmem:[%s0 + $0x69] sm:$0xff]
    %v179 = vld [vmem:[%s0 + $0x79] sm:$0xff]
    %v180 = vld [vmem:[%s0 + $0x81] sm:$0xff]
    %v181 = vld [vmem:[%s0 + $0x91] sm:$0xff]
    %v182 = vld [vmem:[%s0 + $0x99] sm:$0xff]
    %v183 = vld [vmem:[%s0 + $0xa9] sm:$0xff]
    %v184 = vld [vmem:[%s0 + $0xb1] sm:$0xff]
    %v185 = vld [vmem:[%s0 + $0xc1] sm:$0xff]
    %v186 = vld [vmem:[%s0 + $0xc9] sm:$0xff]
    %v187 = vld [vmem:[%s0 + $0xd9] sm:$0xff]
    %v188 = vld [vmem:[%s0 + $0xe1] sm:$0xff]
    %v189 = vld [vmem:[%s0 + $0xf1] sm:$0xff]
    %v190 = vld [vmem:[%s0 + $0xf9] sm:$0xff]
    %v191 = vld [vmem:[%s0 + $0x109] sm:$0xff]
    %v192 = vld [vmem:[%s0 + $0x111] sm:$0xff]
    %v193 = vld [vmem:[%s0 + $0x121] sm:$0xff]
    %v194 = vld [vmem:[%s0 + $0x129] sm:$0xff]
    %v195 = vld [vmem:[%s0 + $0x139] sm:$0xff]
    %v196 = vld [vmem:[%s0 + $0x141] sm:$0xff]
    %v197 = vld [vmem:[%s0 + $0x151] sm:$0xff]
    %v198 = vld [vmem:[%s0 + $0x159] sm:$0xff]
    %v199 = vld [vmem:[%s0 + $0x169] sm:$0xff]
    %v200 = vld [vmem:[%s0 + $0x171] sm:$0xff]
    %v201 = vld [vmem:[%s0 + $0x1b1] sm:$0xff]
    %v202 = vld [vmem:[%s0 + $0x1b9] sm:$0xff]
    %v203 = vld [vmem:[%s0 + $0x1c9] sm:$0xff]
    %v204 = vld [vmem:[%s0 + $0x1d1] sm:$0xff]
    %v205 = vld [vmem:[%s0 + $0x1e1] sm:$0xff]
    %v206 = vld [vmem:[%s0 + $0x1e9] sm:$0xff]
    %v207 = vld [vmem:[%s0 + $0x1f9] sm:$0xff]
    %v208 = vld [vmem:[%s0 + $0x201] sm:$0xff]
    %v209 = vld [vmem:[%s0 + $0x211] sm:$0xff]
    %v210 = vld [vmem:[%s0 + $0x219] sm:$0xff]
    %v211 = vld [vmem:[%s0 + $0x229] sm:$0xff]
    %v212 = vld [vmem:[%s0 + $0x231] sm:$0xff]
    %v213 = vld [vmem:[%s0 + $0x241] sm:$0xff]
    %v214 = vld [vmem:[%s0 + $0x249] sm:$0xff]
    %v215 = vld [vmem:[%s0 + $0x259] sm:$0xff]
    %v216 = vld [vmem:[%s0 + $0x261] sm:$0xff]
    %v217 = vld [vmem:[%s0 + $0x271] sm:$0xff]
    %v218 = vld [vmem:[%s0 + $0x279] sm:$0xff]
    %v219 = vld [vmem:[%s0 + $0x289] sm:$0xff]
    %v220 = vld [vmem:[%s0 + $0x291] sm:$0xff]
    %v221 = vld [vmem:[%s0 + $0x2a1] sm:$0xff]
    %v222 = vld [vmem:[%s0 + $0x2a9] sm:$0xff]
    %v223 = vld [vmem:[%s0 + $0x2b9] sm:$0xff]
    %v224 = vld [vmem:[%s0 + $0x2c1] sm:$0xff]
    %v225 = vld [vmem:[%s0 + $0x2d1] sm:$0xff]
    %v226 = vld [vmem:[%s0 + $0x2d9] sm:$0xff]
    %v227 = vld [vmem:[%s0 + $0x2e9] sm:$0xff]
    %v228 = vld [vmem:[%s0 + $0x2f1] sm:$0xff]
    %v229 = vld [vmem:[%s0 + $0x301] sm:$0xff]
    %v230 = vld [vmem:[%s0 + $0x309] sm:$0xff]
    %v231 = vld [vmem:[%s0 + $0x319] sm:$0xff]
    %v232 = vld [vmem:[%s0 + $0x321] sm:$0xff]
    %297 = vrot.lane.b32.xlu0 %v169, 4
    %v298 = vpop.permute.xlu0 %297
    %299 = vrot.lane.b32.xlu0 %v170, 4
    %v300 = vpop.permute.xlu0 %299
    %301 = vrot.lane.b32.xlu0 %v171, 4
    %v302 = vpop.permute.xlu0 %301
    %303 = vrot.lane.b32.xlu0 %v172, 4
    %v304 = vpop.permute.xlu0 %303
    %305 = vrot.lane.b32.xlu0 %v173, 4
    %v306 = vpop.permute.xlu0 %305
    %307 = vrot.lane.b32.xlu0 %v174, 4
    %v308 = vpop.permute.xlu0 %307
    %309 = vrot.lane.b32.xlu0 %v175, 4
    %v310 = vpop.permute.xlu0 %309
    %311 = vrot.lane.b32.xlu0 %v176, 4
    %v312 = vpop.permute.xlu0 %311
    %313 = vrot.lane.b32.xlu0 %v177, 4
    %v314 = vpop.permute.xlu0 %313
    %315 = vrot.lane.b32.xlu0 %v178, 4
    %v316 = vpop.permute.xlu0 %315
    %317 = vrot.lane.b32.xlu0 %v179, 4
    %v318 = vpop.permute.xlu0 %317
    %319 = vrot.lane.b32.xlu0 %v180, 4
    %v320 = vpop.permute.xlu0 %319
    %321 = vrot.lane.b32.xlu0 %v181, 4
    %v322 = vpop.permute.xlu0 %321
    %323 = vrot.lane.b32.xlu0 %v182, 4
    %v324 = vpop.permute.xlu0 %323
    %325 = vrot.lane.b32.xlu0 %v183, 4
    %v326 = vpop.permute.xlu0 %325
    %327 = vrot.lane.b32.xlu0 %v184, 4
    %v328 = vpop.permute.xlu0 %327
    %329 = vrot.lane.b32.xlu0 %v185, 4
    %v330 = vpop.permute.xlu0 %329
    %331 = vrot.lane.b32.xlu0 %v186, 4
    %v332 = vpop.permute.xlu0 %331
    %333 = vrot.lane.b32.xlu0 %v187, 4
    %v334 = vpop.permute.xlu0 %333
    %335 = vrot.lane.b32.xlu0 %v188, 4
    %v336 = vpop.permute.xlu0 %335
    %337 = vrot.lane.b32.xlu0 %v189, 4
    %v338 = vpop.permute.xlu0 %337
    %339 = vrot.lane.b32.xlu0 %v190, 4
    %v340 = vpop.permute.xlu0 %339
    %341 = vrot.lane.b32.xlu0 %v191, 4
    %v342 = vpop.permute.xlu0 %341
    %343 = vrot.lane.b32.xlu0 %v192, 4
    %v344 = vpop.permute.xlu0 %343
    %345 = vrot.lane.b32.xlu0 %v193, 4
    %v346 = vpop.permute.xlu0 %345
    %347 = vrot.lane.b32.xlu0 %v194, 4
    %v348 = vpop.permute.xlu0 %347
    %349 = vrot.lane.b32.xlu0 %v195, 4
    %v350 = vpop.permute.xlu0 %349
    %351 = vrot.lane.b32.xlu0 %v196, 4
    %v352 = vpop.permute.xlu0 %351
    %353 = vrot.lane.b32.xlu0 %v197, 4
    %v354 = vpop.permute.xlu0 %353
    %355 = vrot.lane.b32.xlu0 %v198, 4
    %v356 = vpop.permute.xlu0 %355
    %357 = vrot.lane.b32.xlu0 %v199, 4
    %v358 = vpop.permute.xlu0 %357
    %359 = vrot.lane.b32.xlu0 %v200, 4
    %v360 = vpop.permute.xlu0 %359
    %361 = vrot.lane.b32.xlu0 %v201, 4
    %v362 = vpop.permute.xlu0 %361
    %363 = vrot.lane.b32.xlu0 %v202, 4
    %v364 = vpop.permute.xlu0 %363
    %365 = vrot.lane.b32.xlu0 %v203, 4
    %v366 = vpop.permute.xlu0 %365
    %367 = vrot.lane.b32.xlu0 %v204, 4
    %v368 = vpop.permute.xlu0 %367
    %369 = vrot.lane.b32.xlu0 %v205, 4
    %v370 = vpop.permute.xlu0 %369
    %371 = vrot.lane.b32.xlu0 %v206, 4
    %v372 = vpop.permute.xlu0 %371
    %373 = vrot.lane.b32.xlu0 %v207, 4
    %v374 = vpop.permute.xlu0 %373
    %375 = vrot.lane.b32.xlu0 %v208, 4
    %v376 = vpop.permute.xlu0 %375
    %377 = vrot.lane.b32.xlu0 %v209, 4
    %v378 = vpop.permute.xlu0 %377
    %379 = vrot.lane.b32.xlu0 %v210, 4
    %v380 = vpop.permute.xlu0 %379
    %381 = vrot.lane.b32.xlu0 %v211, 4
    %v382 = vpop.permute.xlu0 %381
    %383 = vrot.lane.b32.xlu0 %v212, 4
    %v384 = vpop.permute.xlu0 %383
    %385 = vrot.lane.b32.xlu0 %v213, 4
    %v386 = vpop.permute.xlu0 %385
    %387 = vrot.lane.b32.xlu0 %v214, 4
    %v388 = vpop.permute.xlu0 %387
    %389 = vrot.lane.b32.xlu0 %v215, 4
    %v390 = vpop.permute.xlu0 %389
    %391 = vrot.lane.b32.xlu0 %v216, 4
    %v392 = vpop.permute.xlu0 %391
    %393 = vrot.lane.b32.xlu0 %v217, 4
    %v394 = vpop.permute.xlu0 %393
    %395 = vrot.lane.b32.xlu0 %v218, 4
    %v396 = vpop.permute.xlu0 %395
    %397 = vrot.lane.b32.xlu0 %v219, 4
    %v398 = vpop.permute.xlu0 %397
    %399 = vrot.lane.b32.xlu0 %v220, 4
    %v400 = vpop.permute.xlu0 %399
    %401 = vrot.lane.b32.xlu0 %v221, 4
    %v402 = vpop.permute.xlu0 %401
    %403 = vrot.lane.b32.xlu0 %v222, 4
    %v404 = vpop.permute.xlu0 %403
    %405 = vrot.lane.b32.xlu0 %v223, 4
    %v406 = vpop.permute.xlu0 %405
    %407 = vrot.lane.b32.xlu0 %v224, 4
    %v408 = vpop.permute.xlu0 %407
    %409 = vrot.lane.b32.xlu0 %v225, 4
    %v410 = vpop.permute.xlu0 %409
    %411 = vrot.lane.b32.xlu0 %v226, 4
    %v412 = vpop.permute.xlu0 %411
    %413 = vrot.lane.b32.xlu0 %v227, 4
    %v414 = vpop.permute.xlu0 %413
    %415 = vrot.lane.b32.xlu0 %v228, 4
    %v416 = vpop.permute.xlu0 %415
    %417 = vrot.lane.b32.xlu0 %v229, 4
    %v418 = vpop.permute.xlu0 %417
    %419 = vrot.lane.b32.xlu0 %v230, 4
    %v420 = vpop.permute.xlu0 %419
    %421 = vrot.lane.b32.xlu0 %v231, 4
    %v422 = vpop.permute.xlu0 %421
    %423 = vrot.lane.b32.xlu0 %v232, 4
    %v424 = vpop.permute.xlu0 %423
    %vm489 = vcmask 64544
    %490 = vst.msk [vmem:[#allocation2] sm:$0xff] %vm489, %v298
    %491 = vst.msk [vmem:[#allocation2 + $0x8] sm:$0xff] %vm489, %v300
    %492 = vst.msk [vmem:[#allocation2 + $0x10] sm:$0xff] %vm489, %v302
    %493 = vst.msk [vmem:[#allocation2 + $0x18] sm:$0xff] %vm489, %v304
    %494 = vst.msk [vmem:[#allocation2 + $0x20] sm:$0xff] %vm489, %v306
    %495 = vst.msk [vmem:[#allocation2 + $0x28] sm:$0xff] %vm489, %v308
    %496 = vst.msk [vmem:[#allocation2 + $0x30] sm:$0xff] %vm489, %v310
    %497 = vst.msk [vmem:[#allocation2 + $0x38] sm:$0xff] %vm489, %v312
    %498 = vst.msk [vmem:[#allocation2 + $0x40] sm:$0xff] %vm489, %v314
    %499 = vst.msk [vmem:[#allocation2 + $0x48] sm:$0xff] %vm489, %v316
    %500 = vst.msk [vmem:[#allocation2 + $0x50] sm:$0xff] %vm489, %v318
    %501 = vst.msk [vmem:[#allocation2 + $0x58] sm:$0xff] %vm489, %v320
    %502 = vst.msk [vmem:[#allocation2 + $0x60] sm:$0xff] %vm489, %v322
    %503 = vst.msk [vmem:[#allocation2 + $0x68] sm:$0xff] %vm489, %v324
    %504 = vst.msk [vmem:[#allocation2 + $0x70] sm:$0xff] %vm489, %v326
    %505 = vst.msk [vmem:[#allocation2 + $0x78] sm:$0xff] %vm489, %v328
    %506 = vst.msk [vmem:[#allocation2 + $0x80] sm:$0xff] %vm489, %v330
    %507 = vst.msk [vmem:[#allocation2 + $0x88] sm:$0xff] %vm489, %v332
    %508 = vst.msk [vmem:[#allocation2 + $0x90] sm:$0xff] %vm489, %v334
    %509 = vst.msk [vmem:[#allocation2 + $0x98] sm:$0xff] %vm489, %v336
    %510 = vst.msk [vmem:[#allocation2 + $0xa0] sm:$0xff] %vm489, %v338
    %511 = vst.msk [vmem:[#allocation2 + $0xa8] sm:$0xff] %vm489, %v340
    %512 = vst.msk [vmem:[#allocation2 + $0xb0] sm:$0xff] %vm489, %v342
    %513 = vst.msk [vmem:[#allocation2 + $0xb8] sm:$0xff] %vm489, %v344
    %514 = vst.msk [vmem:[#allocation2 + $0xc0] sm:$0xff] %vm489, %v346
    %515 = vst.msk [vmem:[#allocation2 + $0xc8] sm:$0xff] %vm489, %v348
    %516 = vst.msk [vmem:[#allocation2 + $0xd0] sm:$0xff] %vm489, %v350
    %517 = vst.msk [vmem:[#allocation2 + $0xd8] sm:$0xff] %vm489, %v352
    %518 = vst.msk [vmem:[#allocation2 + $0xe0] sm:$0xff] %vm489, %v354
    %519 = vst.msk [vmem:[#allocation2 + $0xe8] sm:$0xff] %vm489, %v356
    %520 = vst.msk [vmem:[#allocation2 + $0xf0] sm:$0xff] %vm489, %v358
    %521 = vst.msk [vmem:[#allocation2 + $0xf8] sm:$0xff] %vm489, %v360
    %522 = vst.msk [vmem:[#allocation2 + $0x100] sm:$0xff] %vm489, %v362
    %523 = vst.msk [vmem:[#allocation2 + $0x108] sm:$0xff] %vm489, %v364
    %524 = vst.msk [vmem:[#allocation2 + $0x110] sm:$0xff] %vm489, %v366
    %525 = vst.msk [vmem:[#allocation2 + $0x118] sm:$0xff] %vm489, %v368
    %526 = vst.msk [vmem:[#allocation2 + $0x120] sm:$0xff] %vm489, %v370
    %527 = vst.msk [vmem:[#allocation2 + $0x128] sm:$0xff] %vm489, %v372
    %528 = vst.msk [vmem:[#allocation2 + $0x130] sm:$0xff] %vm489, %v374
    %529 = vst.msk [vmem:[#allocation2 + $0x138] sm:$0xff] %vm489, %v376
    %530 = vst.msk [vmem:[#allocation2 + $0x140] sm:$0xff] %vm489, %v378
    %531 = vst.msk [vmem:[#allocation2 + $0x148] sm:$0xff] %vm489, %v380
    %532 = vst.msk [vmem:[#allocation2 + $0x150] sm:$0xff] %vm489, %v382
    %533 = vst.msk [vmem:[#allocation2 + $0x158] sm:$0xff] %vm489, %v384
    %534 = vst.msk [vmem:[#allocation2 + $0x160] sm:$0xff] %vm489, %v386
    %535 = vst.msk [vmem:[#allocation2 + $0x168] sm:$0xff] %vm489, %v388
    %536 = vst.msk [vmem:[#allocation2 + $0x170] sm:$0xff] %vm489, %v390
    %537 = vst.msk [vmem:[#allocation2 + $0x178] sm:$0xff] %vm489, %v392
    %538 = vst.msk [vmem:[#allocation2 + $0x180] sm:$0xff] %vm489, %v394
    %539 = vst.msk [vmem:[#allocation2 + $0x188] sm:$0xff] %vm489, %v396
    %540 = vst.msk [vmem:[#allocation2 + $0x190] sm:$0xff] %vm489, %v398
    %541 = vst.msk [vmem:[#allocation2 + $0x198] sm:$0xff] %vm489, %v400
    %542 = vst.msk [vmem:[#allocation2 + $0x1a0] sm:$0xff] %vm489, %v402
    %543 = vst.msk [vmem:[#allocation2 + $0x1a8] sm:$0xff] %vm489, %v404
    %544 = vst.msk [vmem:[#allocation2 + $0x1b0] sm:$0xff] %vm489, %v406
    %545 = vst.msk [vmem:[#allocation2 + $0x1b8] sm:$0xff] %vm489, %v408
    %546 = vst.msk [vmem:[#allocation2 + $0x1c0] sm:$0xff] %vm489, %v410
    %547 = vst.msk [vmem:[#allocation2 + $0x1c8] sm:$0xff] %vm489, %v412
    %548 = vst.msk [vmem:[#allocation2 + $0x1d0] sm:$0xff] %vm489, %v414
    %549 = vst.msk [vmem:[#allocation2 + $0x1d8] sm:$0xff] %vm489, %v416
    %550 = vst.msk [vmem:[#allocation2 + $0x1e0] sm:$0xff] %vm489, %v418
    %551 = vst.msk [vmem:[#allocation2 + $0x1e8] sm:$0xff] %vm489, %v420
    %552 = vst.msk [vmem:[#allocation2 + $0x1f0] sm:$0xff] %vm489, %v422
    %553 = vst.msk [vmem:[#allocation2 + $0x1f8] sm:$0xff] %vm489, %v424
    %v554 = vld [vmem:[%s0 + $0x2] sm:$0xff]
    %v555 = vld [vmem:[%s0 + $0xa] sm:$0xff]
    %v556 = vld [vmem:[%s0 + $0x1a] sm:$0xff]
    %v557 = vld [vmem:[%s0 + $0x22] sm:$0xff]
    %v558 = vld [vmem:[%s0 + $0x32] sm:$0xff]
    %v559 = vld [vmem:[%s0 + $0x3a] sm:$0xff]
    %v560 = vld [vmem:[%s0 + $0x4a] sm:$0xff]
    %v561 = vld [vmem:[%s0 + $0x52] sm:$0xff]
    %v562 = vld [vmem:[%s0 + $0x62] sm:$0xff]
    %v563 = vld [vmem:[%s0 + $0x6a] sm:$0xff]
    %v564 = vld [vmem:[%s0 + $0x7a] sm:$0xff]
    %v565 = vld [vmem:[%s0 + $0x82] sm:$0xff]
    %v566 = vld [vmem:[%s0 + $0x92] sm:$0xff]
    %v567 = vld [vmem:[%s0 + $0x9a] sm:$0xff]
    %v568 = vld [vmem:[%s0 + $0xaa] sm:$0xff]
    %v569 = vld [vmem:[%s0 + $0xb2] sm:$0xff]
    %v570 = vld [vmem:[%s0 + $0xc2] sm:$0xff]
    %v571 = vld [vmem:[%s0 + $0xca] sm:$0xff]
    %v572 = vld [vmem:[%s0 + $0xda] sm:$0xff]
    %v573 = vld [vmem:[%s0 + $0xe2] sm:$0xff]
    %v574 = vld [vmem:[%s0 + $0xf2] sm:$0xff]
    %v575 = vld [vmem:[%s0 + $0xfa] sm:$0xff]
    %v576 = vld [vmem:[%s0 + $0x10a] sm:$0xff]
    %v577 = vld [vmem:[%s0 + $0x112] sm:$0xff]
    %v578 = vld [vmem:[%s0 + $0x122] sm:$0xff]
    %v579 = vld [vmem:[%s0 + $0x12a] sm:$0xff]
    %v580 = vld [vmem:[%s0 + $0x13a] sm:$0xff]
    %v581 = vld [vmem:[%s0 + $0x142] sm:$0xff]
    %v582 = vld [vmem:[%s0 + $0x152] sm:$0xff]
    %v583 = vld [vmem:[%s0 + $0x15a] sm:$0xff]
    %v584 = vld [vmem:[%s0 + $0x16a] sm:$0xff]
    %v585 = vld [vmem:[%s0 + $0x172] sm:$0xff]
    %v586 = vld [vmem:[%s0 + $0x1b2] sm:$0xff]
    %v587 = vld [vmem:[%s0 + $0x1ba] sm:$0xff]
    %v588 = vld [vmem:[%s0 + $0x1ca] sm:$0xff]
    %v589 = vld [vmem:[%s0 + $0x1d2] sm:$0xff]
    %v590 = vld [vmem:[%s0 + $0x1e2] sm:$0xff]
    %v591 = vld [vmem:[%s0 + $0x1ea] sm:$0xff]
    %v592 = vld [vmem:[%s0 + $0x1fa] sm:$0xff]
    %v593 = vld [vmem:[%s0 + $0x202] sm:$0xff]
    %v594 = vld [vmem:[%s0 + $0x212] sm:$0xff]
    %v595 = vld [vmem:[%s0 + $0x21a] sm:$0xff]
    %v596 = vld [vmem:[%s0 + $0x22a] sm:$0xff]
    %v597 = vld [vmem:[%s0 + $0x232] sm:$0xff]
    %v598 = vld [vmem:[%s0 + $0x242] sm:$0xff]
    %v599 = vld [vmem:[%s0 + $0x24a] sm:$0xff]
    %v600 = vld [vmem:[%s0 + $0x25a] sm:$0xff]
    %v601 = vld [vmem:[%s0 + $0x262] sm:$0xff]
    %v602 = vld [vmem:[%s0 + $0x272] sm:$0xff]
    %v603 = vld [vmem:[%s0 + $0x27a] sm:$0xff]
    %v604 = vld [vmem:[%s0 + $0x28a] sm:$0xff]
    %v605 = vld [vmem:[%s0 + $0x292] sm:$0xff]
    %v606 = vld [vmem:[%s0 + $0x2a2] sm:$0xff]
    %v607 = vld [vmem:[%s0 + $0x2aa] sm:$0xff]
    %v608 = vld [vmem:[%s0 + $0x2ba] sm:$0xff]
    %v609 = vld [vmem:[%s0 + $0x2c2] sm:$0xff]
    %v610 = vld [vmem:[%s0 + $0x2d2] sm:$0xff]
    %v611 = vld [vmem:[%s0 + $0x2da] sm:$0xff]
    %v612 = vld [vmem:[%s0 + $0x2ea] sm:$0xff]
    %v613 = vld [vmem:[%s0 + $0x2f2] sm:$0xff]
    %v614 = vld [vmem:[%s0 + $0x302] sm:$0xff]
    %v615 = vld [vmem:[%s0 + $0x30a] sm:$0xff]
    %v616 = vld [vmem:[%s0 + $0x31a] sm:$0xff]
    %v617 = vld [vmem:[%s0 + $0x322] sm:$0xff]
    %682 = vrot.lane.b32.xlu0 %v554, 8
    %v683 = vpop.permute.xlu0 %682
    %684 = vrot.lane.b32.xlu0 %v555, 8
    %v685 = vpop.permute.xlu0 %684
    %686 = vrot.lane.b32.xlu0 %v556, 8
    %v687 = vpop.permute.xlu0 %686
    %688 = vrot.lane.b32.xlu0 %v557, 8
    %v689 = vpop.permute.xlu0 %688
    %690 = vrot.lane.b32.xlu0 %v558, 8
    %v691 = vpop.permute.xlu0 %690
    %692 = vrot.lane.b32.xlu0 %v559, 8
    %v693 = vpop.permute.xlu0 %692
    %694 = vrot.lane.b32.xlu0 %v560, 8
    %v695 = vpop.permute.xlu0 %694
    %696 = vrot.lane.b32.xlu0 %v561, 8
    %v697 = vpop.permute.xlu0 %696
    %698 = vrot.lane.b32.xlu0 %v562, 8
    %v699 = vpop.permute.xlu0 %698
    %700 = vrot.lane.b32.xlu0 %v563, 8
    %v701 = vpop.permute.xlu0 %700
    %702 = vrot.lane.b32.xlu0 %v564, 8
    %v703 = vpop.permute.xlu0 %702
    %704 = vrot.lane.b32.xlu0 %v565, 8
    %v705 = vpop.permute.xlu0 %704
    %706 = vrot.lane.b32.xlu0 %v566, 8
    %v707 = vpop.permute.xlu0 %706
    %708 = vrot.lane.b32.xlu0 %v567, 8
    %v709 = vpop.permute.xlu0 %708
    %710 = vrot.lane.b32.xlu0 %v568, 8
    %v711 = vpop.permute.xlu0 %710
    %712 = vrot.lane.b32.xlu0 %v569, 8
    %v713 = vpop.permute.xlu0 %712
    %714 = vrot.lane.b32.xlu0 %v570, 8
    %v715 = vpop.permute.xlu0 %714
    %716 = vrot.lane.b32.xlu0 %v571, 8
    %v717 = vpop.permute.xlu0 %716
    %718 = vrot.lane.b32.xlu0 %v572, 8
    %v719 = vpop.permute.xlu0 %718
    %720 = vrot.lane.b32.xlu0 %v573, 8
    %v721 = vpop.permute.xlu0 %720
    %722 = vrot.lane.b32.xlu0 %v574, 8
    %v723 = vpop.permute.xlu0 %722
    %724 = vrot.lane.b32.xlu0 %v575, 8
    %v725 = vpop.permute.xlu0 %724
    %726 = vrot.lane.b32.xlu0 %v576, 8
    %v727 = vpop.permute.xlu0 %726
    %728 = vrot.lane.b32.xlu0 %v577, 8
    %v729 = vpop.permute.xlu0 %728
    %730 = vrot.lane.b32.xlu0 %v578, 8
    %v731 = vpop.permute.xlu0 %730
    %732 = vrot.lane.b32.xlu0 %v579, 8
    %v733 = vpop.permute.xlu0 %732
    %734 = vrot.lane.b32.xlu0 %v580, 8
    %v735 = vpop.permute.xlu0 %734
    %736 = vrot.lane.b32.xlu0 %v581, 8
    %v737 = vpop.permute.xlu0 %736
    %738 = vrot.lane.b32.xlu0 %v582, 8
    %v739 = vpop.permute.xlu0 %738
    %740 = vrot.lane.b32.xlu0 %v583, 8
    %v741 = vpop.permute.xlu0 %740
    %742 = vrot.lane.b32.xlu0 %v584, 8
    %v743 = vpop.permute.xlu0 %742
    %744 = vrot.lane.b32.xlu0 %v585, 8
    %v745 = vpop.permute.xlu0 %744
    %746 = vrot.lane.b32.xlu0 %v586, 8
    %v747 = vpop.permute.xlu0 %746
    %748 = vrot.lane.b32.xlu0 %v587, 8
    %v749 = vpop.permute.xlu0 %748
    %750 = vrot.lane.b32.xlu0 %v588, 8
    %v751 = vpop.permute.xlu0 %750
    %752 = vrot.lane.b32.xlu0 %v589, 8
    %v753 = vpop.permute.xlu0 %752
    %754 = vrot.lane.b32.xlu0 %v590, 8
    %v755 = vpop.permute.xlu0 %754
    %756 = vrot.lane.b32.xlu0 %v591, 8
    %v757 = vpop.permute.xlu0 %756
    %758 = vrot.lane.b32.xlu0 %v592, 8
    %v759 = vpop.permute.xlu0 %758
    %760 = vrot.lane.b32.xlu0 %v593, 8
    %v761 = vpop.permute.xlu0 %760
    %762 = vrot.lane.b32.xlu0 %v594, 8
    %v763 = vpop.permute.xlu0 %762
    %764 = vrot.lane.b32.xlu0 %v595, 8
    %v765 = vpop.permute.xlu0 %764
    %766 = vrot.lane.b32.xlu0 %v596, 8
    %v767 = vpop.permute.xlu0 %766
    %768 = vrot.lane.b32.xlu0 %v597, 8
    %v769 = vpop.permute.xlu0 %768
    %770 = vrot.lane.b32.xlu0 %v598, 8
    %v771 = vpop.permute.xlu0 %770
    %772 = vrot.lane.b32.xlu0 %v599, 8
    %v773 = vpop.permute.xlu0 %772
    %774 = vrot.lane.b32.xlu0 %v600, 8
    %v775 = vpop.permute.xlu0 %774
    %776 = vrot.lane.b32.xlu0 %v601, 8
    %v777 = vpop.permute.xlu0 %776
    %778 = vrot.lane.b32.xlu0 %v602, 8
    %v779 = vpop.permute.xlu0 %778
    %780 = vrot.lane.b32.xlu0 %v603, 8
    %v781 = vpop.permute.xlu0 %780
    %782 = vrot.lane.b32.xlu0 %v604, 8
    %v783 = vpop.permute.xlu0 %782
    %784 = vrot.lane.b32.xlu0 %v605, 8
    %v785 = vpop.permute.xlu0 %784
    %786 = vrot.lane.b32.xlu0 %v606, 8
    %v787 = vpop.permute.xlu0 %786
    %788 = vrot.lane.b32.xlu0 %v607, 8
    %v789 = vpop.permute.xlu0 %788
    %790 = vrot.lane.b32.xlu0 %v608, 8
    %v791 = vpop.permute.xlu0 %790
    %792 = vrot.lane.b32.xlu0 %v609, 8
    %v793 = vpop.permute.xlu0 %792
    %794 = vrot.lane.b32.xlu0 %v610, 8
    %v795 = vpop.permute.xlu0 %794
    %796 = vrot.lane.b32.xlu0 %v611, 8
    %v797 = vpop.permute.xlu0 %796
    %798 = vrot.lane.b32.xlu0 %v612, 8
    %v799 = vpop.permute.xlu0 %798
    %800 = vrot.lane.b32.xlu0 %v613, 8
    %v801 = vpop.permute.xlu0 %800
    %802 = vrot.lane.b32.xlu0 %v614, 8
    %v803 = vpop.permute.xlu0 %802
    %804 = vrot.lane.b32.xlu0 %v615, 8
    %v805 = vpop.permute.xlu0 %804
    %806 = vrot.lane.b32.xlu0 %v616, 8
    %v807 = vpop.permute.xlu0 %806
    %808 = vrot.lane.b32.xlu0 %v617, 8
    %v809 = vpop.permute.xlu0 %808
    %vm874 = vcmask 97344
    %875 = vst.msk [vmem:[#allocation2] sm:$0xff] %vm874, %v683
    %876 = vst.msk [vmem:[#allocation2 + $0x8] sm:$0xff] %vm874, %v685
    %877 = vst.msk [vmem:[#allocation2 + $0x10] sm:$0xff] %vm874, %v687
    %878 = vst.msk [vmem:[#allocation2 + $0x18] sm:$0xff] %vm874, %v689
    %879 = vst.msk [vmem:[#allocation2 + $0x20] sm:$0xff] %vm874, %v691
    %880 = vst.msk [vmem:[#allocation2 + $0x28] sm:$0xff] %vm874, %v693
    %881 = vst.msk [vmem:[#allocation2 + $0x30] sm:$0xff] %vm874, %v695
    %882 = vst.msk [vmem:[#allocation2 + $0x38] sm:$0xff] %vm874, %v697
    %883 = vst.msk [vmem:[#allocation2 + $0x40] sm:$0xff] %vm874, %v699
    %884 = vst.msk [vmem:[#allocation2 + $0x48] sm:$0xff] %vm874, %v701
    %885 = vst.msk [vmem:[#allocation2 + $0x50] sm:$0xff] %vm874, %v703
    %886 = vst.msk [vmem:[#allocation2 + $0x58] sm:$0xff] %vm874, %v705
    %887 = vst.msk [vmem:[#allocation2 + $0x60] sm:$0xff] %vm874, %v707
    %888 = vst.msk [vmem:[#allocation2 + $0x68] sm:$0xff] %vm874, %v709
    %889 = vst.msk [vmem:[#allocation2 + $0x70] sm:$0xff] %vm874, %v711
    %890 = vst.msk [vmem:[#allocation2 + $0x78] sm:$0xff] %vm874, %v713
    %891 = vst.msk [vmem:[#allocation2 + $0x80] sm:$0xff] %vm874, %v715
    %892 = vst.msk [vmem:[#allocation2 + $0x88] sm:$0xff] %vm874, %v717
    %893 = vst.msk [vmem:[#allocation2 + $0x90] sm:$0xff] %vm874, %v719
    %894 = vst.msk [vmem:[#allocation2 + $0x98] sm:$0xff] %vm874, %v721
    %895 = vst.msk [vmem:[#allocation2 + $0xa0] sm:$0xff] %vm874, %v723
    %896 = vst.msk [vmem:[#allocation2 + $0xa8] sm:$0xff] %vm874, %v725
    %897 = vst.msk [vmem:[#allocation2 + $0xb0] sm:$0xff] %vm874, %v727
    %898 = vst.msk [vmem:[#allocation2 + $0xb8] sm:$0xff] %vm874, %v729
    %899 = vst.msk [vmem:[#allocation2 + $0xc0] sm:$0xff] %vm874, %v731
    %900 = vst.msk [vmem:[#allocation2 + $0xc8] sm:$0xff] %vm874, %v733
    %901 = vst.msk [vmem:[#allocation2 + $0xd0] sm:$0xff] %vm874, %v735
    %902 = vst.msk [vmem:[#allocation2 + $0xd8] sm:$0xff] %vm874, %v737
    %903 = vst.msk [vmem:[#allocation2 + $0xe0] sm:$0xff] %vm874, %v739
    %904 = vst.msk [vmem:[#allocation2 + $0xe8] sm:$0xff] %vm874, %v741
    %905 = vst.msk [vmem:[#allocation2 + $0xf0] sm:$0xff] %vm874, %v743
    %906 = vst.msk [vmem:[#allocation2 + $0xf8] sm:$0xff] %vm874, %v745
    %907 = vst.msk [vmem:[#allocation2 + $0x100] sm:$0xff] %vm874, %v747
    %908 = vst.msk [vmem:[#allocation2 + $0x108] sm:$0xff] %vm874, %v749
    %909 = vst.msk [vmem:[#allocation2 + $0x110] sm:$0xff] %vm874, %v751
    %910 = vst.msk [vmem:[#allocation2 + $0x118] sm:$0xff] %vm874, %v753
    %911 = vst.msk [vmem:[#allocation2 + $0x120] sm:$0xff] %vm874, %v755
    %912 = vst.msk [vmem:[#allocation2 + $0x128] sm:$0xff] %vm874, %v757
    %913 = vst.msk [vmem:[#allocation2 + $0x130] sm:$0xff] %vm874, %v759
    %914 = vst.msk [vmem:[#allocation2 + $0x138] sm:$0xff] %vm874, %v761
    %915 = vst.msk [vmem:[#allocation2 + $0x140] sm:$0xff] %vm874, %v763
    %916 = vst.msk [vmem:[#allocation2 + $0x148] sm:$0xff] %vm874, %v765
    %917 = vst.msk [vmem:[#allocation2 + $0x150] sm:$0xff] %vm874, %v767
    %918 = vst.msk [vmem:[#allocation2 + $0x158] sm:$0xff] %vm874, %v769
    %919 = vst.msk [vmem:[#allocation2 + $0x160] sm:$0xff] %vm874, %v771
    %920 = vst.msk [vmem:[#allocation2 + $0x168] sm:$0xff] %vm874, %v773
    %921 = vst.msk [vmem:[#allocation2 + $0x170] sm:$0xff] %vm874, %v775
    %922 = vst.msk [vmem:[#allocation2 + $0x178] sm:$0xff] %vm874, %v777
    %923 = vst.msk [vmem:[#allocation2 + $0x180] sm:$0xff] %vm874, %v779
    %924 = vst.msk [vmem:[#allocation2 + $0x188] sm:$0xff] %vm874, %v781
    %925 = vst.msk [vmem:[#allocation2 + $0x190] sm:$0xff] %vm874, %v783
    %926 = vst.msk [vmem:[#allocation2 + $0x198] sm:$0xff] %vm874, %v785
    %927 = vst.msk [vmem:[#allocation2 + $0x1a0] sm:$0xff] %vm874, %v787
    %928 = vst.msk [vmem:[#allocation2 + $0x1a8] sm:$0xff] %vm874, %v789
    %929 = vst.msk [vmem:[#allocation2 + $0x1b0] sm:$0xff] %vm874, %v791
    %930 = vst.msk [vmem:[#allocation2 + $0x1b8] sm:$0xff] %vm874, %v793
    %931 = vst.msk [vmem:[#allocation2 + $0x1c0] sm:$0xff] %vm874, %v795
    %932 = vst.msk [vmem:[#allocation2 + $0x1c8] sm:$0xff] %vm874, %v797
    %933 = vst.msk [vmem:[#allocation2 + $0x1d0] sm:$0xff] %vm874, %v799
    %934 = vst.msk [vmem:[#allocation2 + $0x1d8] sm:$0xff] %vm874, %v801
    %935 = vst.msk [vmem:[#allocation2 + $0x1e0] sm:$0xff] %vm874, %v803
    %936 = vst.msk [vmem:[#allocation2 + $0x1e8] sm:$0xff] %vm874, %v805
    %937 = vst.msk [vmem:[#allocation2 + $0x1f0] sm:$0xff] %vm874, %v807
    %938 = vst.msk [vmem:[#allocation2 + $0x1f8] sm:$0xff] %vm874, %v809
    %s939 = scalar_lea.vmem %s0, 24
    %v940 = vld [vmem:[%s939] sm:$0xff]
    %v941 = vld [vmem:[%s939 + $0x8] sm:$0xff]
    %v942 = vld [vmem:[%s939 + $0x18] sm:$0xff]
    %v943 = vld [vmem:[%s939 + $0x20] sm:$0xff]
    %v944 = vld [vmem:[%s939 + $0x30] sm:$0xff]
    %v945 = vld [vmem:[%s939 + $0x38] sm:$0xff]
    %v946 = vld [vmem:[%s939 + $0x48] sm:$0xff]
    %v947 = vld [vmem:[%s939 + $0x50] sm:$0xff]
    %v948 = vld [vmem:[%s939 + $0x60] sm:$0xff]
    %v949 = vld [vmem:[%s939 + $0x68] sm:$0xff]
    %v950 = vld [vmem:[%s939 + $0x78] sm:$0xff]
    %v951 = vld [vmem:[%s939 + $0x80] sm:$0xff]
    %v952 = vld [vmem:[%s939 + $0x90] sm:$0xff]
    %v953 = vld [vmem:[%s939 + $0x98] sm:$0xff]
    %v954 = vld [vmem:[%s939 + $0xa8] sm:$0xff]
    %v955 = vld [vmem:[%s939 + $0xb0] sm:$0xff]
    %v956 = vld [vmem:[%s939 + $0xc0] sm:$0xff]
    %v957 = vld [vmem:[%s939 + $0xc8] sm:$0xff]
    %v958 = vld [vmem:[%s939 + $0xd8] sm:$0xff]
    %v959 = vld [vmem:[%s939 + $0xe0] sm:$0xff]
    %v960 = vld [vmem:[%s939 + $0xf0] sm:$0xff]
    %v961 = vld [vmem:[%s939 + $0xf8] sm:$0xff]
    %v962 = vld [vmem:[%s939 + $0x108] sm:$0xff]
    %v963 = vld [vmem:[%s939 + $0x110] sm:$0xff]
    %v964 = vld [vmem:[%s939 + $0x120] sm:$0xff]
    %v965 = vld [vmem:[%s939 + $0x128] sm:$0xff]
    %v966 = vld [vmem:[%s939 + $0x138] sm:$0xff]
    %v967 = vld [vmem:[%s939 + $0x140] sm:$0xff]
    %v968 = vld [vmem:[%s939 + $0x150] sm:$0xff]
    %v969 = vld [vmem:[%s939 + $0x158] sm:$0xff]
    %v970 = vld [vmem:[%s939 + $0x168] sm:$0xff]
    %v971 = vld [vmem:[%s939 + $0x170] sm:$0xff]
    %v972 = vld [vmem:[%s939 + $0x1b0] sm:$0xff]
    %v973 = vld [vmem:[%s939 + $0x1b8] sm:$0xff]
    %v974 = vld [vmem:[%s939 + $0x1c8] sm:$0xff]
    %v975 = vld [vmem:[%s939 + $0x1d0] sm:$0xff]
    %v976 = vld [vmem:[%s939 + $0x1e0] sm:$0xff]
    %v977 = vld [vmem:[%s939 + $0x1e8] sm:$0xff]
    %v978 = vld [vmem:[%s939 + $0x1f8] sm:$0xff]
    %v979 = vld [vmem:[%s939 + $0x200] sm:$0xff]
    %v980 = vld [vmem:[%s939 + $0x210] sm:$0xff]
    %v981 = vld [vmem:[%s939 + $0x218] sm:$0xff]
    %v982 = vld [vmem:[%s939 + $0x228] sm:$0xff]
    %v983 = vld [vmem:[%s939 + $0x230] sm:$0xff]
    %v984 = vld [vmem:[%s939 + $0x240] sm:$0xff]
    %v985 = vld [vmem:[%s939 + $0x248] sm:$0xff]
    %v986 = vld [vmem:[%s939 + $0x258] sm:$0xff]
    %v987 = vld [vmem:[%s939 + $0x260] sm:$0xff]
    %v988 = vld [vmem:[%s939 + $0x270] sm:$0xff]
    %v989 = vld [vmem:[%s939 + $0x278] sm:$0xff]
    %v990 = vld [vmem:[%s939 + $0x288] sm:$0xff]
    %v991 = vld [vmem:[%s939 + $0x290] sm:$0xff]
    %v992 = vld [vmem:[%s939 + $0x2a0] sm:$0xff]
    %v993 = vld [vmem:[%s939 + $0x2a8] sm:$0xff]
    %v994 = vld [vmem:[%s939 + $0x2b8] sm:$0xff]
    %v995 = vld [vmem:[%s939 + $0x2c0] sm:$0xff]
    %v996 = vld [vmem:[%s939 + $0x2d0] sm:$0xff]
    %v997 = vld [vmem:[%s939 + $0x2d8] sm:$0xff]
    %v998 = vld [vmem:[%s939 + $0x2e8] sm:$0xff]
    %v999 = vld [vmem:[%s939 + $0x2f0] sm:$0xff]
    %v1000 = vld [vmem:[%s939 + $0x300] sm:$0xff]
    %v1001 = vld [vmem:[%s939 + $0x308] sm:$0xff]
    %v1002 = vld [vmem:[%s939 + $0x318] sm:$0xff]
    %v1003 = vld [vmem:[%s939 + $0x320] sm:$0xff]
    %1068 = vrot.lane.b32.xlu0 %v940, 12
    %v1069 = vpop.permute.xlu0 %1068
    %1070 = vrot.lane.b32.xlu0 %v941, 12
    %v1071 = vpop.permute.xlu0 %1070
    %1072 = vrot.lane.b32.xlu0 %v942, 12
    %v1073 = vpop.permute.xlu0 %1072
    %1074 = vrot.lane.b32.xlu0 %v943, 12
    %v1075 = vpop.permute.xlu0 %1074
    %1076 = vrot.lane.b32.xlu0 %v944, 12
    %v1077 = vpop.permute.xlu0 %1076
    %1078 = vrot.lane.b32.xlu0 %v945, 12
    %v1079 = vpop.permute.xlu0 %1078
    %1080 = vrot.lane.b32.xlu0 %v946, 12
    %v1081 = vpop.permute.xlu0 %1080
    %1082 = vrot.lane.b32.xlu0 %v947, 12
    %v1083 = vpop.permute.xlu0 %1082
    %1084 = vrot.lane.b32.xlu0 %v948, 12
    %v1085 = vpop.permute.xlu0 %1084
    %1086 = vrot.lane.b32.xlu0 %v949, 12
    %v1087 = vpop.permute.xlu0 %1086
    %1088 = vrot.lane.b32.xlu0 %v950, 12
    %v1089 = vpop.permute.xlu0 %1088
    %1090 = vrot.lane.b32.xlu0 %v951, 12
    %v1091 = vpop.permute.xlu0 %1090
    %1092 = vrot.lane.b32.xlu0 %v952, 12
    %v1093 = vpop.permute.xlu0 %1092
    %1094 = vrot.lane.b32.xlu0 %v953, 12
    %v1095 = vpop.permute.xlu0 %1094
    %1096 = vrot.lane.b32.xlu0 %v954, 12
    %v1097 = vpop.permute.xlu0 %1096
    %1098 = vrot.lane.b32.xlu0 %v955, 12
    %v1099 = vpop.permute.xlu0 %1098
    %1100 = vrot.lane.b32.xlu0 %v956, 12
    %v1101 = vpop.permute.xlu0 %1100
    %1102 = vrot.lane.b32.xlu0 %v957, 12
    %v1103 = vpop.permute.xlu0 %1102
    %1104 = vrot.lane.b32.xlu0 %v958, 12
    %v1105 = vpop.permute.xlu0 %1104
    %1106 = vrot.lane.b32.xlu0 %v959, 12
    %v1107 = vpop.permute.xlu0 %1106
    %1108 = vrot.lane.b32.xlu0 %v960, 12
    %v1109 = vpop.permute.xlu0 %1108
    %1110 = vrot.lane.b32.xlu0 %v961, 12
    %v1111 = vpop.permute.xlu0 %1110
    %1112 = vrot.lane.b32.xlu0 %v962, 12
    %v1113 = vpop.permute.xlu0 %1112
    %1114 = vrot.lane.b32.xlu0 %v963, 12
    %v1115 = vpop.permute.xlu0 %1114
    %1116 = vrot.lane.b32.xlu0 %v964, 12
    %v1117 = vpop.permute.xlu0 %1116
    %1118 = vrot.lane.b32.xlu0 %v965, 12
    %v1119 = vpop.permute.xlu0 %1118
    %1120 = vrot.lane.b32.xlu0 %v966, 12
    %v1121 = vpop.permute.xlu0 %1120
    %1122 = vrot.lane.b32.xlu0 %v967, 12
    %v1123 = vpop.permute.xlu0 %1122
    %1124 = vrot.lane.b32.xlu0 %v968, 12
    %v1125 = vpop.permute.xlu0 %1124
    %1126 = vrot.lane.b32.xlu0 %v969, 12
    %v1127 = vpop.permute.xlu0 %1126
    %1128 = vrot.lane.b32.xlu0 %v970, 12
    %v1129 = vpop.permute.xlu0 %1128
    %1130 = vrot.lane.b32.xlu0 %v971, 12
    %v1131 = vpop.permute.xlu0 %1130
    %1132 = vrot.lane.b32.xlu0 %v972, 12
    %v1133 = vpop.permute.xlu0 %1132
    %1134 = vrot.lane.b32.xlu0 %v973, 12
    %v1135 = vpop.permute.xlu0 %1134
    %1136 = vrot.lane.b32.xlu0 %v974, 12
    %v1137 = vpop.permute.xlu0 %1136
    %1138 = vrot.lane.b32.xlu0 %v975, 12
    %v1139 = vpop.permute.xlu0 %1138
    %1140 = vrot.lane.b32.xlu0 %v976, 12
    %v1141 = vpop.permute.xlu0 %1140
    %1142 = vrot.lane.b32.xlu0 %v977, 12
    %v1143 = vpop.permute.xlu0 %1142
    %1144 = vrot.lane.b32.xlu0 %v978, 12
    %v1145 = vpop.permute.xlu0 %1144
    %1146 = vrot.lane.b32.xlu0 %v979, 12
    %v1147 = vpop.permute.xlu0 %1146
    %1148 = vrot.lane.b32.xlu0 %v980, 12
    %v1149 = vpop.permute.xlu0 %1148
    %1150 = vrot.lane.b32.xlu0 %v981, 12
    %v1151 = vpop.permute.xlu0 %1150
    %1152 = vrot.lane.b32.xlu0 %v982, 12
    %v1153 = vpop.permute.xlu0 %1152
    %1154 = vrot.lane.b32.xlu0 %v983, 12
    %v1155 = vpop.permute.xlu0 %1154
    %1156 = vrot.lane.b32.xlu0 %v984, 12
    %v1157 = vpop.permute.xlu0 %1156
    %1158 = vrot.lane.b32.xlu0 %v985, 12
    %v1159 = vpop.permute.xlu0 %1158
    %1160 = vrot.lane.b32.xlu0 %v986, 12
    %v1161 = vpop.permute.xlu0 %1160
    %1162 = vrot.lane.b32.xlu0 %v987, 12
    %v1163 = vpop.permute.xlu0 %1162
    %1164 = vrot.lane.b32.xlu0 %v988, 12
    %v1165 = vpop.permute.xlu0 %1164
    %1166 = vrot.lane.b32.xlu0 %v989, 12
    %v1167 = vpop.permute.xlu0 %1166
    %1168 = vrot.lane.b32.xlu0 %v990, 12
    %v1169 = vpop.permute.xlu0 %1168
    %1170 = vrot.lane.b32.xlu0 %v991, 12
    %v1171 = vpop.permute.xlu0 %1170
    %1172 = vrot.lane.b32.xlu0 %v992, 12
    %v1173 = vpop.permute.xlu0 %1172
    %1174 = vrot.lane.b32.xlu0 %v993, 12
    %v1175 = vpop.permute.xlu0 %1174
    %1176 = vrot.lane.b32.xlu0 %v994, 12
    %v1177 = vpop.permute.xlu0 %1176
    %1178 = vrot.lane.b32.xlu0 %v995, 12
    %v1179 = vpop.permute.xlu0 %1178
    %1180 = vrot.lane.b32.xlu0 %v996, 12
    %v1181 = vpop.permute.xlu0 %1180
    %1182 = vrot.lane.b32.xlu0 %v997, 12
    %v1183 = vpop.permute.xlu0 %1182
    %1184 = vrot.lane.b32.xlu0 %v998, 12
    %v1185 = vpop.permute.xlu0 %1184
    %1186 = vrot.lane.b32.xlu0 %v999, 12
    %v1187 = vpop.permute.xlu0 %1186
    %1188 = vrot.lane.b32.xlu0 %v1000, 12
    %v1189 = vpop.permute.xlu0 %1188
    %1190 = vrot.lane.b32.xlu0 %v1001, 12
    %v1191 = vpop.permute.xlu0 %1190
    %1192 = vrot.lane.b32.xlu0 %v1002, 12
    %v1193 = vpop.permute.xlu0 %1192
    %1194 = vrot.lane.b32.xlu0 %v1003, 12
    %v1195 = vpop.permute.xlu0 %1194
    %vm1260 = vcmask 130144
    %1261 = vst.msk [vmem:[#allocation2] sm:$0xff] %vm1260, %v1069
    %1262 = vst.msk [vmem:[#allocation2 + $0x8] sm:$0xff] %vm1260, %v1071
    %1263 = vst.msk [vmem:[#allocation2 + $0x10] sm:$0xff] %vm1260, %v1073
    %1264 = vst.msk [vmem:[#allocation2 + $0x18] sm:$0xff] %vm1260, %v1075
    %1265 = vst.msk [vmem:[#allocation2 + $0x20] sm:$0xff] %vm1260, %v1077
    %1266 = vst.msk [vmem:[#allocation2 + $0x28] sm:$0xff] %vm1260, %v1079
    %1267 = vst.msk [vmem:[#allocation2 + $0x30] sm:$0xff] %vm1260, %v1081
    %1268 = vst.msk [vmem:[#allocation2 + $0x38] sm:$0xff] %vm1260, %v1083
    %1269 = vst.msk [vmem:[#allocation2 + $0x40] sm:$0xff] %vm1260, %v1085
    %1270 = vst.msk [vmem:[#allocation2 + $0x48] sm:$0xff] %vm1260, %v1087
    %1271 = vst.msk [vmem:[#allocation2 + $0x50] sm:$0xff] %vm1260, %v1089
    %1272 = vst.msk [vmem:[#allocation2 + $0x58] sm:$0xff] %vm1260, %v1091
    %1273 = vst.msk [vmem:[#allocation2 + $0x60] sm:$0xff] %vm1260, %v1093
    %1274 = vst.msk [vmem:[#allocation2 + $0x68] sm:$0xff] %vm1260, %v1095
    %1275 = vst.msk [vmem:[#allocation2 + $0x70] sm:$0xff] %vm1260, %v1097
    %1276 = vst.msk [vmem:[#allocation2 + $0x78] sm:$0xff] %vm1260, %v1099
    %1277 = vst.msk [vmem:[#allocation2 + $0x80] sm:$0xff] %vm1260, %v1101
    %1278 = vst.msk [vmem:[#allocation2 + $0x88] sm:$0xff] %vm1260, %v1103
    %1279 = vst.msk [vmem:[#allocation2 + $0x90] sm:$0xff] %vm1260, %v1105
    %1280 = vst.msk [vmem:[#allocation2 + $0x98] sm:$0xff] %vm1260, %v1107
    %1281 = vst.msk [vmem:[#allocation2 + $0xa0] sm:$0xff] %vm1260, %v1109
    %1282 = vst.msk [vmem:[#allocation2 + $0xa8] sm:$0xff] %vm1260, %v1111
    %1283 = vst.msk [vmem:[#allocation2 + $0xb0] sm:$0xff] %vm1260, %v1113
    %1284 = vst.msk [vmem:[#allocation2 + $0xb8] sm:$0xff] %vm1260, %v1115
    %1285 = vst.msk [vmem:[#allocation2 + $0xc0] sm:$0xff] %vm1260, %v1117
    %1286 = vst.msk [vmem:[#allocation2 + $0xc8] sm:$0xff] %vm1260, %v1119
    %1287 = vst.msk [vmem:[#allocation2 + $0xd0] sm:$0xff] %vm1260, %v1121
    %1288 = vst.msk [vmem:[#allocation2 + $0xd8] sm:$0xff] %vm1260, %v1123
    %1289 = vst.msk [vmem:[#allocation2 + $0xe0] sm:$0xff] %vm1260, %v1125
    %1290 = vst.msk [vmem:[#allocation2 + $0xe8] sm:$0xff] %vm1260, %v1127
    %1291 = vst.msk [vmem:[#allocation2 + $0xf0] sm:$0xff] %vm1260, %v1129
    %1292 = vst.msk [vmem:[#allocation2 + $0xf8] sm:$0xff] %vm1260, %v1131
    %1293 = vst.msk [vmem:[#allocation2 + $0x100] sm:$0xff] %vm1260, %v1133
    %1294 = vst.msk [vmem:[#allocation2 + $0x108] sm:$0xff] %vm1260, %v1135
    %1295 = vst.msk [vmem:[#allocation2 + $0x110] sm:$0xff] %vm1260, %v1137
    %1296 = vst.msk [vmem:[#allocation2 + $0x118] sm:$0xff] %vm1260, %v1139
    %1297 = vst.msk [vmem:[#allocation2 + $0x120] sm:$0xff] %vm1260, %v1141
    %1298 = vst.msk [vmem:[#allocation2 + $0x128] sm:$0xff] %vm1260, %v1143
    %1299 = vst.msk [vmem:[#allocation2 + $0x130] sm:$0xff] %vm1260, %v1145
    %1300 = vst.msk [vmem:[#allocation2 + $0x138] sm:$0xff] %vm1260, %v1147
    %1301 = vst.msk [vmem:[#allocation2 + $0x140] sm:$0xff] %vm1260, %v1149
    %1302 = vst.msk [vmem:[#allocation2 + $0x148] sm:$0xff] %vm1260, %v1151
    %1303 = vst.msk [vmem:[#allocation2 + $0x150] sm:$0xff] %vm1260, %v1153
    %1304 = vst.msk [vmem:[#allocation2 + $0x158] sm:$0xff] %vm1260, %v1155
    %1305 = vst.msk [vmem:[#allocation2 + $0x160] sm:$0xff] %vm1260, %v1157
    %1306 = vst.msk [vmem:[#allocation2 + $0x168] sm:$0xff] %vm1260, %v1159
    %1307 = vst.msk [vmem:[#allocation2 + $0x170] sm:$0xff] %vm1260, %v1161
    %1308 = vst.msk [vmem:[#allocation2 + $0x178] sm:$0xff] %vm1260, %v1163
    %1309 = vst.msk [vmem:[#allocation2 + $0x180] sm:$0xff] %vm1260, %v1165
    %1310 = vst.msk [vmem:[#allocation2 + $0x188] sm:$0xff] %vm1260, %v1167
    %1311 = vst.msk [vmem:[#allocation2 + $0x190] sm:$0xff] %vm1260, %v1169
    %1312 = vst.msk [vmem:[#allocation2 + $0x198] sm:$0xff] %vm1260, %v1171
    %1313 = vst.msk [vmem:[#allocation2 + $0x1a0] sm:$0xff] %vm1260, %v1173
    %1314 = vst.msk [vmem:[#allocation2 + $0x1a8] sm:$0xff] %vm1260, %v1175
    %1315 = vst.msk [vmem:[#allocation2 + $0x1b0] sm:$0xff] %vm1260, %v1177
    %1316 = vst.msk [vmem:[#allocation2 + $0x1b8] sm:$0xff] %vm1260, %v1179
    %1317 = vst.msk [vmem:[#allocation2 + $0x1c0] sm:$0xff] %vm1260, %v1181
    %1318 = vst.msk [vmem:[#allocation2 + $0x1c8] sm:$0xff] %vm1260, %v1183
    %1319 = vst.msk [vmem:[#allocation2 + $0x1d0] sm:$0xff] %vm1260, %v1185
    %1320 = vst.msk [vmem:[#allocation2 + $0x1d8] sm:$0xff] %vm1260, %v1187
    %1321 = vst.msk [vmem:[#allocation2 + $0x1e0] sm:$0xff] %vm1260, %v1189
    %1322 = vst.msk [vmem:[#allocation2 + $0x1e8] sm:$0xff] %vm1260, %v1191
    %1323 = vst.msk [vmem:[#allocation2 + $0x1f0] sm:$0xff] %vm1260, %v1193
    %1324 = vst.msk [vmem:[#allocation2 + $0x1f8] sm:$0xff] %vm1260, %v1195
    %v1325 = vld [vmem:[%s939 + $0x1] sm:$0xff]
    %v1326 = vld [vmem:[%s939 + $0x9] sm:$0xff]
    %v1327 = vld [vmem:[%s939 + $0x19] sm:$0xff]
    %v1328 = vld [vmem:[%s939 + $0x21] sm:$0xff]
    %v1329 = vld [vmem:[%s939 + $0x31] sm:$0xff]
    %v1330 = vld [vmem:[%s939 + $0x39] sm:$0xff]
    %v1331 = vld [vmem:[%s939 + $0x49] sm:$0xff]
    %v1332 = vld [vmem:[%s939 + $0x51] sm:$0xff]
    %v1333 = vld [vmem:[%s939 + $0x61] sm:$0xff]
    %v1334 = vld [vmem:[%s939 + $0x69] sm:$0xff]
    %v1335 = vld [vmem:[%s939 + $0x79] sm:$0xff]
    %v1336 = vld [vmem:[%s939 + $0x81] sm:$0xff]
    %v1337 = vld [vmem:[%s939 + $0x91] sm:$0xff]
    %v1338 = vld [vmem:[%s939 + $0x99] sm:$0xff]
    %v1339 = vld [vmem:[%s939 + $0xa9] sm:$0xff]
    %v1340 = vld [vmem:[%s939 + $0xb1] sm:$0xff]
    %v1341 = vld [vmem:[%s939 + $0xc1] sm:$0xff]
    %v1342 = vld [vmem:[%s939 + $0xc9] sm:$0xff]
    %v1343 = vld [vmem:[%s939 + $0xd9] sm:$0xff]
    %v1344 = vld [vmem:[%s939 + $0xe1] sm:$0xff]
    %v1345 = vld [vmem:[%s939 + $0xf1] sm:$0xff]
    %v1346 = vld [vmem:[%s939 + $0xf9] sm:$0xff]
    %v1347 = vld [vmem:[%s939 + $0x109] sm:$0xff]
    %v1348 = vld [vmem:[%s939 + $0x111] sm:$0xff]
    %v1349 = vld [vmem:[%s939 + $0x121] sm:$0xff]
    %v1350 = vld [vmem:[%s939 + $0x129] sm:$0xff]
    %v1351 = vld [vmem:[%s939 + $0x139] sm:$0xff]
    %v1352 = vld [vmem:[%s939 + $0x141] sm:$0xff]
    %v1353 = vld [vmem:[%s939 + $0x151] sm:$0xff]
    %v1354 = vld [vmem:[%s939 + $0x159] sm:$0xff]
    %v1355 = vld [vmem:[%s939 + $0x169] sm:$0xff]
    %v1356 = vld [vmem:[%s939 + $0x171] sm:$0xff]
    %v1357 = vld [vmem:[%s939 + $0x1b1] sm:$0xff]
    %v1358 = vld [vmem:[%s939 + $0x1b9] sm:$0xff]
    %v1359 = vld [vmem:[%s939 + $0x1c9] sm:$0xff]
    %v1360 = vld [vmem:[%s939 + $0x1d1] sm:$0xff]
    %v1361 = vld [vmem:[%s939 + $0x1e1] sm:$0xff]
    %v1362 = vld [vmem:[%s939 + $0x1e9] sm:$0xff]
    %v1363 = vld [vmem:[%s939 + $0x1f9] sm:$0xff]
    %v1364 = vld [vmem:[%s939 + $0x201] sm:$0xff]
    %v1365 = vld [vmem:[%s939 + $0x211] sm:$0xff]
    %v1366 = vld [vmem:[%s939 + $0x219] sm:$0xff]
    %v1367 = vld [vmem:[%s939 + $0x229] sm:$0xff]
    %v1368 = vld [vmem:[%s939 + $0x231] sm:$0xff]
    %v1369 = vld [vmem:[%s939 + $0x241] sm:$0xff]
    %v1370 = vld [vmem:[%s939 + $0x249] sm:$0xff]
    %v1371 = vld [vmem:[%s939 + $0x259] sm:$0xff]
    %v1372 = vld [vmem:[%s939 + $0x261] sm:$0xff]
    %v1373 = vld [vmem:[%s939 + $0x271] sm:$0xff]
    %v1374 = vld [vmem:[%s939 + $0x279] sm:$0xff]
    %v1375 = vld [vmem:[%s939 + $0x289] sm:$0xff]
    %v1376 = vld [vmem:[%s939 + $0x291] sm:$0xff]
    %v1377 = vld [vmem:[%s939 + $0x2a1] sm:$0xff]
    %v1378 = vld [vmem:[%s939 + $0x2a9] sm:$0xff]
    %v1379 = vld [vmem:[%s939 + $0x2b9] sm:$0xff]
    %v1380 = vld [vmem:[%s939 + $0x2c1] sm:$0xff]
    %v1381 = vld [vmem:[%s939 + $0x2d1] sm:$0xff]
    %v1382 = vld [vmem:[%s939 + $0x2d9] sm:$0xff]
    %v1383 = vld [vmem:[%s939 + $0x2e9] sm:$0xff]
    %v1384 = vld [vmem:[%s939 + $0x2f1] sm:$0xff]
    %v1385 = vld [vmem:[%s939 + $0x301] sm:$0xff]
    %v1386 = vld [vmem:[%s939 + $0x309] sm:$0xff]
    %v1387 = vld [vmem:[%s939 + $0x319] sm:$0xff]
    %v1388 = vld [vmem:[%s939 + $0x321] sm:$0xff]
    %1453 = vrot.lane.b32.xlu0 %v1325, 16
    %v1454 = vpop.permute.xlu0 %1453
    %1455 = vrot.lane.b32.xlu0 %v1326, 16
    %v1456 = vpop.permute.xlu0 %1455
    %1457 = vrot.lane.b32.xlu0 %v1327, 16
    %v1458 = vpop.permute.xlu0 %1457
    %1459 = vrot.lane.b32.xlu0 %v1328, 16
    %v1460 = vpop.permute.xlu0 %1459
    %1461 = vrot.lane.b32.xlu0 %v1329, 16
    %v1462 = vpop.permute.xlu0 %1461
    %1463 = vrot.lane.b32.xlu0 %v1330, 16
    %v1464 = vpop.permute.xlu0 %1463
    %1465 = vrot.lane.b32.xlu0 %v1331, 16
    %v1466 = vpop.permute.xlu0 %1465
    %1467 = vrot.lane.b32.xlu0 %v1332, 16
    %v1468 = vpop.permute.xlu0 %1467
    %1469 = vrot.lane.b32.xlu0 %v1333, 16
    %v1470 = vpop.permute.xlu0 %1469
    %1471 = vrot.lane.b32.xlu0 %v1334, 16
    %v1472 = vpop.permute.xlu0 %1471
    %1473 = vrot.lane.b32.xlu0 %v1335, 16
    %v1474 = vpop.permute.xlu0 %1473
    %1475 = vrot.lane.b32.xlu0 %v1336, 16
    %v1476 = vpop.permute.xlu0 %1475
    %1477 = vrot.lane.b32.xlu0 %v1337, 16
    %v1478 = vpop.permute.xlu0 %1477
    %1479 = vrot.lane.b32.xlu0 %v1338, 16
    %v1480 = vpop.permute.xlu0 %1479
    %1481 = vrot.lane.b32.xlu0 %v1339, 16
    %v1482 = vpop.permute.xlu0 %1481
    %1483 = vrot.lane.b32.xlu0 %v1340, 16
    %v1484 = vpop.permute.xlu0 %1483
    %1485 = vrot.lane.b32.xlu0 %v1341, 16
    %v1486 = vpop.permute.xlu0 %1485
    %1487 = vrot.lane.b32.xlu0 %v1342, 16
    %v1488 = vpop.permute.xlu0 %1487
    %1489 = vrot.lane.b32.xlu0 %v1343, 16
    %v1490 = vpop.permute.xlu0 %1489
    %1491 = vrot.lane.b32.xlu0 %v1344, 16
    %v1492 = vpop.permute.xlu0 %1491
    %1493 = vrot.lane.b32.xlu0 %v1345, 16
    %v1494 = vpop.permute.xlu0 %1493
    %1495 = vrot.lane.b32.xlu0 %v1346, 16
    %v1496 = vpop.permute.xlu0 %1495
    %1497 = vrot.lane.b32.xlu0 %v1347, 16
    %v1498 = vpop.permute.xlu0 %1497
    %1499 = vrot.lane.b32.xlu0 %v1348, 16
    %v1500 = vpop.permute.xlu0 %1499
    %1501 = vrot.lane.b32.xlu0 %v1349, 16
    %v1502 = vpop.permute.xlu0 %1501
    %1503 = vrot.lane.b32.xlu0 %v1350, 16
    %v1504 = vpop.permute.xlu0 %1503
    %1505 = vrot.lane.b32.xlu0 %v1351, 16
    %v1506 = vpop.permute.xlu0 %1505
    %1507 = vrot.lane.b32.xlu0 %v1352, 16
    %v1508 = vpop.permute.xlu0 %1507
    %1509 = vrot.lane.b32.xlu0 %v1353, 16
    %v1510 = vpop.permute.xlu0 %1509
    %1511 = vrot.lane.b32.xlu0 %v1354, 16
    %v1512 = vpop.permute.xlu0 %1511
    %1513 = vrot.lane.b32.xlu0 %v1355, 16
    %v1514 = vpop.permute.xlu0 %1513
    %1515 = vrot.lane.b32.xlu0 %v1356, 16
    %v1516 = vpop.permute.xlu0 %1515
    %1517 = vrot.lane.b32.xlu0 %v1357, 16
    %v1518 = vpop.permute.xlu0 %1517
    %1519 = vrot.lane.b32.xlu0 %v1358, 16
    %v1520 = vpop.permute.xlu0 %1519
    %1521 = vrot.lane.b32.xlu0 %v1359, 16
    %v1522 = vpop.permute.xlu0 %1521
    %1523 = vrot.lane.b32.xlu0 %v1360, 16
    %v1524 = vpop.permute.xlu0 %1523
    %1525 = vrot.lane.b32.xlu0 %v1361, 16
    %v1526 = vpop.permute.xlu0 %1525
    %1527 = vrot.lane.b32.xlu0 %v1362, 16
    %v1528 = vpop.permute.xlu0 %1527
    %1529 = vrot.lane.b32.xlu0 %v1363, 16
    %v1530 = vpop.permute.xlu0 %1529
    %1531 = vrot.lane.b32.xlu0 %v1364, 16
    %v1532 = vpop.permute.xlu0 %1531
    %1533 = vrot.lane.b32.xlu0 %v1365, 16
    %v1534 = vpop.permute.xlu0 %1533
    %1535 = vrot.lane.b32.xlu0 %v1366, 16
    %v1536 = vpop.permute.xlu0 %1535
    %1537 = vrot.lane.b32.xlu0 %v1367, 16
    %v1538 = vpop.permute.xlu0 %1537
    %1539 = vrot.lane.b32.xlu0 %v1368, 16
    %v1540 = vpop.permute.xlu0 %1539
    %1541 = vrot.lane.b32.xlu0 %v1369, 16
    %v1542 = vpop.permute.xlu0 %1541
    %1543 = vrot.lane.b32.xlu0 %v1370, 16
    %v1544 = vpop.permute.xlu0 %1543
    %1545 = vrot.lane.b32.xlu0 %v1371, 16
    %v1546 = vpop.permute.xlu0 %1545
    %1547 = vrot.lane.b32.xlu0 %v1372, 16
    %v1548 = vpop.permute.xlu0 %1547
    %1549 = vrot.lane.b32.xlu0 %v1373, 16
    %v1550 = vpop.permute.xlu0 %1549
    %1551 = vrot.lane.b32.xlu0 %v1374, 16
    %v1552 = vpop.permute.xlu0 %1551
    %1553 = vrot.lane.b32.xlu0 %v1375, 16
    %v1554 = vpop.permute.xlu0 %1553
    %1555 = vrot.lane.b32.xlu0 %v1376, 16
    %v1556 = vpop.permute.xlu0 %1555
    %1557 = vrot.lane.b32.xlu0 %v1377, 16
    %v1558 = vpop.permute.xlu0 %1557
    %1559 = vrot.lane.b32.xlu0 %v1378, 16
    %v1560 = vpop.permute.xlu0 %1559
    %1561 = vrot.lane.b32.xlu0 %v1379, 16
    %v1562 = vpop.permute.xlu0 %1561
    %1563 = vrot.lane.b32.xlu0 %v1380, 16
    %v1564 = vpop.permute.xlu0 %1563
    %1565 = vrot.lane.b32.xlu0 %v1381, 16
    %v1566 = vpop.permute.xlu0 %1565
    %1567 = vrot.lane.b32.xlu0 %v1382, 16
    %v1568 = vpop.permute.xlu0 %1567
    %1569 = vrot.lane.b32.xlu0 %v1383, 16
    %v1570 = vpop.permute.xlu0 %1569
    %1571 = vrot.lane.b32.xlu0 %v1384, 16
    %v1572 = vpop.permute.xlu0 %1571
    %1573 = vrot.lane.b32.xlu0 %v1385, 16
    %v1574 = vpop.permute.xlu0 %1573
    %1575 = vrot.lane.b32.xlu0 %v1386, 16
    %v1576 = vpop.permute.xlu0 %1575
    %1577 = vrot.lane.b32.xlu0 %v1387, 16
    %v1578 = vpop.permute.xlu0 %1577
    %1579 = vrot.lane.b32.xlu0 %v1388, 16
    %v1580 = vpop.permute.xlu0 %1579
    %vm1645 = vcmask 162944
    %1646 = vst.msk [vmem:[#allocation2] sm:$0xff] %vm1645, %v1454
    %1647 = vst.msk [vmem:[#allocation2 + $0x8] sm:$0xff] %vm1645, %v1456
    %1648 = vst.msk [vmem:[#allocation2 + $0x10] sm:$0xff] %vm1645, %v1458
    %1649 = vst.msk [vmem:[#allocation2 + $0x18] sm:$0xff] %vm1645, %v1460
    %1650 = vst.msk [vmem:[#allocation2 + $0x20] sm:$0xff] %vm1645, %v1462
    %1651 = vst.msk [vmem:[#allocation2 + $0x28] sm:$0xff] %vm1645, %v1464
    %1652 = vst.msk [vmem:[#allocation2 + $0x30] sm:$0xff] %vm1645, %v1466
    %1653 = vst.msk [vmem:[#allocation2 + $0x38] sm:$0xff] %vm1645, %v1468
    %1654 = vst.msk [vmem:[#allocation2 + $0x40] sm:$0xff] %vm1645, %v1470
    %1655 = vst.msk [vmem:[#allocation2 + $0x48] sm:$0xff] %vm1645, %v1472
    %1656 = vst.msk [vmem:[#allocation2 + $0x50] sm:$0xff] %vm1645, %v1474
    %1657 = vst.msk [vmem:[#allocation2 + $0x58] sm:$0xff] %vm1645, %v1476
    %1658 = vst.msk [vmem:[#allocation2 + $0x60] sm:$0xff] %vm1645, %v1478
    %1659 = vst.msk [vmem:[#allocation2 + $0x68] sm:$0xff] %vm1645, %v1480
    %1660 = vst.msk [vmem:[#allocation2 + $0x70] sm:$0xff] %vm1645, %v1482
    %1661 = vst.msk [vmem:[#allocation2 + $0x78] sm:$0xff] %vm1645, %v1484
    %1662 = vst.msk [vmem:[#allocation2 + $0x80] sm:$0xff] %vm1645, %v1486
    %1663 = vst.msk [vmem:[#allocation2 + $0x88] sm:$0xff] %vm1645, %v1488
    %1664 = vst.msk [vmem:[#allocation2 + $0x90] sm:$0xff] %vm1645, %v1490
    %1665 = vst.msk [vmem:[#allocation2 + $0x98] sm:$0xff] %vm1645, %v1492
    %1666 = vst.msk [vmem:[#allocation2 + $0xa0] sm:$0xff] %vm1645, %v1494
    %1667 = vst.msk [vmem:[#allocation2 + $0xa8] sm:$0xff] %vm1645, %v1496
    %1668 = vst.msk [vmem:[#allocation2 + $0xb0] sm:$0xff] %vm1645, %v1498
    %1669 = vst.msk [vmem:[#allocation2 + $0xb8] sm:$0xff] %vm1645, %v1500
    %1670 = vst.msk [vmem:[#allocation2 + $0xc0] sm:$0xff] %vm1645, %v1502
    %1671 = vst.msk [vmem:[#allocation2 + $0xc8] sm:$0xff] %vm1645, %v1504
    %1672 = vst.msk [vmem:[#allocation2 + $0xd0] sm:$0xff] %vm1645, %v1506
    %1673 = vst.msk [vmem:[#allocation2 + $0xd8] sm:$0xff] %vm1645, %v1508
    %1674 = vst.msk [vmem:[#allocation2 + $0xe0] sm:$0xff] %vm1645, %v1510
    %1675 = vst.msk [vmem:[#allocation2 + $0xe8] sm:$0xff] %vm1645, %v1512
    %1676 = vst.msk [vmem:[#allocation2 + $0xf0] sm:$0xff] %vm1645, %v1514
    %1677 = vst.msk [vmem:[#allocation2 + $0xf8] sm:$0xff] %vm1645, %v1516
    %1678 = vst.msk [vmem:[#allocation2 + $0x100] sm:$0xff] %vm1645, %v1518
    %1679 = vst.msk [vmem:[#allocation2 + $0x108] sm:$0xff] %vm1645, %v1520
    %1680 = vst.msk [vmem:[#allocation2 + $0x110] sm:$0xff] %vm1645, %v1522
    %1681 = vst.msk [vmem:[#allocation2 + $0x118] sm:$0xff] %vm1645, %v1524
    %1682 = vst.msk [vmem:[#allocation2 + $0x120] sm:$0xff] %vm1645, %v1526
    %1683 = vst.msk [vmem:[#allocation2 + $0x128] sm:$0xff] %vm1645, %v1528
    %1684 = vst.msk [vmem:[#allocation2 + $0x130] sm:$0xff] %vm1645, %v1530
    %1685 = vst.msk [vmem:[#allocation2 + $0x138] sm:$0xff] %vm1645, %v1532
    %1686 = vst.msk [vmem:[#allocation2 + $0x140] sm:$0xff] %vm1645, %v1534
    %1687 = vst.msk [vmem:[#allocation2 + $0x148] sm:$0xff] %vm1645, %v1536
    %1688 = vst.msk [vmem:[#allocation2 + $0x150] sm:$0xff] %vm1645, %v1538
    %1689 = vst.msk [vmem:[#allocation2 + $0x158] sm:$0xff] %vm1645, %v1540
    %1690 = vst.msk [vmem:[#allocation2 + $0x160] sm:$0xff] %vm1645, %v1542
    %1691 = vst.msk [vmem:[#allocation2 + $0x168] sm:$0xff] %vm1645, %v1544
    %1692 = vst.msk [vmem:[#allocation2 + $0x170] sm:$0xff] %vm1645, %v1546
    %1693 = vst.msk [vmem:[#allocation2 + $0x178] sm:$0xff] %vm1645, %v1548
    %1694 = vst.msk [vmem:[#allocation2 + $0x180] sm:$0xff] %vm1645, %v1550
    %1695 = vst.msk [vmem:[#allocation2 + $0x188] sm:$0xff] %vm1645, %v1552
    %1696 = vst.msk [vmem:[#allocation2 + $0x190] sm:$0xff] %vm1645, %v1554
    %1697 = vst.msk [vmem:[#allocation2 + $0x198] sm:$0xff] %vm1645, %v1556
    %1698 = vst.msk [vmem:[#allocation2 + $0x1a0] sm:$0xff] %vm1645, %v1558
    %1699 = vst.msk [vmem:[#allocation2 + $0x1a8] sm:$0xff] %vm1645, %v1560
    %1700 = vst.msk [vmem:[#allocation2 + $0x1b0] sm:$0xff] %vm1645, %v1562
    %1701 = vst.msk [vmem:[#allocation2 + $0x1b8] sm:$0xff] %vm1645, %v1564
    %1702 = vst.msk [vmem:[#allocation2 + $0x1c0] sm:$0xff] %vm1645, %v1566
    %1703 = vst.msk [vmem:[#allocation2 + $0x1c8] sm:$0xff] %vm1645, %v1568
    %1704 = vst.msk [vmem:[#allocation2 + $0x1d0] sm:$0xff] %vm1645, %v1570
    %1705 = vst.msk [vmem:[#allocation2 + $0x1d8] sm:$0xff] %vm1645, %v1572
    %1706 = vst.msk [vmem:[#allocation2 + $0x1e0] sm:$0xff] %vm1645, %v1574
    %1707 = vst.msk [vmem:[#allocation2 + $0x1e8] sm:$0xff] %vm1645, %v1576
    %1708 = vst.msk [vmem:[#allocation2 + $0x1f0] sm:$0xff] %vm1645, %v1578
    %1709 = vst.msk [vmem:[#allocation2 + $0x1f8] sm:$0xff] %vm1645, %v1580
    %v1710 = vld [vmem:[%s939 + $0x2] sm:$0xff]
    %v1711 = vld [vmem:[%s939 + $0xa] sm:$0xff]
    %v1712 = vld [vmem:[%s939 + $0x1a] sm:$0xff]
    %v1713 = vld [vmem:[%s939 + $0x22] sm:$0xff]
    %v1714 = vld [vmem:[%s939 + $0x32] sm:$0xff]
    %v1715 = vld [vmem:[%s939 + $0x3a] sm:$0xff]
    %v1716 = vld [vmem:[%s939 + $0x4a] sm:$0xff]
    %v1717 = vld [vmem:[%s939 + $0x52] sm:$0xff]
    %v1718 = vld [vmem:[%s939 + $0x62] sm:$0xff]
    %v1719 = vld [vmem:[%s939 + $0x6a] sm:$0xff]
    %v1720 = vld [vmem:[%s939 + $0x7a] sm:$0xff]
    %v1721 = vld [vmem:[%s939 + $0x82] sm:$0xff]
    %v1722 = vld [vmem:[%s939 + $0x92] sm:$0xff]
    %v1723 = vld [vmem:[%s939 + $0x9a] sm:$0xff]
    %v1724 = vld [vmem:[%s939 + $0xaa] sm:$0xff]
    %v1725 = vld [vmem:[%s939 + $0xb2] sm:$0xff]
    %v1726 = vld [vmem:[%s939 + $0xc2] sm:$0xff]
    %v1727 = vld [vmem:[%s939 + $0xca] sm:$0xff]
    %v1728 = vld [vmem:[%s939 + $0xda] sm:$0xff]
    %v1729 = vld [vmem:[%s939 + $0xe2] sm:$0xff]
    %v1730 = vld [vmem:[%s939 + $0xf2] sm:$0xff]
    %v1731 = vld [vmem:[%s939 + $0xfa] sm:$0xff]
    %v1732 = vld [vmem:[%s939 + $0x10a] sm:$0xff]
    %v1733 = vld [vmem:[%s939 + $0x112] sm:$0xff]
    %v1734 = vld [vmem:[%s939 + $0x122] sm:$0xff]
    %v1735 = vld [vmem:[%s939 + $0x12a] sm:$0xff]
    %v1736 = vld [vmem:[%s939 + $0x13a] sm:$0xff]
    %v1737 = vld [vmem:[%s939 + $0x142] sm:$0xff]
    %v1738 = vld [vmem:[%s939 + $0x152] sm:$0xff]
    %v1739 = vld [vmem:[%s939 + $0x15a] sm:$0xff]
    %v1740 = vld [vmem:[%s939 + $0x16a] sm:$0xff]
    %v1741 = vld [vmem:[%s939 + $0x172] sm:$0xff]
    %v1742 = vld [vmem:[%s939 + $0x1b2] sm:$0xff]
    %v1743 = vld [vmem:[%s939 + $0x1ba] sm:$0xff]
    %v1744 = vld [vmem:[%s939 + $0x1ca] sm:$0xff]
    %v1745 = vld [vmem:[%s939 + $0x1d2] sm:$0xff]
    %v1746 = vld [vmem:[%s939 + $0x1e2] sm:$0xff]
    %v1747 = vld [vmem:[%s939 + $0x1ea] sm:$0xff]
    %v1748 = vld [vmem:[%s939 + $0x1fa] sm:$0xff]
    %v1749 = vld [vmem:[%s939 + $0x202] sm:$0xff]
    %v1750 = vld [vmem:[%s939 + $0x212] sm:$0xff]
    %v1751 = vld [vmem:[%s939 + $0x21a] sm:$0xff]
    %v1752 = vld [vmem:[%s939 + $0x22a] sm:$0xff]
    %v1753 = vld [vmem:[%s939 + $0x232] sm:$0xff]
    %v1754 = vld [vmem:[%s939 + $0x242] sm:$0xff]
    %v1755 = vld [vmem:[%s939 + $0x24a] sm:$0xff]
    %v1756 = vld [vmem:[%s939 + $0x25a] sm:$0xff]
    %v1757 = vld [vmem:[%s939 + $0x262] sm:$0xff]
    %v1758 = vld [vmem:[%s939 + $0x272] sm:$0xff]
    %v1759 = vld [vmem:[%s939 + $0x27a] sm:$0xff]
    %v1760 = vld [vmem:[%s939 + $0x28a] sm:$0xff]
    %v1761 = vld [vmem:[%s939 + $0x292] sm:$0xff]
    %v1762 = vld [vmem:[%s939 + $0x2a2] sm:$0xff]
    %v1763 = vld [vmem:[%s939 + $0x2aa] sm:$0xff]
    %v1764 = vld [vmem:[%s939 + $0x2ba] sm:$0xff]
    %v1765 = vld [vmem:[%s939 + $0x2c2] sm:$0xff]
    %v1766 = vld [vmem:[%s939 + $0x2d2] sm:$0xff]
    %v1767 = vld [vmem:[%s939 + $0x2da] sm:$0xff]
    %v1768 = vld [vmem:[%s939 + $0x2ea] sm:$0xff]
    %v1769 = vld [vmem:[%s939 + $0x2f2] sm:$0xff]
    %v1770 = vld [vmem:[%s939 + $0x302] sm:$0xff]
    %v1771 = vld [vmem:[%s939 + $0x30a] sm:$0xff]
    %v1772 = vld [vmem:[%s939 + $0x31a] sm:$0xff]
    %v1773 = vld [vmem:[%s939 + $0x322] sm:$0xff]
    %1838 = vrot.lane.b32.xlu0 %v1710, 20
    %v1839 = vpop.permute.xlu0 %1838
    %1840 = vrot.lane.b32.xlu0 %v1711, 20
    %v1841 = vpop.permute.xlu0 %1840
    %1842 = vrot.lane.b32.xlu0 %v1712, 20
    %v1843 = vpop.permute.xlu0 %1842
    %1844 = vrot.lane.b32.xlu0 %v1713, 20
    %v1845 = vpop.permute.xlu0 %1844
    %1846 = vrot.lane.b32.xlu0 %v1714, 20
    %v1847 = vpop.permute.xlu0 %1846
    %1848 = vrot.lane.b32.xlu0 %v1715, 20
    %v1849 = vpop.permute.xlu0 %1848
    %1850 = vrot.lane.b32.xlu0 %v1716, 20
    %v1851 = vpop.permute.xlu0 %1850
    %1852 = vrot.lane.b32.xlu0 %v1717, 20
    %v1853 = vpop.permute.xlu0 %1852
    %1854 = vrot.lane.b32.xlu0 %v1718, 20
    %v1855 = vpop.permute.xlu0 %1854
    %1856 = vrot.lane.b32.xlu0 %v1719, 20
    %v1857 = vpop.permute.xlu0 %1856
    %1858 = vrot.lane.b32.xlu0 %v1720, 20
    %v1859 = vpop.permute.xlu0 %1858
    %1860 = vrot.lane.b32.xlu0 %v1721, 20
    %v1861 = vpop.permute.xlu0 %1860
    %1862 = vrot.lane.b32.xlu0 %v1722, 20
    %v1863 = vpop.permute.xlu0 %1862
    %1864 = vrot.lane.b32.xlu0 %v1723, 20
    %v1865 = vpop.permute.xlu0 %1864
    %1866 = vrot.lane.b32.xlu0 %v1724, 20
    %v1867 = vpop.permute.xlu0 %1866
    %1868 = vrot.lane.b32.xlu0 %v1725, 20
    %v1869 = vpop.permute.xlu0 %1868
    %1870 = vrot.lane.b32.xlu0 %v1726, 20
    %v1871 = vpop.permute.xlu0 %1870
    %1872 = vrot.lane.b32.xlu0 %v1727, 20
    %v1873 = vpop.permute.xlu0 %1872
    %1874 = vrot.lane.b32.xlu0 %v1728, 20
    %v1875 = vpop.permute.xlu0 %1874
    %1876 = vrot.lane.b32.xlu0 %v1729, 20
    %v1877 = vpop.permute.xlu0 %1876
    %1878 = vrot.lane.b32.xlu0 %v1730, 20
    %v1879 = vpop.permute.xlu0 %1878
    %1880 = vrot.lane.b32.xlu0 %v1731, 20
    %v1881 = vpop.permute.xlu0 %1880
    %1882 = vrot.lane.b32.xlu0 %v1732, 20
    %v1883 = vpop.permute.xlu0 %1882
    %1884 = vrot.lane.b32.xlu0 %v1733, 20
    %v1885 = vpop.permute.xlu0 %1884
    %1886 = vrot.lane.b32.xlu0 %v1734, 20
    %v1887 = vpop.permute.xlu0 %1886
    %1888 = vrot.lane.b32.xlu0 %v1735, 20
    %v1889 = vpop.permute.xlu0 %1888
    %1890 = vrot.lane.b32.xlu0 %v1736, 20
    %v1891 = vpop.permute.xlu0 %1890
    %1892 = vrot.lane.b32.xlu0 %v1737, 20
    %v1893 = vpop.permute.xlu0 %1892
    %1894 = vrot.lane.b32.xlu0 %v1738, 20
    %v1895 = vpop.permute.xlu0 %1894
    %1896 = vrot.lane.b32.xlu0 %v1739, 20
    %v1897 = vpop.permute.xlu0 %1896
    %1898 = vrot.lane.b32.xlu0 %v1740, 20
    %v1899 = vpop.permute.xlu0 %1898
    %1900 = vrot.lane.b32.xlu0 %v1741, 20
    %v1901 = vpop.permute.xlu0 %1900
    %1902 = vrot.lane.b32.xlu0 %v1742, 20
    %v1903 = vpop.permute.xlu0 %1902
    %1904 = vrot.lane.b32.xlu0 %v1743, 20
    %v1905 = vpop.permute.xlu0 %1904
    %1906 = vrot.lane.b32.xlu0 %v1744, 20
    %v1907 = vpop.permute.xlu0 %1906
    %1908 = vrot.lane.b32.xlu0 %v1745, 20
    %v1909 = vpop.permute.xlu0 %1908
    %1910 = vrot.lane.b32.xlu0 %v1746, 20
    %v1911 = vpop.permute.xlu0 %1910
    %1912 = vrot.lane.b32.xlu0 %v1747, 20
    %v1913 = vpop.permute.xlu0 %1912
    %1914 = vrot.lane.b32.xlu0 %v1748, 20
    %v1915 = vpop.permute.xlu0 %1914
    %1916 = vrot.lane.b32.xlu0 %v1749, 20
    %v1917 = vpop.permute.xlu0 %1916
    %1918 = vrot.lane.b32.xlu0 %v1750, 20
    %v1919 = vpop.permute.xlu0 %1918
    %1920 = vrot.lane.b32.xlu0 %v1751, 20
    %v1921 = vpop.permute.xlu0 %1920
    %1922 = vrot.lane.b32.xlu0 %v1752, 20
    %v1923 = vpop.permute.xlu0 %1922
    %1924 = vrot.lane.b32.xlu0 %v1753, 20
    %v1925 = vpop.permute.xlu0 %1924
    %1926 = vrot.lane.b32.xlu0 %v1754, 20
    %v1927 = vpop.permute.xlu0 %1926
    %1928 = vrot.lane.b32.xlu0 %v1755, 20
    %v1929 = vpop.permute.xlu0 %1928
    %1930 = vrot.lane.b32.xlu0 %v1756, 20
    %v1931 = vpop.permute.xlu0 %1930
    %1932 = vrot.lane.b32.xlu0 %v1757, 20
    %v1933 = vpop.permute.xlu0 %1932
    %1934 = vrot.lane.b32.xlu0 %v1758, 20
    %v1935 = vpop.permute.xlu0 %1934
    %1936 = vrot.lane.b32.xlu0 %v1759, 20
    %v1937 = vpop.permute.xlu0 %1936
    %1938 = vrot.lane.b32.xlu0 %v1760, 20
    %v1939 = vpop.permute.xlu0 %1938
    %1940 = vrot.lane.b32.xlu0 %v1761, 20
    %v1941 = vpop.permute.xlu0 %1940
    %1942 = vrot.lane.b32.xlu0 %v1762, 20
    %v1943 = vpop.permute.xlu0 %1942
    %1944 = vrot.lane.b32.xlu0 %v1763, 20
    %v1945 = vpop.permute.xlu0 %1944
    %1946 = vrot.lane.b32.xlu0 %v1764, 20
    %v1947 = vpop.permute.xlu0 %1946
    %1948 = vrot.lane.b32.xlu0 %v1765, 20
    %v1949 = vpop.permute.xlu0 %1948
    %1950 = vrot.lane.b32.xlu0 %v1766, 20
    %v1951 = vpop.permute.xlu0 %1950
    %1952 = vrot.lane.b32.xlu0 %v1767, 20
    %v1953 = vpop.permute.xlu0 %1952
    %1954 = vrot.lane.b32.xlu0 %v1768, 20
    %v1955 = vpop.permute.xlu0 %1954
    %1956 = vrot.lane.b32.xlu0 %v1769, 20
    %v1957 = vpop.permute.xlu0 %1956
    %1958 = vrot.lane.b32.xlu0 %v1770, 20
    %v1959 = vpop.permute.xlu0 %1958
    %1960 = vrot.lane.b32.xlu0 %v1771, 20
    %v1961 = vpop.permute.xlu0 %1960
    %1962 = vrot.lane.b32.xlu0 %v1772, 20
    %v1963 = vpop.permute.xlu0 %1962
    %1964 = vrot.lane.b32.xlu0 %v1773, 20
    %v1965 = vpop.permute.xlu0 %1964
    %vm2030 = vcmask 195744
    %2031 = vst.msk [vmem:[#allocation2] sm:$0xff] %vm2030, %v1839
    %2032 = vst.msk [vmem:[#allocation2 + $0x8] sm:$0xff] %vm2030, %v1841
    %2033 = vst.msk [vmem:[#allocation2 + $0x10] sm:$0xff] %vm2030, %v1843
    %2034 = vst.msk [vmem:[#allocation2 + $0x18] sm:$0xff] %vm2030, %v1845
    %2035 = vst.msk [vmem:[#allocation2 + $0x20] sm:$0xff] %vm2030, %v1847
    %2036 = vst.msk [vmem:[#allocation2 + $0x28] sm:$0xff] %vm2030, %v1849
    %2037 = vst.msk [vmem:[#allocation2 + $0x30] sm:$0xff] %vm2030, %v1851
    %2038 = vst.msk [vmem:[#allocation2 + $0x38] sm:$0xff] %vm2030, %v1853
    %2039 = vst.msk [vmem:[#allocation2 + $0x40] sm:$0xff] %vm2030, %v1855
    %2040 = vst.msk [vmem:[#allocation2 + $0x48] sm:$0xff] %vm2030, %v1857
    %2041 = vst.msk [vmem:[#allocation2 + $0x50] sm:$0xff] %vm2030, %v1859
    %2042 = vst.msk [vmem:[#allocation2 + $0x58] sm:$0xff] %vm2030, %v1861
    %2043 = vst.msk [vmem:[#allocation2 + $0x60] sm:$0xff] %vm2030, %v1863
    %2044 = vst.msk [vmem:[#allocation2 + $0x68] sm:$0xff] %vm2030, %v1865
    %2045 = vst.msk [vmem:[#allocation2 + $0x70] sm:$0xff] %vm2030, %v1867
    %2046 = vst.msk [vmem:[#allocation2 + $0x78] sm:$0xff] %vm2030, %v1869
    %2047 = vst.msk [vmem:[#allocation2 + $0x80] sm:$0xff] %vm2030, %v1871
    %2048 = vst.msk [vmem:[#allocation2 + $0x88] sm:$0xff] %vm2030, %v1873
    %2049 = vst.msk [vmem:[#allocation2 + $0x90] sm:$0xff] %vm2030, %v1875
    %2050 = vst.msk [vmem:[#allocation2 + $0x98] sm:$0xff] %vm2030, %v1877
    %2051 = vst.msk [vmem:[#allocation2 + $0xa0] sm:$0xff] %vm2030, %v1879
    %2052 = vst.msk [vmem:[#allocation2 + $0xa8] sm:$0xff] %vm2030, %v1881
    %2053 = vst.msk [vmem:[#allocation2 + $0xb0] sm:$0xff] %vm2030, %v1883
    %2054 = vst.msk [vmem:[#allocation2 + $0xb8] sm:$0xff] %vm2030, %v1885
    %2055 = vst.msk [vmem:[#allocation2 + $0xc0] sm:$0xff] %vm2030, %v1887
    %2056 = vst.msk [vmem:[#allocation2 + $0xc8] sm:$0xff] %vm2030, %v1889
    %2057 = vst.msk [vmem:[#allocation2 + $0xd0] sm:$0xff] %vm2030, %v1891
    %2058 = vst.msk [vmem:[#allocation2 + $0xd8] sm:$0xff] %vm2030, %v1893
    %2059 = vst.msk [vmem:[#allocation2 + $0xe0] sm:$0xff] %vm2030, %v1895
    %2060 = vst.msk [vmem:[#allocation2 + $0xe8] sm:$0xff] %vm2030, %v1897
    %2061 = vst.msk [vmem:[#allocation2 + $0xf0] sm:$0xff] %vm2030, %v1899
    %2062 = vst.msk [vmem:[#allocation2 + $0xf8] sm:$0xff] %vm2030, %v1901
    %2063 = vst.msk [vmem:[#allocation2 + $0x100] sm:$0xff] %vm2030, %v1903
    %2064 = vst.msk [vmem:[#allocation2 + $0x108] sm:$0xff] %vm2030, %v1905
    %2065 = vst.msk [vmem:[#allocation2 + $0x110] sm:$0xff] %vm2030, %v1907
    %2066 = vst.msk [vmem:[#allocation2 + $0x118] sm:$0xff] %vm2030, %v1909
    %2067 = vst.msk [vmem:[#allocation2 + $0x120] sm:$0xff] %vm2030, %v1911
    %2068 = vst.msk [vmem:[#allocation2 + $0x128] sm:$0xff] %vm2030, %v1913
    %2069 = vst.msk [vmem:[#allocation2 + $0x130] sm:$0xff] %vm2030, %v1915
    %2070 = vst.msk [vmem:[#allocation2 + $0x138] sm:$0xff] %vm2030, %v1917
    %2071 = vst.msk [vmem:[#allocation2 + $0x140] sm:$0xff] %vm2030, %v1919
    %2072 = vst.msk [vmem:[#allocation2 + $0x148] sm:$0xff] %vm2030, %v1921
    %2073 = vst.msk [vmem:[#allocation2 + $0x150] sm:$0xff] %vm2030, %v1923
    %2074 = vst.msk [vmem:[#allocation2 + $0x158] sm:$0xff] %vm2030, %v1925
    %2075 = vst.msk [vmem:[#allocation2 + $0x160] sm:$0xff] %vm2030, %v1927
    %2076 = vst.msk [vmem:[#allocation2 + $0x168] sm:$0xff] %vm2030, %v1929
    %2077 = vst.msk [vmem:[#allocation2 + $0x170] sm:$0xff] %vm2030, %v1931
    %2078 = vst.msk [vmem:[#allocation2 + $0x178] sm:$0xff] %vm2030, %v1933
    %2079 = vst.msk [vmem:[#allocation2 + $0x180] sm:$0xff] %vm2030, %v1935
    %2080 = vst.msk [vmem:[#allocation2 + $0x188] sm:$0xff] %vm2030, %v1937
    %2081 = vst.msk [vmem:[#allocation2 + $0x190] sm:$0xff] %vm2030, %v1939
    %2082 = vst.msk [vmem:[#allocation2 + $0x198] sm:$0xff] %vm2030, %v1941
    %2083 = vst.msk [vmem:[#allocation2 + $0x1a0] sm:$0xff] %vm2030, %v1943
    %2084 = vst.msk [vmem:[#allocation2 + $0x1a8] sm:$0xff] %vm2030, %v1945
    %2085 = vst.msk [vmem:[#allocation2 + $0x1b0] sm:$0xff] %vm2030, %v1947
    %2086 = vst.msk [vmem:[#allocation2 + $0x1b8] sm:$0xff] %vm2030, %v1949
    %2087 = vst.msk [vmem:[#allocation2 + $0x1c0] sm:$0xff] %vm2030, %v1951
    %2088 = vst.msk [vmem:[#allocation2 + $0x1c8] sm:$0xff] %vm2030, %v1953
    %2089 = vst.msk [vmem:[#allocation2 + $0x1d0] sm:$0xff] %vm2030, %v1955
    %2090 = vst.msk [vmem:[#allocation2 + $0x1d8] sm:$0xff] %vm2030, %v1957
    %2091 = vst.msk [vmem:[#allocation2 + $0x1e0] sm:$0xff] %vm2030, %v1959
    %2092 = vst.msk [vmem:[#allocation2 + $0x1e8] sm:$0xff] %vm2030, %v1961
    %2093 = vst.msk [vmem:[#allocation2 + $0x1f0] sm:$0xff] %vm2030, %v1963
    %2094 = vst.msk [vmem:[#allocation2 + $0x1f8] sm:$0xff] %vm2030, %v1965
    %s2095 = scalar_lea.vmem %s0, 48
    %v2096 = vld [vmem:[%s2095] sm:$0xff]
    %v2097 = vld [vmem:[%s2095 + $0x8] sm:$0xff]
    %v2098 = vld [vmem:[%s2095 + $0x18] sm:$0xff]
    %v2099 = vld [vmem:[%s2095 + $0x20] sm:$0xff]
    %v2100 = vld [vmem:[%s2095 + $0x30] sm:$0xff]
    %v2101 = vld [vmem:[%s2095 + $0x38] sm:$0xff]
    %v2102 = vld [vmem:[%s2095 + $0x48] sm:$0xff]
    %v2103 = vld [vmem:[%s2095 + $0x50] sm:$0xff]
    %v2104 = vld [vmem:[%s2095 + $0x60] sm:$0xff]
    %v2105 = vld [vmem:[%s2095 + $0x68] sm:$0xff]
    %v2106 = vld [vmem:[%s2095 + $0x78] sm:$0xff]
    %v2107 = vld [vmem:[%s2095 + $0x80] sm:$0xff]
    %v2108 = vld [vmem:[%s2095 + $0x90] sm:$0xff]
    %v2109 = vld [vmem:[%s2095 + $0x98] sm:$0xff]
    %v2110 = vld [vmem:[%s2095 + $0xa8] sm:$0xff]
    %v2111 = vld [vmem:[%s2095 + $0xb0] sm:$0xff]
    %v2112 = vld [vmem:[%s2095 + $0xc0] sm:$0xff]
    %v2113 = vld [vmem:[%s2095 + $0xc8] sm:$0xff]
    %v2114 = vld [vmem:[%s2095 + $0xd8] sm:$0xff]
    %v2115 = vld [vmem:[%s2095 + $0xe0] sm:$0xff]
    %v2116 = vld [vmem:[%s2095 + $0xf0] sm:$0xff]
    %v2117 = vld [vmem:[%s2095 + $0xf8] sm:$0xff]
    %v2118 = vld [vmem:[%s2095 + $0x108] sm:$0xff]
    %v2119 = vld [vmem:[%s2095 + $0x110] sm:$0xff]
    %v2120 = vld [vmem:[%s2095 + $0x120] sm:$0xff]
    %v2121 = vld [vmem:[%s2095 + $0x128] sm:$0xff]
    %v2122 = vld [vmem:[%s2095 + $0x138] sm:$0xff]
    %v2123 = vld [vmem:[%s2095 + $0x140] sm:$0xff]
    %v2124 = vld [vmem:[%s2095 + $0x150] sm:$0xff]
    %v2125 = vld [vmem:[%s2095 + $0x158] sm:$0xff]
    %v2126 = vld [vmem:[%s2095 + $0x168] sm:$0xff]
    %v2127 = vld [vmem:[%s2095 + $0x170] sm:$0xff]
    %v2128 = vld [vmem:[%s2095 + $0x1b0] sm:$0xff]
    %v2129 = vld [vmem:[%s2095 + $0x1b8] sm:$0xff]
    %v2130 = vld [vmem:[%s2095 + $0x1c8] sm:$0xff]
    %v2131 = vld [vmem:[%s2095 + $0x1d0] sm:$0xff]
    %v2132 = vld [vmem:[%s2095 + $0x1e0] sm:$0xff]
    %v2133 = vld [vmem:[%s2095 + $0x1e8] sm:$0xff]
    %v2134 = vld [vmem:[%s2095 + $0x1f8] sm:$0xff]
    %v2135 = vld [vmem:[%s2095 + $0x200] sm:$0xff]
    %v2136 = vld [vmem:[%s2095 + $0x210] sm:$0xff]
    %v2137 = vld [vmem:[%s2095 + $0x218] sm:$0xff]
    %v2138 = vld [vmem:[%s2095 + $0x228] sm:$0xff]
    %v2139 = vld [vmem:[%s2095 + $0x230] sm:$0xff]
    %v2140 = vld [vmem:[%s2095 + $0x240] sm:$0xff]
    %v2141 = vld [vmem:[%s2095 + $0x248] sm:$0xff]
    %v2142 = vld [vmem:[%s2095 + $0x258] sm:$0xff]
    %v2143 = vld [vmem:[%s2095 + $0x260] sm:$0xff]
    %v2144 = vld [vmem:[%s2095 + $0x270] sm:$0xff]
    %v2145 = vld [vmem:[%s2095 + $0x278] sm:$0xff]
    %v2146 = vld [vmem:[%s2095 + $0x288] sm:$0xff]
    %v2147 = vld [vmem:[%s2095 + $0x290] sm:$0xff]
    %v2148 = vld [vmem:[%s2095 + $0x2a0] sm:$0xff]
    %v2149 = vld [vmem:[%s2095 + $0x2a8] sm:$0xff]
    %v2150 = vld [vmem:[%s2095 + $0x2b8] sm:$0xff]
    %v2151 = vld [vmem:[%s2095 + $0x2c0] sm:$0xff]
    %v2152 = vld [vmem:[%s2095 + $0x2d0] sm:$0xff]
    %v2153 = vld [vmem:[%s2095 + $0x2d8] sm:$0xff]
    %v2154 = vld [vmem:[%s2095 + $0x2e8] sm:$0xff]
    %v2155 = vld [vmem:[%s2095 + $0x2f0] sm:$0xff]
    %v2156 = vld [vmem:[%s2095 + $0x300] sm:$0xff]
    %v2157 = vld [vmem:[%s2095 + $0x308] sm:$0xff]
    %v2158 = vld [vmem:[%s2095 + $0x318] sm:$0xff]
    %v2159 = vld [vmem:[%s2095 + $0x320] sm:$0xff]
    %2224 = vrot.lane.b32.xlu0 %v2096, 24
    %v2225 = vpop.permute.xlu0 %2224
    %2226 = vrot.lane.b32.xlu0 %v2097, 24
    %v2227 = vpop.permute.xlu0 %2226
    %2228 = vrot.lane.b32.xlu0 %v2098, 24
    %v2229 = vpop.permute.xlu0 %2228
    %2230 = vrot.lane.b32.xlu0 %v2099, 24
    %v2231 = vpop.permute.xlu0 %2230
    %2232 = vrot.lane.b32.xlu0 %v2100, 24
    %v2233 = vpop.permute.xlu0 %2232
    %2234 = vrot.lane.b32.xlu0 %v2101, 24
    %v2235 = vpop.permute.xlu0 %2234
    %2236 = vrot.lane.b32.xlu0 %v2102, 24
    %v2237 = vpop.permute.xlu0 %2236
    %2238 = vrot.lane.b32.xlu0 %v2103, 24
    %v2239 = vpop.permute.xlu0 %2238
    %2240 = vrot.lane.b32.xlu0 %v2104, 24
    %v2241 = vpop.permute.xlu0 %2240
    %2242 = vrot.lane.b32.xlu0 %v2105, 24
    %v2243 = vpop.permute.xlu0 %2242
    %2244 = vrot.lane.b32.xlu0 %v2106, 24
    %v2245 = vpop.permute.xlu0 %2244
    %2246 = vrot.lane.b32.xlu0 %v2107, 24
    %v2247 = vpop.permute.xlu0 %2246
    %2248 = vrot.lane.b32.xlu0 %v2108, 24
    %v2249 = vpop.permute.xlu0 %2248
    %2250 = vrot.lane.b32.xlu0 %v2109, 24
    %v2251 = vpop.permute.xlu0 %2250
    %2252 = vrot.lane.b32.xlu0 %v2110, 24
    %v2253 = vpop.permute.xlu0 %2252
    %2254 = vrot.lane.b32.xlu0 %v2111, 24
    %v2255 = vpop.permute.xlu0 %2254
    %2256 = vrot.lane.b32.xlu0 %v2112, 24
    %v2257 = vpop.permute.xlu0 %2256
    %2258 = vrot.lane.b32.xlu0 %v2113, 24
    %v2259 = vpop.permute.xlu0 %2258
    %2260 = vrot.lane.b32.xlu0 %v2114, 24
    %v2261 = vpop.permute.xlu0 %2260
    %2262 = vrot.lane.b32.xlu0 %v2115, 24
    %v2263 = vpop.permute.xlu0 %2262
    %2264 = vrot.lane.b32.xlu0 %v2116, 24
    %v2265 = vpop.permute.xlu0 %2264
    %2266 = vrot.lane.b32.xlu0 %v2117, 24
    %v2267 = vpop.permute.xlu0 %2266
    %2268 = vrot.lane.b32.xlu0 %v2118, 24
    %v2269 = vpop.permute.xlu0 %2268
    %2270 = vrot.lane.b32.xlu0 %v2119, 24
    %v2271 = vpop.permute.xlu0 %2270
    %2272 = vrot.lane.b32.xlu0 %v2120, 24
    %v2273 = vpop.permute.xlu0 %2272
    %2274 = vrot.lane.b32.xlu0 %v2121, 24
    %v2275 = vpop.permute.xlu0 %2274
    %2276 = vrot.lane.b32.xlu0 %v2122, 24
    %v2277 = vpop.permute.xlu0 %2276
    %2278 = vrot.lane.b32.xlu0 %v2123, 24
    %v2279 = vpop.permute.xlu0 %2278
    %2280 = vrot.lane.b32.xlu0 %v2124, 24
    %v2281 = vpop.permute.xlu0 %2280
    %2282 = vrot.lane.b32.xlu0 %v2125, 24
    %v2283 = vpop.permute.xlu0 %2282
    %2284 = vrot.lane.b32.xlu0 %v2126, 24
    %v2285 = vpop.permute.xlu0 %2284
    %2286 = vrot.lane.b32.xlu0 %v2127, 24
    %v2287 = vpop.permute.xlu0 %2286
    %2288 = vrot.lane.b32.xlu0 %v2128, 24
    %v2289 = vpop.permute.xlu0 %2288
    %2290 = vrot.lane.b32.xlu0 %v2129, 24
    %v2291 = vpop.permute.xlu0 %2290
    %2292 = vrot.lane.b32.xlu0 %v2130, 24
    %v2293 = vpop.permute.xlu0 %2292
    %2294 = vrot.lane.b32.xlu0 %v2131, 24
    %v2295 = vpop.permute.xlu0 %2294
    %2296 = vrot.lane.b32.xlu0 %v2132, 24
    %v2297 = vpop.permute.xlu0 %2296
    %2298 = vrot.lane.b32.xlu0 %v2133, 24
    %v2299 = vpop.permute.xlu0 %2298
    %2300 = vrot.lane.b32.xlu0 %v2134, 24
    %v2301 = vpop.permute.xlu0 %2300
    %2302 = vrot.lane.b32.xlu0 %v2135, 24
    %v2303 = vpop.permute.xlu0 %2302
    %2304 = vrot.lane.b32.xlu0 %v2136, 24
    %v2305 = vpop.permute.xlu0 %2304
    %2306 = vrot.lane.b32.xlu0 %v2137, 24
    %v2307 = vpop.permute.xlu0 %2306
    %2308 = vrot.lane.b32.xlu0 %v2138, 24
    %v2309 = vpop.permute.xlu0 %2308
    %2310 = vrot.lane.b32.xlu0 %v2139, 24
    %v2311 = vpop.permute.xlu0 %2310
    %2312 = vrot.lane.b32.xlu0 %v2140, 24
    %v2313 = vpop.permute.xlu0 %2312
    %2314 = vrot.lane.b32.xlu0 %v2141, 24
    %v2315 = vpop.permute.xlu0 %2314
    %2316 = vrot.lane.b32.xlu0 %v2142, 24
    %v2317 = vpop.permute.xlu0 %2316
    %2318 = vrot.lane.b32.xlu0 %v2143, 24
    %v2319 = vpop.permute.xlu0 %2318
    %2320 = vrot.lane.b32.xlu0 %v2144, 24
    %v2321 = vpop.permute.xlu0 %2320
    %2322 = vrot.lane.b32.xlu0 %v2145, 24
    %v2323 = vpop.permute.xlu0 %2322
    %2324 = vrot.lane.b32.xlu0 %v2146, 24
    %v2325 = vpop.permute.xlu0 %2324
    %2326 = vrot.lane.b32.xlu0 %v2147, 24
    %v2327 = vpop.permute.xlu0 %2326
    %2328 = vrot.lane.b32.xlu0 %v2148, 24
    %v2329 = vpop.permute.xlu0 %2328
    %2330 = vrot.lane.b32.xlu0 %v2149, 24
    %v2331 = vpop.permute.xlu0 %2330
    %2332 = vrot.lane.b32.xlu0 %v2150, 24
    %v2333 = vpop.permute.xlu0 %2332
    %2334 = vrot.lane.b32.xlu0 %v2151, 24
    %v2335 = vpop.permute.xlu0 %2334
    %2336 = vrot.lane.b32.xlu0 %v2152, 24
    %v2337 = vpop.permute.xlu0 %2336
    %2338 = vrot.lane.b32.xlu0 %v2153, 24
    %v2339 = vpop.permute.xlu0 %2338
    %2340 = vrot.lane.b32.xlu0 %v2154, 24
    %v2341 = vpop.permute.xlu0 %2340
    %2342 = vrot.lane.b32.xlu0 %v2155, 24
    %v2343 = vpop.permute.xlu0 %2342
    %2344 = vrot.lane.b32.xlu0 %v2156, 24
    %v2345 = vpop.permute.xlu0 %2344
    %2346 = vrot.lane.b32.xlu0 %v2157, 24
    %v2347 = vpop.permute.xlu0 %2346
    %2348 = vrot.lane.b32.xlu0 %v2158, 24
    %v2349 = vpop.permute.xlu0 %2348
    %2350 = vrot.lane.b32.xlu0 %v2159, 24
    %v2351 = vpop.permute.xlu0 %2350
    %vm2416 = vcmask 228544
    %2417 = vst.msk [vmem:[#allocation2] sm:$0xff] %vm2416, %v2225
    %2418 = vst.msk [vmem:[#allocation2 + $0x8] sm:$0xff] %vm2416, %v2227
    %2419 = vst.msk [vmem:[#allocation2 + $0x10] sm:$0xff] %vm2416, %v2229
    %2420 = vst.msk [vmem:[#allocation2 + $0x18] sm:$0xff] %vm2416, %v2231
    %2421 = vst.msk [vmem:[#allocation2 + $0x20] sm:$0xff] %vm2416, %v2233
    %2422 = vst.msk [vmem:[#allocation2 + $0x28] sm:$0xff] %vm2416, %v2235
    %2423 = vst.msk [vmem:[#allocation2 + $0x30] sm:$0xff] %vm2416, %v2237
    %2424 = vst.msk [vmem:[#allocation2 + $0x38] sm:$0xff] %vm2416, %v2239
    %2425 = vst.msk [vmem:[#allocation2 + $0x40] sm:$0xff] %vm2416, %v2241
    %2426 = vst.msk [vmem:[#allocation2 + $0x48] sm:$0xff] %vm2416, %v2243
    %2427 = vst.msk [vmem:[#allocation2 + $0x50] sm:$0xff] %vm2416, %v2245
    %2428 = vst.msk [vmem:[#allocation2 + $0x58] sm:$0xff] %vm2416, %v2247
    %2429 = vst.msk [vmem:[#allocation2 + $0x60] sm:$0xff] %vm2416, %v2249
    %2430 = vst.msk [vmem:[#allocation2 + $0x68] sm:$0xff] %vm2416, %v2251
    %2431 = vst.msk [vmem:[#allocation2 + $0x70] sm:$0xff] %vm2416, %v2253
    %2432 = vst.msk [vmem:[#allocation2 + $0x78] sm:$0xff] %vm2416, %v2255
    %2433 = vst.msk [vmem:[#allocation2 + $0x80] sm:$0xff] %vm2416, %v2257
    %2434 = vst.msk [vmem:[#allocation2 + $0x88] sm:$0xff] %vm2416, %v2259
    %2435 = vst.msk [vmem:[#allocation2 + $0x90] sm:$0xff] %vm2416, %v2261
    %2436 = vst.msk [vmem:[#allocation2 + $0x98] sm:$0xff] %vm2416, %v2263
    %2437 = vst.msk [vmem:[#allocation2 + $0xa0] sm:$0xff] %vm2416, %v2265
    %2438 = vst.msk [vmem:[#allocation2 + $0xa8] sm:$0xff] %vm2416, %v2267
    %2439 = vst.msk [vmem:[#allocation2 + $0xb0] sm:$0xff] %vm2416, %v2269
    %2440 = vst.msk [vmem:[#allocation2 + $0xb8] sm:$0xff] %vm2416, %v2271
    %2441 = vst.msk [vmem:[#allocation2 + $0xc0] sm:$0xff] %vm2416, %v2273
    %2442 = vst.msk [vmem:[#allocation2 + $0xc8] sm:$0xff] %vm2416, %v2275
    %2443 = vst.msk [vmem:[#allocation2 + $0xd0] sm:$0xff] %vm2416, %v2277
    %2444 = vst.msk [vmem:[#allocation2 + $0xd8] sm:$0xff] %vm2416, %v2279
    %2445 = vst.msk [vmem:[#allocation2 + $0xe0] sm:$0xff] %vm2416, %v2281
    %2446 = vst.msk [vmem:[#allocation2 + $0xe8] sm:$0xff] %vm2416, %v2283
    %2447 = vst.msk [vmem:[#allocation2 + $0xf0] sm:$0xff] %vm2416, %v2285
    %2448 = vst.msk [vmem:[#allocation2 + $0xf8] sm:$0xff] %vm2416, %v2287
    %2449 = vst.msk [vmem:[#allocation2 + $0x100] sm:$0xff] %vm2416, %v2289
    %2450 = vst.msk [vmem:[#allocation2 + $0x108] sm:$0xff] %vm2416, %v2291
    %2451 = vst.msk [vmem:[#allocation2 + $0x110] sm:$0xff] %vm2416, %v2293
    %2452 = vst.msk [vmem:[#allocation2 + $0x118] sm:$0xff] %vm2416, %v2295
    %2453 = vst.msk [vmem:[#allocation2 + $0x120] sm:$0xff] %vm2416, %v2297
    %2454 = vst.msk [vmem:[#allocation2 + $0x128] sm:$0xff] %vm2416, %v2299
    %2455 = vst.msk [vmem:[#allocation2 + $0x130] sm:$0xff] %vm2416, %v2301
    %2456 = vst.msk [vmem:[#allocation2 + $0x138] sm:$0xff] %vm2416, %v2303
    %2457 = vst.msk [vmem:[#allocation2 + $0x140] sm:$0xff] %vm2416, %v2305
    %2458 = vst.msk [vmem:[#allocation2 + $0x148] sm:$0xff] %vm2416, %v2307
    %2459 = vst.msk [vmem:[#allocation2 + $0x150] sm:$0xff] %vm2416, %v2309
    %2460 = vst.msk [vmem:[#allocation2 + $0x158] sm:$0xff] %vm2416, %v2311
    %2461 = vst.msk [vmem:[#allocation2 + $0x160] sm:$0xff] %vm2416, %v2313
    %2462 = vst.msk [vmem:[#allocation2 + $0x168] sm:$0xff] %vm2416, %v2315
    %2463 = vst.msk [vmem:[#allocation2 + $0x170] sm:$0xff] %vm2416, %v2317
    %2464 = vst.msk [vmem:[#allocation2 + $0x178] sm:$0xff] %vm2416, %v2319
    %2465 = vst.msk [vmem:[#allocation2 + $0x180] sm:$0xff] %vm2416, %v2321
    %2466 = vst.msk [vmem:[#allocation2 + $0x188] sm:$0xff] %vm2416, %v2323
    %2467 = vst.msk [vmem:[#allocation2 + $0x190] sm:$0xff] %vm2416, %v2325
    %2468 = vst.msk [vmem:[#allocation2 + $0x198] sm:$0xff] %vm2416, %v2327
    %2469 = vst.msk [vmem:[#allocation2 + $0x1a0] sm:$0xff] %vm2416, %v2329
    %2470 = vst.msk [vmem:[#allocation2 + $0x1a8] sm:$0xff] %vm2416, %v2331
    %2471 = vst.msk [vmem:[#allocation2 + $0x1b0] sm:$0xff] %vm2416, %v2333
    %2472 = vst.msk [vmem:[#allocation2 + $0x1b8] sm:$0xff] %vm2416, %v2335
    %2473 = vst.msk [vmem:[#allocation2 + $0x1c0] sm:$0xff] %vm2416, %v2337
    %2474 = vst.msk [vmem:[#allocation2 + $0x1c8] sm:$0xff] %vm2416, %v2339
    %2475 = vst.msk [vmem:[#allocation2 + $0x1d0] sm:$0xff] %vm2416, %v2341
    %2476 = vst.msk [vmem:[#allocation2 + $0x1d8] sm:$0xff] %vm2416, %v2343
    %2477 = vst.msk [vmem:[#allocation2 + $0x1e0] sm:$0xff] %vm2416, %v2345
    %2478 = vst.msk [vmem:[#allocation2 + $0x1e8] sm:$0xff] %vm2416, %v2347
    %2479 = vst.msk [vmem:[#allocation2 + $0x1f0] sm:$0xff] %vm2416, %v2349
    %2480 = vst.msk [vmem:[#allocation2 + $0x1f8] sm:$0xff] %vm2416, %v2351
    %v2481 = vld [vmem:[%s2095 + $0x1] sm:$0xff]
    %v2482 = vld [vmem:[%s2095 + $0x9] sm:$0xff]
    %v2483 = vld [vmem:[%s2095 + $0x19] sm:$0xff]
    %v2484 = vld [vmem:[%s2095 + $0x21] sm:$0xff]
    %v2485 = vld [vmem:[%s2095 + $0x31] sm:$0xff]
    %v2486 = vld [vmem:[%s2095 + $0x39] sm:$0xff]
    %v2487 = vld [vmem:[%s2095 + $0x49] sm:$0xff]
    %v2488 = vld [vmem:[%s2095 + $0x51] sm:$0xff]
    %v2489 = vld [vmem:[%s2095 + $0x61] sm:$0xff]
    %v2490 = vld [vmem:[%s2095 + $0x69] sm:$0xff]
    %v2491 = vld [vmem:[%s2095 + $0x79] sm:$0xff]
    %v2492 = vld [vmem:[%s2095 + $0x81] sm:$0xff]
    %v2493 = vld [vmem:[%s2095 + $0x91] sm:$0xff]
    %v2494 = vld [vmem:[%s2095 + $0x99] sm:$0xff]
    %v2495 = vld [vmem:[%s2095 + $0xa9] sm:$0xff]
    %v2496 = vld [vmem:[%s2095 + $0xb1] sm:$0xff]
    %v2497 = vld [vmem:[%s2095 + $0xc1] sm:$0xff]
    %v2498 = vld [vmem:[%s2095 + $0xc9] sm:$0xff]
    %v2499 = vld [vmem:[%s2095 + $0xd9] sm:$0xff]
    %v2500 = vld [vmem:[%s2095 + $0xe1] sm:$0xff]
    %v2501 = vld [vmem:[%s2095 + $0xf1] sm:$0xff]
    %v2502 = vld [vmem:[%s2095 + $0xf9] sm:$0xff]
    %v2503 = vld [vmem:[%s2095 + $0x109] sm:$0xff]
    %v2504 = vld [vmem:[%s2095 + $0x111] sm:$0xff]
    %v2505 = vld [vmem:[%s2095 + $0x121] sm:$0xff]
    %v2506 = vld [vmem:[%s2095 + $0x129] sm:$0xff]
    %v2507 = vld [vmem:[%s2095 + $0x139] sm:$0xff]
    %v2508 = vld [vmem:[%s2095 + $0x141] sm:$0xff]
    %v2509 = vld [vmem:[%s2095 + $0x151] sm:$0xff]
    %v2510 = vld [vmem:[%s2095 + $0x159] sm:$0xff]
    %v2511 = vld [vmem:[%s2095 + $0x169] sm:$0xff]
    %v2512 = vld [vmem:[%s2095 + $0x171] sm:$0xff]
    %v2513 = vld [vmem:[%s2095 + $0x1b1] sm:$0xff]
    %v2514 = vld [vmem:[%s2095 + $0x1b9] sm:$0xff]
    %v2515 = vld [vmem:[%s2095 + $0x1c9] sm:$0xff]
    %v2516 = vld [vmem:[%s2095 + $0x1d1] sm:$0xff]
    %v2517 = vld [vmem:[%s2095 + $0x1e1] sm:$0xff]
    %v2518 = vld [vmem:[%s2095 + $0x1e9] sm:$0xff]
    %v2519 = vld [vmem:[%s2095 + $0x1f9] sm:$0xff]
    %v2520 = vld [vmem:[%s2095 + $0x201] sm:$0xff]
    %v2521 = vld [vmem:[%s2095 + $0x211] sm:$0xff]
    %v2522 = vld [vmem:[%s2095 + $0x219] sm:$0xff]
    %v2523 = vld [vmem:[%s2095 + $0x229] sm:$0xff]
    %v2524 = vld [vmem:[%s2095 + $0x231] sm:$0xff]
    %v2525 = vld [vmem:[%s2095 + $0x241] sm:$0xff]
    %v2526 = vld [vmem:[%s2095 + $0x249] sm:$0xff]
    %v2527 = vld [vmem:[%s2095 + $0x259] sm:$0xff]
    %v2528 = vld [vmem:[%s2095 + $0x261] sm:$0xff]
    %v2529 = vld [vmem:[%s2095 + $0x271] sm:$0xff]
    %v2530 = vld [vmem:[%s2095 + $0x279] sm:$0xff]
    %v2531 = vld [vmem:[%s2095 + $0x289] sm:$0xff]
    %v2532 = vld [vmem:[%s2095 + $0x291] sm:$0xff]
    %v2533 = vld [vmem:[%s2095 + $0x2a1] sm:$0xff]
    %v2534 = vld [vmem:[%s2095 + $0x2a9] sm:$0xff]
    %v2535 = vld [vmem:[%s2095 + $0x2b9] sm:$0xff]
    %v2536 = vld [vmem:[%s2095 + $0x2c1] sm:$0xff]
    %v2537 = vld [vmem:[%s2095 + $0x2d1] sm:$0xff]
    %v2538 = vld [vmem:[%s2095 + $0x2d9] sm:$0xff]
    %v2539 = vld [vmem:[%s2095 + $0x2e9] sm:$0xff]
    %v2540 = vld [vmem:[%s2095 + $0x2f1] sm:$0xff]
    %v2541 = vld [vmem:[%s2095 + $0x301] sm:$0xff]
    %v2542 = vld [vmem:[%s2095 + $0x309] sm:$0xff]
    %v2543 = vld [vmem:[%s2095 + $0x319] sm:$0xff]
    %v2544 = vld [vmem:[%s2095 + $0x321] sm:$0xff]
    %2609 = vrot.lane.b32.xlu0 %v2481, 28
    %v2610 = vpop.permute.xlu0 %2609
    %2611 = vrot.lane.b32.xlu0 %v2482, 28
    %v2612 = vpop.permute.xlu0 %2611
    %2613 = vrot.lane.b32.xlu0 %v2483, 28
    %v2614 = vpop.permute.xlu0 %2613
    %2615 = vrot.lane.b32.xlu0 %v2484, 28
    %v2616 = vpop.permute.xlu0 %2615
    %2617 = vrot.lane.b32.xlu0 %v2485, 28
    %v2618 = vpop.permute.xlu0 %2617
    %2619 = vrot.lane.b32.xlu0 %v2486, 28
    %v2620 = vpop.permute.xlu0 %2619
    %2621 = vrot.lane.b32.xlu0 %v2487, 28
    %v2622 = vpop.permute.xlu0 %2621
    %2623 = vrot.lane.b32.xlu0 %v2488, 28
    %v2624 = vpop.permute.xlu0 %2623
    %2625 = vrot.lane.b32.xlu0 %v2489, 28
    %v2626 = vpop.permute.xlu0 %2625
    %2627 = vrot.lane.b32.xlu0 %v2490, 28
    %v2628 = vpop.permute.xlu0 %2627
    %2629 = vrot.lane.b32.xlu0 %v2491, 28
    %v2630 = vpop.permute.xlu0 %2629
    %2631 = vrot.lane.b32.xlu0 %v2492, 28
    %v2632 = vpop.permute.xlu0 %2631
    %2633 = vrot.lane.b32.xlu0 %v2493, 28
    %v2634 = vpop.permute.xlu0 %2633
    %2635 = vrot.lane.b32.xlu0 %v2494, 28
    %v2636 = vpop.permute.xlu0 %2635
    %2637 = vrot.lane.b32.xlu0 %v2495, 28
    %v2638 = vpop.permute.xlu0 %2637
    %2639 = vrot.lane.b32.xlu0 %v2496, 28
    %v2640 = vpop.permute.xlu0 %2639
    %2641 = vrot.lane.b32.xlu0 %v2497, 28
    %v2642 = vpop.permute.xlu0 %2641
    %2643 = vrot.lane.b32.xlu0 %v2498, 28
    %v2644 = vpop.permute.xlu0 %2643
    %2645 = vrot.lane.b32.xlu0 %v2499, 28
    %v2646 = vpop.permute.xlu0 %2645
    %2647 = vrot.lane.b32.xlu0 %v2500, 28
    %v2648 = vpop.permute.xlu0 %2647
    %2649 = vrot.lane.b32.xlu0 %v2501, 28
    %v2650 = vpop.permute.xlu0 %2649
    %2651 = vrot.lane.b32.xlu0 %v2502, 28
    %v2652 = vpop.permute.xlu0 %2651
    %2653 = vrot.lane.b32.xlu0 %v2503, 28
    %v2654 = vpop.permute.xlu0 %2653
    %2655 = vrot.lane.b32.xlu0 %v2504, 28
    %v2656 = vpop.permute.xlu0 %2655
    %2657 = vrot.lane.b32.xlu0 %v2505, 28
    %v2658 = vpop.permute.xlu0 %2657
    %2659 = vrot.lane.b32.xlu0 %v2506, 28
    %v2660 = vpop.permute.xlu0 %2659
    %2661 = vrot.lane.b32.xlu0 %v2507, 28
    %v2662 = vpop.permute.xlu0 %2661
    %2663 = vrot.lane.b32.xlu0 %v2508, 28
    %v2664 = vpop.permute.xlu0 %2663
    %2665 = vrot.lane.b32.xlu0 %v2509, 28
    %v2666 = vpop.permute.xlu0 %2665
    %2667 = vrot.lane.b32.xlu0 %v2510, 28
    %v2668 = vpop.permute.xlu0 %2667
    %2669 = vrot.lane.b32.xlu0 %v2511, 28
    %v2670 = vpop.permute.xlu0 %2669
    %2671 = vrot.lane.b32.xlu0 %v2512, 28
    %v2672 = vpop.permute.xlu0 %2671
    %2673 = vrot.lane.b32.xlu0 %v2513, 28
    %v2674 = vpop.permute.xlu0 %2673
    %2675 = vrot.lane.b32.xlu0 %v2514, 28
    %v2676 = vpop.permute.xlu0 %2675
    %2677 = vrot.lane.b32.xlu0 %v2515, 28
    %v2678 = vpop.permute.xlu0 %2677
    %2679 = vrot.lane.b32.xlu0 %v2516, 28
    %v2680 = vpop.permute.xlu0 %2679
    %2681 = vrot.lane.b32.xlu0 %v2517, 28
    %v2682 = vpop.permute.xlu0 %2681
    %2683 = vrot.lane.b32.xlu0 %v2518, 28
    %v2684 = vpop.permute.xlu0 %2683
    %2685 = vrot.lane.b32.xlu0 %v2519, 28
    %v2686 = vpop.permute.xlu0 %2685
    %2687 = vrot.lane.b32.xlu0 %v2520, 28
    %v2688 = vpop.permute.xlu0 %2687
    %2689 = vrot.lane.b32.xlu0 %v2521, 28
    %v2690 = vpop.permute.xlu0 %2689
    %2691 = vrot.lane.b32.xlu0 %v2522, 28
    %v2692 = vpop.permute.xlu0 %2691
    %2693 = vrot.lane.b32.xlu0 %v2523, 28
    %v2694 = vpop.permute.xlu0 %2693
    %2695 = vrot.lane.b32.xlu0 %v2524, 28
    %v2696 = vpop.permute.xlu0 %2695
    %2697 = vrot.lane.b32.xlu0 %v2525, 28
    %v2698 = vpop.permute.xlu0 %2697
    %2699 = vrot.lane.b32.xlu0 %v2526, 28
    %v2700 = vpop.permute.xlu0 %2699
    %2701 = vrot.lane.b32.xlu0 %v2527, 28
    %v2702 = vpop.permute.xlu0 %2701
    %2703 = vrot.lane.b32.xlu0 %v2528, 28
    %v2704 = vpop.permute.xlu0 %2703
    %2705 = vrot.lane.b32.xlu0 %v2529, 28
    %v2706 = vpop.permute.xlu0 %2705
    %2707 = vrot.lane.b32.xlu0 %v2530, 28
    %v2708 = vpop.permute.xlu0 %2707
    %2709 = vrot.lane.b32.xlu0 %v2531, 28
    %v2710 = vpop.permute.xlu0 %2709
    %2711 = vrot.lane.b32.xlu0 %v2532, 28
    %v2712 = vpop.permute.xlu0 %2711
    %2713 = vrot.lane.b32.xlu0 %v2533, 28
    %v2714 = vpop.permute.xlu0 %2713
    %2715 = vrot.lane.b32.xlu0 %v2534, 28
    %v2716 = vpop.permute.xlu0 %2715
    %2717 = vrot.lane.b32.xlu0 %v2535, 28
    %v2718 = vpop.permute.xlu0 %2717
    %2719 = vrot.lane.b32.xlu0 %v2536, 28
    %v2720 = vpop.permute.xlu0 %2719
    %2721 = vrot.lane.b32.xlu0 %v2537, 28
    %v2722 = vpop.permute.xlu0 %2721
    %2723 = vrot.lane.b32.xlu0 %v2538, 28
    %v2724 = vpop.permute.xlu0 %2723
    %2725 = vrot.lane.b32.xlu0 %v2539, 28
    %v2726 = vpop.permute.xlu0 %2725
    %2727 = vrot.lane.b32.xlu0 %v2540, 28
    %v2728 = vpop.permute.xlu0 %2727
    %2729 = vrot.lane.b32.xlu0 %v2541, 28
    %v2730 = vpop.permute.xlu0 %2729
    %2731 = vrot.lane.b32.xlu0 %v2542, 28
    %v2732 = vpop.permute.xlu0 %2731
    %2733 = vrot.lane.b32.xlu0 %v2543, 28
    %v2734 = vpop.permute.xlu0 %2733
    %2735 = vrot.lane.b32.xlu0 %v2544, 28
    %v2736 = vpop.permute.xlu0 %2735
    %vm2801 = vcmask 261344
    %2802 = vst.msk [vmem:[#allocation2] sm:$0xff] %vm2801, %v2610
    %2803 = vst.msk [vmem:[#allocation2 + $0x8] sm:$0xff] %vm2801, %v2612
    %2804 = vst.msk [vmem:[#allocation2 + $0x10] sm:$0xff] %vm2801, %v2614
    %2805 = vst.msk [vmem:[#allocation2 + $0x18] sm:$0xff] %vm2801, %v2616
    %2806 = vst.msk [vmem:[#allocation2 + $0x20] sm:$0xff] %vm2801, %v2618
    %2807 = vst.msk [vmem:[#allocation2 + $0x28] sm:$0xff] %vm2801, %v2620
    %2808 = vst.msk [vmem:[#allocation2 + $0x30] sm:$0xff] %vm2801, %v2622
    %2809 = vst.msk [vmem:[#allocation2 + $0x38] sm:$0xff] %vm2801, %v2624
    %2810 = vst.msk [vmem:[#allocation2 + $0x40] sm:$0xff] %vm2801, %v2626
    %2811 = vst.msk [vmem:[#allocation2 + $0x48] sm:$0xff] %vm2801, %v2628
    %2812 = vst.msk [vmem:[#allocation2 + $0x50] sm:$0xff] %vm2801, %v2630
    %2813 = vst.msk [vmem:[#allocation2 + $0x58] sm:$0xff] %vm2801, %v2632
    %2814 = vst.msk [vmem:[#allocation2 + $0x60] sm:$0xff] %vm2801, %v2634
    %2815 = vst.msk [vmem:[#allocation2 + $0x68] sm:$0xff] %vm2801, %v2636
    %2816 = vst.msk [vmem:[#allocation2 + $0x70] sm:$0xff] %vm2801, %v2638
    %2817 = vst.msk [vmem:[#allocation2 + $0x78] sm:$0xff] %vm2801, %v2640
    %2818 = vst.msk [vmem:[#allocation2 + $0x80] sm:$0xff] %vm2801, %v2642
    %2819 = vst.msk [vmem:[#allocation2 + $0x88] sm:$0xff] %vm2801, %v2644
    %2820 = vst.msk [vmem:[#allocation2 + $0x90] sm:$0xff] %vm2801, %v2646
    %2821 = vst.msk [vmem:[#allocation2 + $0x98] sm:$0xff] %vm2801, %v2648
    %2822 = vst.msk [vmem:[#allocation2 + $0xa0] sm:$0xff] %vm2801, %v2650
    %2823 = vst.msk [vmem:[#allocation2 + $0xa8] sm:$0xff] %vm2801, %v2652
    %2824 = vst.msk [vmem:[#allocation2 + $0xb0] sm:$0xff] %vm2801, %v2654
    %2825 = vst.msk [vmem:[#allocation2 + $0xb8] sm:$0xff] %vm2801, %v2656
    %2826 = vst.msk [vmem:[#allocation2 + $0xc0] sm:$0xff] %vm2801, %v2658
    %2827 = vst.msk [vmem:[#allocation2 + $0xc8] sm:$0xff] %vm2801, %v2660
    %2828 = vst.msk [vmem:[#allocation2 + $0xd0] sm:$0xff] %vm2801, %v2662
    %2829 = vst.msk [vmem:[#allocation2 + $0xd8] sm:$0xff] %vm2801, %v2664
    %2830 = vst.msk [vmem:[#allocation2 + $0xe0] sm:$0xff] %vm2801, %v2666
    %2831 = vst.msk [vmem:[#allocation2 + $0xe8] sm:$0xff] %vm2801, %v2668
    %2832 = vst.msk [vmem:[#allocation2 + $0xf0] sm:$0xff] %vm2801, %v2670
    %2833 = vst.msk [vmem:[#allocation2 + $0xf8] sm:$0xff] %vm2801, %v2672
    %2834 = vst.msk [vmem:[#allocation2 + $0x100] sm:$0xff] %vm2801, %v2674
    %2835 = vst.msk [vmem:[#allocation2 + $0x108] sm:$0xff] %vm2801, %v2676
    %2836 = vst.msk [vmem:[#allocation2 + $0x110] sm:$0xff] %vm2801, %v2678
    %2837 = vst.msk [vmem:[#allocation2 + $0x118] sm:$0xff] %vm2801, %v2680
    %2838 = vst.msk [vmem:[#allocation2 + $0x120] sm:$0xff] %vm2801, %v2682
    %2839 = vst.msk [vmem:[#allocation2 + $0x128] sm:$0xff] %vm2801, %v2684
    %2840 = vst.msk [vmem:[#allocation2 + $0x130] sm:$0xff] %vm2801, %v2686
    %2841 = vst.msk [vmem:[#allocation2 + $0x138] sm:$0xff] %vm2801, %v2688
    %2842 = vst.msk [vmem:[#allocation2 + $0x140] sm:$0xff] %vm2801, %v2690
    %2843 = vst.msk [vmem:[#allocation2 + $0x148] sm:$0xff] %vm2801, %v2692
    %2844 = vst.msk [vmem:[#allocation2 + $0x150] sm:$0xff] %vm2801, %v2694
    %2845 = vst.msk [vmem:[#allocation2 + $0x158] sm:$0xff] %vm2801, %v2696
    %2846 = vst.msk [vmem:[#allocation2 + $0x160] sm:$0xff] %vm2801, %v2698
    %2847 = vst.msk [vmem:[#allocation2 + $0x168] sm:$0xff] %vm2801, %v2700
    %2848 = vst.msk [vmem:[#allocation2 + $0x170] sm:$0xff] %vm2801, %v2702
    %2849 = vst.msk [vmem:[#allocation2 + $0x178] sm:$0xff] %vm2801, %v2704
    %2850 = vst.msk [vmem:[#allocation2 + $0x180] sm:$0xff] %vm2801, %v2706
    %2851 = vst.msk [vmem:[#allocation2 + $0x188] sm:$0xff] %vm2801, %v2708
    %2852 = vst.msk [vmem:[#allocation2 + $0x190] sm:$0xff] %vm2801, %v2710
    %2853 = vst.msk [vmem:[#allocation2 + $0x198] sm:$0xff] %vm2801, %v2712
    %2854 = vst.msk [vmem:[#allocation2 + $0x1a0] sm:$0xff] %vm2801, %v2714
    %2855 = vst.msk [vmem:[#allocation2 + $0x1a8] sm:$0xff] %vm2801, %v2716
    %2856 = vst.msk [vmem:[#allocation2 + $0x1b0] sm:$0xff] %vm2801, %v2718
    %2857 = vst.msk [vmem:[#allocation2 + $0x1b8] sm:$0xff] %vm2801, %v2720
    %2858 = vst.msk [vmem:[#allocation2 + $0x1c0] sm:$0xff] %vm2801, %v2722
    %2859 = vst.msk [vmem:[#allocation2 + $0x1c8] sm:$0xff] %vm2801, %v2724
    %2860 = vst.msk [vmem:[#allocation2 + $0x1d0] sm:$0xff] %vm2801, %v2726
    %2861 = vst.msk [vmem:[#allocation2 + $0x1d8] sm:$0xff] %vm2801, %v2728
    %2862 = vst.msk [vmem:[#allocation2 + $0x1e0] sm:$0xff] %vm2801, %v2730
    %2863 = vst.msk [vmem:[#allocation2 + $0x1e8] sm:$0xff] %vm2801, %v2732
    %2864 = vst.msk [vmem:[#allocation2 + $0x1f0] sm:$0xff] %vm2801, %v2734
    %2865 = vst.msk [vmem:[#allocation2 + $0x1f8] sm:$0xff] %vm2801, %v2736
    %v2866 = vld [vmem:[%s2095 + $0x2] sm:$0xff]
    %v2867 = vld [vmem:[%s2095 + $0xa] sm:$0xff]
    %v2868 = vld [vmem:[%s2095 + $0x1a] sm:$0xff]
    %v2869 = vld [vmem:[%s2095 + $0x22] sm:$0xff]
    %v2870 = vld [vmem:[%s2095 + $0x32] sm:$0xff]
    %v2871 = vld [vmem:[%s2095 + $0x3a] sm:$0xff]
    %v2872 = vld [vmem:[%s2095 + $0x4a] sm:$0xff]
    %v2873 = vld [vmem:[%s2095 + $0x52] sm:$0xff]
    %v2874 = vld [vmem:[%s2095 + $0x62] sm:$0xff]
    %v2875 = vld [vmem:[%s2095 + $0x6a] sm:$0xff]
    %v2876 = vld [vmem:[%s2095 + $0x7a] sm:$0xff]
    %v2877 = vld [vmem:[%s2095 + $0x82] sm:$0xff]
    %v2878 = vld [vmem:[%s2095 + $0x92] sm:$0xff]
    %v2879 = vld [vmem:[%s2095 + $0x9a] sm:$0xff]
    %v2880 = vld [vmem:[%s2095 + $0xaa] sm:$0xff]
    %v2881 = vld [vmem:[%s2095 + $0xb2] sm:$0xff]
    %v2882 = vld [vmem:[%s2095 + $0xc2] sm:$0xff]
    %v2883 = vld [vmem:[%s2095 + $0xca] sm:$0xff]
    %v2884 = vld [vmem:[%s2095 + $0xda] sm:$0xff]
    %v2885 = vld [vmem:[%s2095 + $0xe2] sm:$0xff]
    %v2886 = vld [vmem:[%s2095 + $0xf2] sm:$0xff]
    %v2887 = vld [vmem:[%s2095 + $0xfa] sm:$0xff]
    %v2888 = vld [vmem:[%s2095 + $0x10a] sm:$0xff]
    %v2889 = vld [vmem:[%s2095 + $0x112] sm:$0xff]
    %v2890 = vld [vmem:[%s2095 + $0x122] sm:$0xff]
    %v2891 = vld [vmem:[%s2095 + $0x12a] sm:$0xff]
    %v2892 = vld [vmem:[%s2095 + $0x13a] sm:$0xff]
    %v2893 = vld [vmem:[%s2095 + $0x142] sm:$0xff]
    %v2894 = vld [vmem:[%s2095 + $0x152] sm:$0xff]
    %v2895 = vld [vmem:[%s2095 + $0x15a] sm:$0xff]
    %v2896 = vld [vmem:[%s2095 + $0x16a] sm:$0xff]
    %v2897 = vld [vmem:[%s2095 + $0x172] sm:$0xff]
    %v2898 = vld [vmem:[%s2095 + $0x1b2] sm:$0xff]
    %v2899 = vld [vmem:[%s2095 + $0x1ba] sm:$0xff]
    %v2900 = vld [vmem:[%s2095 + $0x1ca] sm:$0xff]
    %v2901 = vld [vmem:[%s2095 + $0x1d2] sm:$0xff]
    %v2902 = vld [vmem:[%s2095 + $0x1e2] sm:$0xff]
    %v2903 = vld [vmem:[%s2095 + $0x1ea] sm:$0xff]
    %v2904 = vld [vmem:[%s2095 + $0x1fa] sm:$0xff]
    %v2905 = vld [vmem:[%s2095 + $0x202] sm:$0xff]
    %v2906 = vld [vmem:[%s2095 + $0x212] sm:$0xff]
    %v2907 = vld [vmem:[%s2095 + $0x21a] sm:$0xff]
    %v2908 = vld [vmem:[%s2095 + $0x22a] sm:$0xff]
    %v2909 = vld [vmem:[%s2095 + $0x232] sm:$0xff]
    %v2910 = vld [vmem:[%s2095 + $0x242] sm:$0xff]
    %v2911 = vld [vmem:[%s2095 + $0x24a] sm:$0xff]
    %v2912 = vld [vmem:[%s2095 + $0x25a] sm:$0xff]
    %v2913 = vld [vmem:[%s2095 + $0x262] sm:$0xff]
    %v2914 = vld [vmem:[%s2095 + $0x272] sm:$0xff]
    %v2915 = vld [vmem:[%s2095 + $0x27a] sm:$0xff]
    %v2916 = vld [vmem:[%s2095 + $0x28a] sm:$0xff]
    %v2917 = vld [vmem:[%s2095 + $0x292] sm:$0xff]
    %v2918 = vld [vmem:[%s2095 + $0x2a2] sm:$0xff]
    %v2919 = vld [vmem:[%s2095 + $0x2aa] sm:$0xff]
    %v2920 = vld [vmem:[%s2095 + $0x2ba] sm:$0xff]
    %v2921 = vld [vmem:[%s2095 + $0x2c2] sm:$0xff]
    %v2922 = vld [vmem:[%s2095 + $0x2d2] sm:$0xff]
    %v2923 = vld [vmem:[%s2095 + $0x2da] sm:$0xff]
    %v2924 = vld [vmem:[%s2095 + $0x2ea] sm:$0xff]
    %v2925 = vld [vmem:[%s2095 + $0x2f2] sm:$0xff]
    %v2926 = vld [vmem:[%s2095 + $0x302] sm:$0xff]
    %v2927 = vld [vmem:[%s2095 + $0x30a] sm:$0xff]
    %v2928 = vld [vmem:[%s2095 + $0x31a] sm:$0xff]
    %v2929 = vld [vmem:[%s2095 + $0x322] sm:$0xff]
    %2994 = vrot.lane.b32.xlu0 %v2866, 32
    %v2995 = vpop.permute.xlu0 %2994
    %2996 = vrot.lane.b32.xlu0 %v2867, 32
    %v2997 = vpop.permute.xlu0 %2996
    %2998 = vrot.lane.b32.xlu0 %v2868, 32
    %v2999 = vpop.permute.xlu0 %2998
    %3000 = vrot.lane.b32.xlu0 %v2869, 32
    %v3001 = vpop.permute.xlu0 %3000
    %3002 = vrot.lane.b32.xlu0 %v2870, 32
    %v3003 = vpop.permute.xlu0 %3002
    %3004 = vrot.lane.b32.xlu0 %v2871, 32
    %v3005 = vpop.permute.xlu0 %3004
    %3006 = vrot.lane.b32.xlu0 %v2872, 32
    %v3007 = vpop.permute.xlu0 %3006
    %3008 = vrot.lane.b32.xlu0 %v2873, 32
    %v3009 = vpop.permute.xlu0 %3008
    %3010 = vrot.lane.b32.xlu0 %v2874, 32
    %v3011 = vpop.permute.xlu0 %3010
    %3012 = vrot.lane.b32.xlu0 %v2875, 32
    %v3013 = vpop.permute.xlu0 %3012
    %3014 = vrot.lane.b32.xlu0 %v2876, 32
    %v3015 = vpop.permute.xlu0 %3014
    %3016 = vrot.lane.b32.xlu0 %v2877, 32
    %v3017 = vpop.permute.xlu0 %3016
    %3018 = vrot.lane.b32.xlu0 %v2878, 32
    %v3019 = vpop.permute.xlu0 %3018
    %3020 = vrot.lane.b32.xlu0 %v2879, 32
    %v3021 = vpop.permute.xlu0 %3020
    %3022 = vrot.lane.b32.xlu0 %v2880, 32
    %v3023 = vpop.permute.xlu0 %3022
    %3024 = vrot.lane.b32.xlu0 %v2881, 32
    %v3025 = vpop.permute.xlu0 %3024
    %3026 = vrot.lane.b32.xlu0 %v2882, 32
    %v3027 = vpop.permute.xlu0 %3026
    %3028 = vrot.lane.b32.xlu0 %v2883, 32
    %v3029 = vpop.permute.xlu0 %3028
    %3030 = vrot.lane.b32.xlu0 %v2884, 32
    %v3031 = vpop.permute.xlu0 %3030
    %3032 = vrot.lane.b32.xlu0 %v2885, 32
    %v3033 = vpop.permute.xlu0 %3032
    %3034 = vrot.lane.b32.xlu0 %v2886, 32
    %v3035 = vpop.permute.xlu0 %3034
    %3036 = vrot.lane.b32.xlu0 %v2887, 32
    %v3037 = vpop.permute.xlu0 %3036
    %3038 = vrot.lane.b32.xlu0 %v2888, 32
    %v3039 = vpop.permute.xlu0 %3038
    %3040 = vrot.lane.b32.xlu0 %v2889, 32
    %v3041 = vpop.permute.xlu0 %3040
    %3042 = vrot.lane.b32.xlu0 %v2890, 32
    %v3043 = vpop.permute.xlu0 %3042
    %3044 = vrot.lane.b32.xlu0 %v2891, 32
    %v3045 = vpop.permute.xlu0 %3044
    %3046 = vrot.lane.b32.xlu0 %v2892, 32
    %v3047 = vpop.permute.xlu0 %3046
    %3048 = vrot.lane.b32.xlu0 %v2893, 32
    %v3049 = vpop.permute.xlu0 %3048
    %3050 = vrot.lane.b32.xlu0 %v2894, 32
    %v3051 = vpop.permute.xlu0 %3050
    %3052 = vrot.lane.b32.xlu0 %v2895, 32
    %v3053 = vpop.permute.xlu0 %3052
    %3054 = vrot.lane.b32.xlu0 %v2896, 32
    %v3055 = vpop.permute.xlu0 %3054
    %3056 = vrot.lane.b32.xlu0 %v2897, 32
    %v3057 = vpop.permute.xlu0 %3056
    %3058 = vrot.lane.b32.xlu0 %v2898, 32
    %v3059 = vpop.permute.xlu0 %3058
    %3060 = vrot.lane.b32.xlu0 %v2899, 32
    %v3061 = vpop.permute.xlu0 %3060
    %3062 = vrot.lane.b32.xlu0 %v2900, 32
    %v3063 = vpop.permute.xlu0 %3062
    %3064 = vrot.lane.b32.xlu0 %v2901, 32
    %v3065 = vpop.permute.xlu0 %3064
    %3066 = vrot.lane.b32.xlu0 %v2902, 32
    %v3067 = vpop.permute.xlu0 %3066
    %3068 = vrot.lane.b32.xlu0 %v2903, 32
    %v3069 = vpop.permute.xlu0 %3068
    %3070 = vrot.lane.b32.xlu0 %v2904, 32
    %v3071 = vpop.permute.xlu0 %3070
    %3072 = vrot.lane.b32.xlu0 %v2905, 32
    %v3073 = vpop.permute.xlu0 %3072
    %3074 = vrot.lane.b32.xlu0 %v2906, 32
    %v3075 = vpop.permute.xlu0 %3074
    %3076 = vrot.lane.b32.xlu0 %v2907, 32
    %v3077 = vpop.permute.xlu0 %3076
    %3078 = vrot.lane.b32.xlu0 %v2908, 32
    %v3079 = vpop.permute.xlu0 %3078
    %3080 = vrot.lane.b32.xlu0 %v2909, 32
    %v3081 = vpop.permute.xlu0 %3080
    %3082 = vrot.lane.b32.xlu0 %v2910, 32
    %v3083 = vpop.permute.xlu0 %3082
    %3084 = vrot.lane.b32.xlu0 %v2911, 32
    %v3085 = vpop.permute.xlu0 %3084
    %3086 = vrot.lane.b32.xlu0 %v2912, 32
    %v3087 = vpop.permute.xlu0 %3086
    %3088 = vrot.lane.b32.xlu0 %v2913, 32
    %v3089 = vpop.permute.xlu0 %3088
    %3090 = vrot.lane.b32.xlu0 %v2914, 32
    %v3091 = vpop.permute.xlu0 %3090
    %3092 = vrot.lane.b32.xlu0 %v2915, 32
    %v3093 = vpop.permute.xlu0 %3092
    %3094 = vrot.lane.b32.xlu0 %v2916, 32
    %v3095 = vpop.permute.xlu0 %3094
    %3096 = vrot.lane.b32.xlu0 %v2917, 32
    %v3097 = vpop.permute.xlu0 %3096
    %3098 = vrot.lane.b32.xlu0 %v2918, 32
    %v3099 = vpop.permute.xlu0 %3098
    %3100 = vrot.lane.b32.xlu0 %v2919, 32
    %v3101 = vpop.permute.xlu0 %3100
    %3102 = vrot.lane.b32.xlu0 %v2920, 32
    %v3103 = vpop.permute.xlu0 %3102
    %3104 = vrot.lane.b32.xlu0 %v2921, 32
    %v3105 = vpop.permute.xlu0 %3104
    %3106 = vrot.lane.b32.xlu0 %v2922, 32
    %v3107 = vpop.permute.xlu0 %3106
    %3108 = vrot.lane.b32.xlu0 %v2923, 32
    %v3109 = vpop.permute.xlu0 %3108
    %3110 = vrot.lane.b32.xlu0 %v2924, 32
    %v3111 = vpop.permute.xlu0 %3110
    %3112 = vrot.lane.b32.xlu0 %v2925, 32
    %v3113 = vpop.permute.xlu0 %3112
    %3114 = vrot.lane.b32.xlu0 %v2926, 32
    %v3115 = vpop.permute.xlu0 %3114
    %3116 = vrot.lane.b32.xlu0 %v2927, 32
    %v3117 = vpop.permute.xlu0 %3116
    %3118 = vrot.lane.b32.xlu0 %v2928, 32
    %v3119 = vpop.permute.xlu0 %3118
    %3120 = vrot.lane.b32.xlu0 %v2929, 32
    %v3121 = vpop.permute.xlu0 %3120
    %vm3186 = vcmask 294144
    %3187 = vst.msk [vmem:[#allocation2] sm:$0xff] %vm3186, %v2995
    %3188 = vst.msk [vmem:[#allocation2 + $0x8] sm:$0xff] %vm3186, %v2997
    %3189 = vst.msk [vmem:[#allocation2 + $0x10] sm:$0xff] %vm3186, %v2999
    %3190 = vst.msk [vmem:[#allocation2 + $0x18] sm:$0xff] %vm3186, %v3001
    %3191 = vst.msk [vmem:[#allocation2 + $0x20] sm:$0xff] %vm3186, %v3003
    %3192 = vst.msk [vmem:[#allocation2 + $0x28] sm:$0xff] %vm3186, %v3005
    %3193 = vst.msk [vmem:[#allocation2 + $0x30] sm:$0xff] %vm3186, %v3007
    %3194 = vst.msk [vmem:[#allocation2 + $0x38] sm:$0xff] %vm3186, %v3009
    %3195 = vst.msk [vmem:[#allocation2 + $0x40] sm:$0xff] %vm3186, %v3011
    %3196 = vst.msk [vmem:[#allocation2 + $0x48] sm:$0xff] %vm3186, %v3013
    %3197 = vst.msk [vmem:[#allocation2 + $0x50] sm:$0xff] %vm3186, %v3015
    %3198 = vst.msk [vmem:[#allocation2 + $0x58] sm:$0xff] %vm3186, %v3017
    %3199 = vst.msk [vmem:[#allocation2 + $0x60] sm:$0xff] %vm3186, %v3019
    %3200 = vst.msk [vmem:[#allocation2 + $0x68] sm:$0xff] %vm3186, %v3021
    %3201 = vst.msk [vmem:[#allocation2 + $0x70] sm:$0xff] %vm3186, %v3023
    %3202 = vst.msk [vmem:[#allocation2 + $0x78] sm:$0xff] %vm3186, %v3025
    %3203 = vst.msk [vmem:[#allocation2 + $0x80] sm:$0xff] %vm3186, %v3027
    %3204 = vst.msk [vmem:[#allocation2 + $0x88] sm:$0xff] %vm3186, %v3029
    %3205 = vst.msk [vmem:[#allocation2 + $0x90] sm:$0xff] %vm3186, %v3031
    %3206 = vst.msk [vmem:[#allocation2 + $0x98] sm:$0xff] %vm3186, %v3033
    %3207 = vst.msk [vmem:[#allocation2 + $0xa0] sm:$0xff] %vm3186, %v3035
    %3208 = vst.msk [vmem:[#allocation2 + $0xa8] sm:$0xff] %vm3186, %v3037
    %3209 = vst.msk [vmem:[#allocation2 + $0xb0] sm:$0xff] %vm3186, %v3039
    %3210 = vst.msk [vmem:[#allocation2 + $0xb8] sm:$0xff] %vm3186, %v3041
    %3211 = vst.msk [vmem:[#allocation2 + $0xc0] sm:$0xff] %vm3186, %v3043
    %3212 = vst.msk [vmem:[#allocation2 + $0xc8] sm:$0xff] %vm3186, %v3045
    %3213 = vst.msk [vmem:[#allocation2 + $0xd0] sm:$0xff] %vm3186, %v3047
    %3214 = vst.msk [vmem:[#allocation2 + $0xd8] sm:$0xff] %vm3186, %v3049
    %3215 = vst.msk [vmem:[#allocation2 + $0xe0] sm:$0xff] %vm3186, %v3051
    %3216 = vst.msk [vmem:[#allocation2 + $0xe8] sm:$0xff] %vm3186, %v3053
    %3217 = vst.msk [vmem:[#allocation2 + $0xf0] sm:$0xff] %vm3186, %v3055
    %3218 = vst.msk [vmem:[#allocation2 + $0xf8] sm:$0xff] %vm3186, %v3057
    %3219 = vst.msk [vmem:[#allocation2 + $0x100] sm:$0xff] %vm3186, %v3059
    %3220 = vst.msk [vmem:[#allocation2 + $0x108] sm:$0xff] %vm3186, %v3061
    %3221 = vst.msk [vmem:[#allocation2 + $0x110] sm:$0xff] %vm3186, %v3063
    %3222 = vst.msk [vmem:[#allocation2 + $0x118] sm:$0xff] %vm3186, %v3065
    %3223 = vst.msk [vmem:[#allocation2 + $0x120] sm:$0xff] %vm3186, %v3067
    %3224 = vst.msk [vmem:[#allocation2 + $0x128] sm:$0xff] %vm3186, %v3069
    %3225 = vst.msk [vmem:[#allocation2 + $0x130] sm:$0xff] %vm3186, %v3071
    %3226 = vst.msk [vmem:[#allocation2 + $0x138] sm:$0xff] %vm3186, %v3073
    %3227 = vst.msk [vmem:[#allocation2 + $0x140] sm:$0xff] %vm3186, %v3075
    %3228 = vst.msk [vmem:[#allocation2 + $0x148] sm:$0xff] %vm3186, %v3077
    %3229 = vst.msk [vmem:[#allocation2 + $0x150] sm:$0xff] %vm3186, %v3079
    %3230 = vst.msk [vmem:[#allocation2 + $0x158] sm:$0xff] %vm3186, %v3081
    %3231 = vst.msk [vmem:[#allocation2 + $0x160] sm:$0xff] %vm3186, %v3083
    %3232 = vst.msk [vmem:[#allocation2 + $0x168] sm:$0xff] %vm3186, %v3085
    %3233 = vst.msk [vmem:[#allocation2 + $0x170] sm:$0xff] %vm3186, %v3087
    %3234 = vst.msk [vmem:[#allocation2 + $0x178] sm:$0xff] %vm3186, %v3089
    %3235 = vst.msk [vmem:[#allocation2 + $0x180] sm:$0xff] %vm3186, %v3091
    %3236 = vst.msk [vmem:[#allocation2 + $0x188] sm:$0xff] %vm3186, %v3093
    %3237 = vst.msk [vmem:[#allocation2 + $0x190] sm:$0xff] %vm3186, %v3095
    %3238 = vst.msk [vmem:[#allocation2 + $0x198] sm:$0xff] %vm3186, %v3097
    %3239 = vst.msk [vmem:[#allocation2 + $0x1a0] sm:$0xff] %vm3186, %v3099
    %3240 = vst.msk [vmem:[#allocation2 + $0x1a8] sm:$0xff] %vm3186, %v3101
    %3241 = vst.msk [vmem:[#allocation2 + $0x1b0] sm:$0xff] %vm3186, %v3103
    %3242 = vst.msk [vmem:[#allocation2 + $0x1b8] sm:$0xff] %vm3186, %v3105
    %3243 = vst.msk [vmem:[#allocation2 + $0x1c0] sm:$0xff] %vm3186, %v3107
    %3244 = vst.msk [vmem:[#allocation2 + $0x1c8] sm:$0xff] %vm3186, %v3109
    %3245 = vst.msk [vmem:[#allocation2 + $0x1d0] sm:$0xff] %vm3186, %v3111
    %3246 = vst.msk [vmem:[#allocation2 + $0x1d8] sm:$0xff] %vm3186, %v3113
    %3247 = vst.msk [vmem:[#allocation2 + $0x1e0] sm:$0xff] %vm3186, %v3115
    %3248 = vst.msk [vmem:[#allocation2 + $0x1e8] sm:$0xff] %vm3186, %v3117
    %3249 = vst.msk [vmem:[#allocation2 + $0x1f0] sm:$0xff] %vm3186, %v3119
    %3250 = vst.msk [vmem:[#allocation2 + $0x1f8] sm:$0xff] %vm3186, %v3121
    %v3251 = vld [vmem:[#allocation2] sm:$0xff]
    %v3252 = vld [vmem:[#allocation2 + $0x8] sm:$0xff]
    %v3253 = vld [vmem:[#allocation2 + $0x10] sm:$0xff]
    %v3254 = vld [vmem:[#allocation2 + $0x18] sm:$0xff]
    %v3255 = vld [vmem:[#allocation2 + $0x20] sm:$0xff]
    %v3256 = vld [vmem:[#allocation2 + $0x28] sm:$0xff]
    %v3257 = vld [vmem:[#allocation2 + $0x30] sm:$0xff]
    %v3258 = vld [vmem:[#allocation2 + $0x38] sm:$0xff]
    %v3259 = vld [vmem:[#allocation2 + $0x40] sm:$0xff]
    %v3260 = vld [vmem:[#allocation2 + $0x48] sm:$0xff]
    %v3261 = vld [vmem:[#allocation2 + $0x50] sm:$0xff]
    %v3262 = vld [vmem:[#allocation2 + $0x58] sm:$0xff]
    %v3263 = vld [vmem:[#allocation2 + $0x60] sm:$0xff]
    %v3264 = vld [vmem:[#allocation2 + $0x68] sm:$0xff]
    %v3265 = vld [vmem:[#allocation2 + $0x70] sm:$0xff]
    %v3266 = vld [vmem:[#allocation2 + $0x78] sm:$0xff]
    %v3267 = vld [vmem:[#allocation2 + $0x80] sm:$0xff]
    %v3268 = vld [vmem:[#allocation2 + $0x88] sm:$0xff]
    %v3269 = vld [vmem:[#allocation2 + $0x90] sm:$0xff]
    %v3270 = vld [vmem:[#allocation2 + $0x98] sm:$0xff]
    %v3271 = vld [vmem:[#allocation2 + $0xa0] sm:$0xff]
    %v3272 = vld [vmem:[#allocation2 + $0xa8] sm:$0xff]
    %v3273 = vld [vmem:[#allocation2 + $0xb0] sm:$0xff]
    %v3274 = vld [vmem:[#allocation2 + $0xb8] sm:$0xff]
    %v3275 = vld [vmem:[#allocation2 + $0xc0] sm:$0xff]
    %v3276 = vld [vmem:[#allocation2 + $0xc8] sm:$0xff]
    %v3277 = vld [vmem:[#allocation2 + $0xd0] sm:$0xff]
    %v3278 = vld [vmem:[#allocation2 + $0xd8] sm:$0xff]
    %v3279 = vld [vmem:[#allocation2 + $0xe0] sm:$0xff]
    %v3280 = vld [vmem:[#allocation2 + $0xe8] sm:$0xff]
    %v3281 = vld [vmem:[#allocation2 + $0xf0] sm:$0xff]
    %v3282 = vld [vmem:[#allocation2 + $0xf8] sm:$0xff]
    %v3283 = vld [vmem:[#allocation2 + $0x100] sm:$0xff]
    %v3284 = vld [vmem:[#allocation2 + $0x108] sm:$0xff]
    %v3285 = vld [vmem:[#allocation2 + $0x110] sm:$0xff]
    %v3286 = vld [vmem:[#allocation2 + $0x118] sm:$0xff]
    %v3287 = vld [vmem:[#allocation2 + $0x120] sm:$0xff]
    %v3288 = vld [vmem:[#allocation2 + $0x128] sm:$0xff]
    %v3289 = vld [vmem:[#allocation2 + $0x130] sm:$0xff]
    %v3290 = vld [vmem:[#allocation2 + $0x138] sm:$0xff]
    %v3291 = vld [vmem:[#allocation2 + $0x140] sm:$0xff]
    %v3292 = vld [vmem:[#allocation2 + $0x148] sm:$0xff]
    %v3293 = vld [vmem:[#allocation2 + $0x150] sm:$0xff]
    %v3294 = vld [vmem:[#allocation2 + $0x158] sm:$0xff]
    %v3295 = vld [vmem:[#allocation2 + $0x160] sm:$0xff]
    %v3296 = vld [vmem:[#allocation2 + $0x168] sm:$0xff]
    %v3297 = vld [vmem:[#allocation2 + $0x170] sm:$0xff]
    %v3298 = vld [vmem:[#allocation2 + $0x178] sm:$0xff]
    %v3299 = vld [vmem:[#allocation2 + $0x180] sm:$0xff]
    %v3300 = vld [vmem:[#allocation2 + $0x188] sm:$0xff]
    %v3301 = vld [vmem:[#allocation2 + $0x190] sm:$0xff]
    %v3302 = vld [vmem:[#allocation2 + $0x198] sm:$0xff]
    %v3303 = vld [vmem:[#allocation2 + $0x1a0] sm:$0xff]
    %v3304 = vld [vmem:[#allocation2 + $0x1a8] sm:$0xff]
    %v3305 = vld [vmem:[#allocation2 + $0x1b0] sm:$0xff]
    %v3306 = vld [vmem:[#allocation2 + $0x1b8] sm:$0xff]
    %v3307 = vld [vmem:[#allocation2 + $0x1c0] sm:$0xff]
    %v3308 = vld [vmem:[#allocation2 + $0x1c8] sm:$0xff]
    %v3309 = vld [vmem:[#allocation2 + $0x1d0] sm:$0xff]
    %v3310 = vld [vmem:[#allocation2 + $0x1d8] sm:$0xff]
    %v3311 = vld [vmem:[#allocation2 + $0x1e0] sm:$0xff]
    %v3312 = vld [vmem:[#allocation2 + $0x1e8] sm:$0xff]
    %v3313 = vld [vmem:[#allocation2 + $0x1f0] sm:$0xff]
    %v3314 = vld [vmem:[#allocation2 + $0x1f8] sm:$0xff]
    %v3315 = vld [vmem:[%s3] sm:$0xff]
    %3317 = vset.pattern.permute.xlu0 0
    %3318 = vperm.xlu0 %3317, %v3315
    %v3319 = vpop.permute.xlu0 %3318
    %v3322 = vsel %vm20, %v39, 0
    %v3325 = vsel %vm20, %v3251, 0
    %v3328 = vsel %vm20, %v3252, 0
    %v3331 = vsel %vm20, %v3253, 0
    %v3334 = vsel %vm20, %v3254, 0
    %v3337 = vsel %vm20, %v3255, 0
    %v3340 = vsel %vm20, %v3256, 0
    %v3343 = vsel %vm20, %v3257, 0
    %v3346 = vsel %vm20, %v3258, 0
    %v3349 = vsel %vm20, %v3259, 0
    %v3352 = vsel %vm20, %v3260, 0
    %v3355 = vsel %vm20, %v3261, 0
    %v3358 = vsel %vm20, %v3262, 0
    %v3361 = vsel %vm20, %v3263, 0
    %v3364 = vsel %vm20, %v3264, 0
    %v3367 = vsel %vm20, %v3265, 0
    %v3370 = vsel %vm20, %v3266, 0
    %v3373 = vsel %vm20, %v3267, 0
    %v3376 = vsel %vm20, %v3268, 0
    %v3379 = vsel %vm20, %v3269, 0
    %v3382 = vsel %vm20, %v3270, 0
    %v3385 = vsel %vm20, %v3271, 0
    %v3388 = vsel %vm20, %v3272, 0
    %v3391 = vsel %vm20, %v3273, 0
    %v3394 = vsel %vm20, %v3274, 0
    %v3397 = vsel %vm20, %v3275, 0
    %v3400 = vsel %vm20, %v3276, 0
    %v3403 = vsel %vm20, %v3277, 0
    %v3406 = vsel %vm20, %v3278, 0
    %v3409 = vsel %vm20, %v3279, 0
    %v3412 = vsel %vm20, %v3280, 0
    %v3415 = vsel %vm20, %v3281, 0
    %v3418 = vsel %vm20, %v3282, 0
    %v3421 = vsel %vm20, %v3283, 0
    %v3424 = vsel %vm20, %v3284, 0
    %v3427 = vsel %vm20, %v3285, 0
    %v3430 = vsel %vm20, %v3286, 0
    %v3433 = vsel %vm20, %v3287, 0
    %v3436 = vsel %vm20, %v3288, 0
    %v3439 = vsel %vm20, %v3289, 0
    %v3442 = vsel %vm20, %v3290, 0
    %v3445 = vsel %vm20, %v3291, 0
    %v3448 = vsel %vm20, %v3292, 0
    %v3451 = vsel %vm20, %v3293, 0
    %v3454 = vsel %vm20, %v3294, 0
    %v3457 = vsel %vm20, %v3295, 0
    %v3460 = vsel %vm20, %v3296, 0
    %v3463 = vsel %vm20, %v3297, 0
    %v3466 = vsel %vm20, %v3298, 0
    %v3469 = vsel %vm20, %v3299, 0
    %v3472 = vsel %vm20, %v3300, 0
    %v3475 = vsel %vm20, %v3301, 0
    %v3478 = vsel %vm20, %v3302, 0
    %v3481 = vsel %vm20, %v3303, 0
    %v3484 = vsel %vm20, %v3304, 0
    %v3487 = vsel %vm20, %v3305, 0
    %v3490 = vsel %vm20, %v3306, 0
    %v3493 = vsel %vm20, %v3307, 0
    %v3496 = vsel %vm20, %v3308, 0
    %v3499 = vsel %vm20, %v3309, 0
    %v3502 = vsel %vm20, %v3310, 0
    %v3505 = vsel %vm20, %v3311, 0
    %v3508 = vsel %vm20, %v3312, 0
    %v3511 = vsel %vm20, %v3313, 0
    %v3514 = vsel %vm20, %v3314, 0
    %3516 = vmatprep.subr.mxu0 0.0
    %3517 = vmatpush1.xpose.msra.mxu0 %v3325
    %3518 = vmatprep.subr.mxu0 0.0
    %3519 = vmatpush1.xpose.msra.mxu0 %v3328
    %3520 = vmatprep.subr.mxu0 0.0
    %3521 = vmatpush1.xpose.msra.mxu0 %v3331
    %3522 = vmatprep.subr.mxu0 0.0
    %3523 = vmatpush1.xpose.msra.mxu0 %v3334
    %3524 = vmatprep.subr.mxu0 0.0
    %3525 = vmatpush1.xpose.msra.mxu0 %v3337
    %3526 = vmatprep.subr.mxu0 0.0
    %3527 = vmatpush1.xpose.msra.mxu0 %v3340
    %3528 = vmatprep.subr.mxu0 0.0
    %3529 = vmatpush1.xpose.msra.mxu0 %v3343
    %3530 = vmatprep.subr.mxu0 0.0
    %3531 = vmatpush1.xpose.msra.mxu0 %v3346
    %3532 = vmatprep.subr.mxu0 0.0
    %3533 = vmatpush1.xpose.msra.mxu0 %v3349
    %3534 = vmatprep.subr.mxu0 0.0
    %3535 = vmatpush1.xpose.msra.mxu0 %v3352
    %3536 = vmatprep.subr.mxu0 0.0
    %3537 = vmatpush1.xpose.msra.mxu0 %v3355
    %3538 = vmatprep.subr.mxu0 0.0
    %3539 = vmatpush1.xpose.msra.mxu0 %v3358
    %3540 = vmatprep.subr.mxu0 0.0
    %3541 = vmatpush1.xpose.msra.mxu0 %v3361
    %3542 = vmatprep.subr.mxu0 0.0
    %3543 = vmatpush1.xpose.msra.mxu0 %v3364
    %3544 = vmatprep.subr.mxu0 0.0
    %3545 = vmatpush1.xpose.msra.mxu0 %v3367
    %3546 = vmatprep.subr.mxu0 0.0
    %3547 = vmatpush1.xpose.msra.mxu0 %v3370
    %3548 = vmatprep.subr.mxu0 0.0
    %3549 = vmatpush1.xpose.msra.mxu0 %v3373
    %3550 = vmatprep.subr.mxu0 0.0
    %3551 = vmatpush1.xpose.msra.mxu0 %v3376
    %3552 = vmatprep.subr.mxu0 0.0
    %3553 = vmatpush1.xpose.msra.mxu0 %v3379
    %3554 = vmatprep.subr.mxu0 0.0
    %3555 = vmatpush1.xpose.msra.mxu0 %v3382
    %3556 = vmatprep.subr.mxu0 0.0
    %3557 = vmatpush1.xpose.msra.mxu0 %v3385
    %3558 = vmatprep.subr.mxu0 0.0
    %3559 = vmatpush1.xpose.msra.mxu0 %v3388
    %3560 = vmatprep.subr.mxu0 0.0
    %3561 = vmatpush1.xpose.msra.mxu0 %v3391
    %3562 = vmatprep.subr.mxu0 0.0
    %3563 = vmatpush1.xpose.msra.mxu0 %v3394
    %3564 = vmatprep.subr.mxu0 0.0
    %3565 = vmatpush1.xpose.msra.mxu0 %v3397
    %3566 = vmatprep.subr.mxu0 0.0
    %3567 = vmatpush1.xpose.msra.mxu0 %v3400
    %3568 = vmatprep.subr.mxu0 0.0
    %3569 = vmatpush1.xpose.msra.mxu0 %v3403
    %3570 = vmatprep.subr.mxu0 0.0
    %3571 = vmatpush1.xpose.msra.mxu0 %v3406
    %3572 = vmatprep.subr.mxu0 0.0
    %3573 = vmatpush1.xpose.msra.mxu0 %v3409
    %3574 = vmatprep.subr.mxu0 0.0
    %3575 = vmatpush1.xpose.msra.mxu0 %v3412
    %3576 = vmatprep.subr.mxu0 0.0
    %3577 = vmatpush1.xpose.msra.mxu0 %v3415
    %3578 = vmatprep.subr.mxu0 0.0
    %3579 = vmatpush1.xpose.msra.mxu0 %v3418
    %3580 = vmatprep.mubr.f32.mxu0 0.0
    %3581 = vmatmul.mubr.f32.gmra.mrb[0].mxu0 %v3322
    %v3582 = vpop.f32.mrb[0].mxu0
    %v3583 = vadd.f32 %v3319, %v3582
    %v3584 = vpop.f32.mrb[0].mxu0
    %v3585 = vadd.f32 %v3319, %v3584
    %3586 = vdwg.mxu0
    %3587 = vmatprep.subr.mxu0 0.0
    %3588 = vmatpush1.xpose.msra.mxu0 %v3421
    %3589 = vmatprep.subr.mxu0 0.0
    %3590 = vmatpush1.xpose.msra.mxu0 %v3424
    %3591 = vmatprep.subr.mxu0 0.0
    %3592 = vmatpush1.xpose.msra.mxu0 %v3427
    %3593 = vmatprep.subr.mxu0 0.0
    %3594 = vmatpush1.xpose.msra.mxu0 %v3430
    %3595 = vmatprep.subr.mxu0 0.0
    %3596 = vmatpush1.xpose.msra.mxu0 %v3433
    %3597 = vmatprep.subr.mxu0 0.0
    %3598 = vmatpush1.xpose.msra.mxu0 %v3436
    %3599 = vmatprep.subr.mxu0 0.0
    %3600 = vmatpush1.xpose.msra.mxu0 %v3439
    %3601 = vmatprep.subr.mxu0 0.0
    %3602 = vmatpush1.xpose.msra.mxu0 %v3442
    %3603 = vmatprep.subr.mxu0 0.0
    %3604 = vmatpush1.xpose.msra.mxu0 %v3445
    %3605 = vmatprep.subr.mxu0 0.0
    %3606 = vmatpush1.xpose.msra.mxu0 %v3448
    %3607 = vmatprep.subr.mxu0 0.0
    %3608 = vmatpush1.xpose.msra.mxu0 %v3451
    %3609 = vmatprep.subr.mxu0 0.0
    %3610 = vmatpush1.xpose.msra.mxu0 %v3454
    %3611 = vmatprep.subr.mxu0 0.0
    %3612 = vmatpush1.xpose.msra.mxu0 %v3457
    %3613 = vmatprep.subr.mxu0 0.0
    %3614 = vmatpush1.xpose.msra.mxu0 %v3460
    %3615 = vmatprep.subr.mxu0 0.0
    %3616 = vmatpush1.xpose.msra.mxu0 %v3463
    %3617 = vmatprep.subr.mxu0 0.0
    %3618 = vmatpush1.xpose.msra.mxu0 %v3466
    %3619 = vmatprep.subr.mxu0 0.0
    %3620 = vmatpush1.xpose.msra.mxu0 %v3469
    %3621 = vmatprep.subr.mxu0 0.0
    %3622 = vmatpush1.xpose.msra.mxu0 %v3472
    %3623 = vmatprep.subr.mxu0 0.0
    %3624 = vmatpush1.xpose.msra.mxu0 %v3475
    %3625 = vmatprep.subr.mxu0 0.0
    %3626 = vmatpush1.xpose.msra.mxu0 %v3478
    %3627 = vmatprep.subr.mxu0 0.0
    %3628 = vmatpush1.xpose.msra.mxu0 %v3481
    %3629 = vmatprep.subr.mxu0 0.0
    %3630 = vmatpush1.xpose.msra.mxu0 %v3484
    %3631 = vmatprep.subr.mxu0 0.0
    %3632 = vmatpush1.xpose.msra.mxu0 %v3487
    %3633 = vmatprep.subr.mxu0 0.0
    %3634 = vmatpush1.xpose.msra.mxu0 %v3490
    %3635 = vmatprep.subr.mxu0 0.0
    %3636 = vmatpush1.xpose.msra.mxu0 %v3493
    %3637 = vmatprep.subr.mxu0 0.0
    %3638 = vmatpush1.xpose.msra.mxu0 %v3496
    %3639 = vmatprep.subr.mxu0 0.0
    %3640 = vmatpush1.xpose.msra.mxu0 %v3499
    %3641 = vmatprep.subr.mxu0 0.0
    %3642 = vmatpush1.xpose.msra.mxu0 %v3502
    %3643 = vmatprep.subr.mxu0 0.0
    %3644 = vmatpush1.xpose.msra.mxu0 %v3505
    %3645 = vmatprep.subr.mxu0 0.0
    %3646 = vmatpush1.xpose.msra.mxu0 %v3508
    %3647 = vmatprep.subr.mxu0 0.0
    %3648 = vmatpush1.xpose.msra.mxu0 %v3511
    %3649 = vmatprep.subr.mxu0 0.0
    %3650 = vmatpush1.xpose.msra.mxu0 %v3514
    %3651 = vmatprep.mubr.f32.mxu0 0.0
    %3652 = vmatmul.mubr.f32.gmra.mrb[0].mxu0 %v3322
    %v3653 = vpop.f32.mrb[0].mxu0
    %v3654 = vadd.f32 %v3319, %v3653
    %v3655 = vpop.f32.mrb[0].mxu0
    %v3656 = vadd.f32 %v3319, %v3655
    %3657 = vdwg.mxu0
    %3658 = vst [vmem:[#allocation3] sm:$0xff] %v3583
    %3659 = vst [vmem:[#allocation3 + $0x8] sm:$0xff] %v3585
    %s3660 = scalar_lea.vmem [#allocation3], 16
    %3661 = vst [vmem:[%s3660] sm:$0xff] %v3654
    %3662 = vst [vmem:[%s3660 + $0x8] sm:$0xff] %v3656
    // Predicated region
    $region18: #{tpu_custom_call.1} parent=1 // pred_check
      _
    $region19: #{tpu_custom_call.1} parent=1 // pred_check_branch
      %3664 = sbr.rel (0) target = $region21
    $region20: #{tpu_custom_call.1} parent=1 // pred_region
      %s3666 = ssub.s32 512, 512
      %3667 = vsyncadd [#allocation4], %s3666
      %s3668 = sshll.u32 [#allocation3], 4
      %s3669 = int_to_ptr.vmem [resolvable:$true] %s3668
      %3674 = dma.vmem_to_hbm [thread:$0]  %s3669, 512, %s4, [#allocation4], 256, 256, 16
    $region21: #{tpu_custom_call.1} parent=1 // pred_fallthru
      _
    // Predicated region
    $region22: #{tpu_custom_call.1} parent=1 // pred_check
      _
    $region23: #{tpu_custom_call.1} parent=1 // pred_check_branch
      %3676 = sbr.rel (0) target = $region25
    $region24: #{tpu_custom_call.1} parent=1 // pred_region
      %3677 = dma.done [#allocation4], 512
    $region25: #{tpu_custom_call.1} parent=1 // pred_fallthru
      _
    %3678 = vsyncpa [#allocation4], 1

</llo_original>
